<compile_context>
chip_gen: v6e
topology: v6e:2x2x1
jax: 0.10.0
libtpu: 0.0.40
codegen_flags: <defaults>
</compile_context>

<pallas_src>
import functools
import math

import jax
import jax.numpy as jnp
from jax.experimental import pallas as pl
from jax.experimental.pallas import tpu as pltpu

BN_EPS = 1e-5
_LANES = 128
_SUBLANES = 8


def _round_up(x, m):
    return ((x + m - 1) // m) * m


@functools.lru_cache(maxsize=None)
def _vmem_limit_bytes():
    """Scoped-VMEM limit derived from the chip (64 MiB v7x, 128 MiB v5e/v6e)."""
    try:
        cap = int(getattr(pltpu.get_tpu_info(), "vmem_capacity_bytes", 128 << 20))
    except Exception:                      # query unavailable -> assume smallest (v7x)
        cap = 64 << 20
    return int(min((cap * 3) // 4, 100 << 20))


def _pick_hw_tile(N, Cpad, HW):
    """Head spatial tile: double-buffered bf16 (N, tile, Cpad) block in budget."""
    budget = max(4 << 20, _vmem_limit_bytes() // 6)
    t = budget // (2 * 2 * N * Cpad)       # bf16 * 2 buffers
    if t >= HW:
        return int(HW)                     # single block == full dim (always legal)
    return int(max(_SUBLANES, (t // _SUBLANES) * _SUBLANES))


# ----------------------------- Pallas kernels ------------------------------

def _conv_relu_stats_kernel(x_ref, w_ref, b_ref, y_ref, stats_ref, *, H, W, K):
    """One image of y = relu(conv(x) + b); emit per-image BN partial stats.

    x_ref:     (1, H+K-1, W+K-1, Cin_p) bf16  spatially padded NHWC input
    w_ref:     (K*K, Cin_p, Cpad)       bf16  conv weight, (ky,kx) major
    b_ref:     (1, Cpad)                f32   bias
    y_ref:     (1, H*W, Cpad)           bf16  un-normalized ReLU output
    stats_ref: (1, 2, Cpad)             f32   per-image [sum; sum-of-squares]
    """
    x = x_ref[0]                                        # (Hp, Wp, Cin_p)
    cin = x.shape[-1]
    acc = None
    # In-kernel im2col: K*K shifted windows, each a lane-dense MXU matmul,
    # accumulated in f32 (no HBM patch expansion, no 128-pad of the contraction).
    for ky in range(K):
        for kx in range(K):
            win = x[ky:ky + H, kx:kx + W, :].reshape(H * W, cin)
            part = jnp.dot(win, w_ref[ky * K + kx],
                           preferred_element_type=jnp.float32)
            acc = part if acc is None else acc + part
    y = jnp.maximum(acc + b_ref[...], 0.0)              # (H*W, Cpad) f32
    y_ref[0] = y.astype(y_ref.dtype)
    # NOTE: E[x^2] - mean^2 in f32 accumulators; adequate for ReLU-scaled
    # activations at DCNet sizes (clamped at 0 downstream).
    stats_ref[0] = jnp.concatenate(
        [jnp.sum(y, axis=0, keepdims=True),
         jnp.sum(y * y, axis=0, keepdims=True)], axis=0)


def _head_kernel(y_ref, scale_ref, shift_ref, wl_ref, bl_ref, out_ref, pooled_ref,
                 *, HW, tile_hw):
    """Fused BatchNorm + global max-pool (running max over HW tiles) + Linear.

    y_ref:      (N, tile_hw, Cpad) bf16   last conv layer's raw ReLU output
    scale_ref:  (1, Cpad) f32             folded BN scale (ones if no BN)
    shift_ref:  (1, Cpad) f32             folded BN shift (zeros if no BN)
    wl_ref:     (Cpad, Clp) f32           Linear weight (f32 head matmul)
    bl_ref:     (1, Clp) f32              Linear bias
    out_ref:    (N, Clp) f32              logits
    pooled_ref: (N, Cpad) f32 scratch     running max across the grid
    """
    t = pl.program_id(0)

    @pl.when(t == 0)
    def _init():
        pooled_ref[...] = jnp.full(pooled_ref.shape, jnp.finfo(jnp.float32).min,
                                   jnp.float32)

    y = y_ref[...].astype(jnp.float32)                       # (N, tile_hw, Cpad)
    y = y * scale_ref[...][None] + shift_ref[...][None]      # BatchNorm (folded)
    hw_idx = jax.lax.broadcasted_iota(jnp.int32, y.shape, 1) + t * tile_hw
    y = jnp.where(hw_idx < HW, y, jnp.finfo(jnp.float32).min)
    pooled_ref[...] = jnp.maximum(pooled_ref[...], jnp.max(y, axis=1))

    @pl.when(t == pl.num_programs(0) - 1)
    def _final():
        out_ref[...] = (jnp.dot(pooled_ref[...], wl_ref[...],
                                preferred_element_type=jnp.float32) + bl_ref[...])


# ------------------------------ JAX wrappers -------------------------------

def conv_relu_stats(x_nhwc, w, b, *, kernel_size):
    """Conv + ReLU per image; returns (y bf16 (N,H*W,Cpad), stats (2,Cpad), meta)."""
    K = kernel_size
    # TODO(synk): even kernel_size needs PyTorch's shrink-by-one output; odd-K only.
    assert K % 2 == 1, "kernel_size must be odd for same-size output"
    N, H, W, Cin = x_nhwc.shape
    Cout = w.shape[-1]
    Cpad = _round_up(Cout, _LANES)
    Cin_p = _round_up(Cin, _SUBLANES)
    pad = (K - 1) // 2
    Hp, Wp = H + 2 * pad, W + 2 * pad

    # Cast to bf16 before padding; spatial + channel pads in one fused XLA pad.
    xp = jnp.pad(x_nhwc.astype(jnp.bfloat16),
                 ((0, 0), (pad, pad), (pad, pad), (0, Cin_p - Cin)))
    wf = jnp.pad(w.astype(jnp.float32),
                 ((0, 0), (0, 0), (0, Cin_p - Cin), (0, Cpad - Cout))
                 ).reshape(K * K, Cin_p, Cpad).astype(jnp.bfloat16)
    bp = jnp.pad(b.astype(jnp.float32).reshape(1, -1), ((0, 0), (0, Cpad - Cout)))

    kern = functools.partial(_conv_relu_stats_kernel, H=H, W=W, K=K)
    y, stats = pl.pallas_call(
        kern,
        grid=(N,),
        out_shape=(jax.ShapeDtypeStruct((N, H * W, Cpad), jnp.bfloat16),
                   jax.ShapeDtypeStruct((N, 2, Cpad), jnp.float32)),
        in_specs=[pl.BlockSpec((1, Hp, Wp, Cin_p), lambda n: (n, 0, 0, 0)),
                  pl.BlockSpec((K * K, Cin_p, Cpad), lambda n: (0, 0, 0)),
                  pl.BlockSpec((1, Cpad), lambda n: (0, 0))],
        out_specs=(pl.BlockSpec((1, H * W, Cpad), lambda n: (n, 0, 0)),
                   pl.BlockSpec((1, 2, Cpad), lambda n: (n, 0, 0))),
        compiler_params=pltpu.CompilerParams(
            dimension_semantics=("parallel",),   # per-image partial stats -> no race
            vmem_limit_bytes=_vmem_limit_bytes()),
    )(xp, wf, bp)

    stats = jnp.sum(stats, axis=0)               # tiny (2, Cpad) reduction in XLA
    meta = dict(N=N, H=H, W=W, Cout=Cout, Cpad=Cpad)
    return y, stats, meta


def _bn_scale_shift(stats, gamma, beta, count, Cout):
    """Training-mode BatchNorm (biased variance) folded to per-channel affine."""
    mean = stats[0, :Cout] / count
    var = jnp.maximum(stats[1, :Cout] / count - mean * mean, 0.0)
    scale = gamma.reshape(-1) * jax.lax.rsqrt(var + BN_EPS)
    shift = beta.reshape(-1) - mean * scale
    return scale, shift


def head_fused(y, stats, gamma, beta, wl, bl, *, use_bn, count, Cout, Cpad):
    """Fused BN + global max-pool + Linear, tiled over the spatial axis."""
    N, HW, _ = y.shape
    classes = wl.shape[1]
    Clp = _round_up(classes, _LANES)

    if use_bn:
        scale, shift = _bn_scale_shift(stats, gamma, beta, count, Cout)
    else:
        scale = jnp.ones((Cout,), jnp.float32)
        shift = jnp.zeros((Cout,), jnp.float32)
    # Padded channels of y are identically zero and hit zero Linear-weight rows;
    # pad scale/shift with zeros so they stay finite (no inf/nan).
    scale = jnp.pad(scale, (0, Cpad - Cout)).reshape(1, Cpad)
    shift = jnp.pad(shift, (0, Cpad - Cout)).reshape(1, Cpad)
    wlp = jnp.pad(wl.astype(jnp.float32), ((0, Cpad - Cout), (0, Clp - classes)))
    blp = jnp.pad(bl.astype(jnp.float32), ((0, 0), (0, Clp - classes)))

    tile_hw = _pick_hw_tile(N, Cpad, HW)
    grid = pl.cdiv(HW, tile_hw)
    kern = functools.partial(_head_kernel, HW=HW, tile_hw=tile_hw)
    out = pl.pallas_call(
        kern,
        grid=(grid,),
        out_shape=jax.ShapeDtypeStruct((N, Clp), jnp.float32),
        in_specs=[pl.BlockSpec((N, tile_hw, Cpad), lambda t: (0, t, 0)),
                  pl.BlockSpec((1, Cpad), lambda t: (0, 0)),
                  pl.BlockSpec((1, Cpad), lambda t: (0, 0)),
                  pl.BlockSpec((Cpad, Clp), lambda t: (0, 0)),
                  pl.BlockSpec((1, Clp), lambda t: (0, 0))],
        out_specs=pl.BlockSpec((N, Clp), lambda t: (0, 0)),
        scratch_shapes=[pltpu.VMEM((N, Cpad), jnp.float32)],
        compiler_params=pltpu.CompilerParams(
            dimension_semantics=("arbitrary",),   # running-max scratch across tiles
            vmem_limit_bytes=_vmem_limit_bytes()),
    )(y, scale, shift, wlp, blp)
    return out[:, :classes]


def dcnet_forward(x_nchw, params, *, kernel_size, batchnorm=True):
    x = jnp.transpose(x_nchw, (0, 2, 3, 1))       # NCHW -> NHWC
    n_layers = len(params["conv"])
    for li in range(n_layers):
        w, b = params["conv"][li]
        y, stats, m = conv_relu_stats(x, w, b, kernel_size=kernel_size)
        N, H, W, Cout, Cpad = m["N"], m["H"], m["W"], m["Cout"], m["Cpad"]
        count = N * H * W
        if li < n_layers - 1:
            # BatchNorm folded as a per-channel affine in plain XLA; it fuses
            # with the slice / bf16 cast / spatial pad of the next conv layer,
            # so no extra HBM pass over the activation.
            yr = y[:, :, :Cout].astype(jnp.float32)
            if batchnorm:
                gamma, beta = params["bn"][li]
                scale, shift = _bn_scale_shift(stats, gamma, beta, count, Cout)
                yr = yr * scale + shift
            x = yr.reshape(N, H, W, Cout)
        else:
            gamma, beta = params["bn"][li]
            wl, bl = params["linear"]
            return head_fused(y, stats, gamma, beta, wl, bl, use_bn=batchnorm,
                              count=count, Cout=Cout, Cpad=Cpad)


# --------------------------- deterministic init ----------------------------

def init_params(key, channels, num_layers, num_filters, kernel_size, classes):
    params = {"conv": [], "bn": [], "linear": None}
    c_in, c_out = channels, num_filters
    for _ in range(num_layers):
        key, kw, kb = jax.random.split(key, 3)
        fan_in = c_in * kernel_size * kernel_size
        bound = 1.0 / math.sqrt(fan_in)
        w = jax.random.uniform(kw, (kernel_size, kernel_size, c_in, c_out),
                               jnp.float32, -bound, bound)
        b = jax.random.uniform(kb, (1, c_out), jnp.float32, -bound, bound)
        params["conv"].append((w, b))
        # BatchNorm2d defaults: gamma=1, beta=0 (training-mode batch stats).
        params["bn"].append((jnp.ones((1, c_out), jnp.float32),
                             jnp.zeros((1, c_out), jnp.float32)))
        c_in = c_out
    key, kw, kb = jax.random.split(key, 3)
    bound = 1.0 / math.sqrt(c_out)
    wl = jax.random.uniform(kw, (c_out, classes), jnp.float32, -bound, bound)
    bl = jax.random.uniform(kb, (1, classes), jnp.float32, -bound, bound)
    params["linear"] = (wl, bl)
    return params


# ---------------------------------- main -----------------------------------

if __name__ == "__main__":
    N, C, S = 2, 4, 16
    num_layers, num_filters, kernel_size, classes = 2, 8, 3, 10

    key = jax.random.PRNGKey(0)
    kx, kp = jax.random.split(key)
    x = jax.random.normal(kx, (N, C, S, S), jnp.float32)          # NCHW like PyTorch
    params = init_params(kp, C, num_layers, num_filters, kernel_size, classes)

    fwd = jax.jit(functools.partial(dcnet_forward,
                                    kernel_size=kernel_size, batchnorm=True))
    logits = jax.block_until_ready(fwd(x, params))
    assert logits.shape == (N, classes) and logits.dtype == jnp.float32
    assert bool(jnp.all(jnp.isfinite(logits)))
    print("KERNEL_OK")
</pallas_src>

<mosaic_0001>
module attributes {stable_mosaic.version = 11 : i64} {
  func.func @_conv_relu_stats_kernel(%arg0: i32, %arg1: memref<1x18x18x8xbf16, #tpu.memory_space<vmem>>, %arg2: memref<9x8x128xbf16, #tpu.memory_space<vmem>>, %arg3: memref<1x128xf32, #tpu.memory_space<vmem>>, %arg4: memref<1x256x128xbf16, #tpu.memory_space<vmem>>, %arg5: memref<1x2x128xf32, #tpu.memory_space<vmem>>) attributes {dimension_semantics = [#tpu.dimension_semantics<parallel>], iteration_bounds = array<i64: 2>, scalar_prefetch = 0 : i64, scratch_operands = 0 : i64, tpu.core_type = #tpu.core_type<tc>, window_params = [{transform_indices = @transform_0, window_bounds = array<i64: 1, 18, 18, 8>}, {pipeline_mode = #tpu.pipeline_mode<synchronous>, transform_indices = @transform_1, window_bounds = array<i64: 9, 8, 128>}, {pipeline_mode = #tpu.pipeline_mode<synchronous>, transform_indices = @transform_2, window_bounds = array<i64: 1, 128>}, {transform_indices = @transform_3, window_bounds = array<i64: 1, 256, 128>}, {transform_indices = @transform_4, window_bounds = array<i64: 1, 2, 128>}]} {
    %c0 = arith.constant 0 : index
    %c0_0 = arith.constant 0 : index
    %c0_1 = arith.constant 0 : index
    %c0_2 = arith.constant 0 : index
    %0 = vector.load %arg1[%c0, %c0_0, %c0_1, %c0_2] : memref<1x18x18x8xbf16, #tpu.memory_space<vmem>>, vector<1x18x18x8xbf16>
    %1 = vector.shape_cast %0 : vector<1x18x18x8xbf16> to vector<18x18x8xbf16>
    %2 = vector.extract_strided_slice %1 {offsets = [0, 0, 0], sizes = [16, 16, 8], strides = [1, 1, 1]} : vector<18x18x8xbf16> to vector<16x16x8xbf16>
    %3 = vector.shape_cast %2 : vector<16x16x8xbf16> to vector<256x8xbf16>
    %c0_3 = arith.constant 0 : index
    %c0_4 = arith.constant 0 : index
    %c0_5 = arith.constant 0 : index
    %4 = vector.load %arg2[%c0_3, %c0_4, %c0_5] : memref<9x8x128xbf16, #tpu.memory_space<vmem>>, vector<1x8x128xbf16>
    %5 = vector.shape_cast %4 : vector<1x8x128xbf16> to vector<8x128xbf16>
    %cst = arith.constant dense<0.000000e+00> : vector<256x128xf32>
    %6 = tpu.matmul %3, %5, %cst {dimension_numbers = #tpu.dot_dimension_numbers<[1], [0], [0], [1], [0, 0, 1, 1], [], []>} : vector<256x8xbf16>, vector<8x128xbf16>, vector<256x128xf32> -> vector<256x128xf32>
    %7 = vector.extract_strided_slice %1 {offsets = [0, 1, 0], sizes = [16, 16, 8], strides = [1, 1, 1]} : vector<18x18x8xbf16> to vector<16x16x8xbf16>
    %8 = vector.shape_cast %7 : vector<16x16x8xbf16> to vector<256x8xbf16>
    %c1 = arith.constant 1 : index
    %c0_6 = arith.constant 0 : index
    %c0_7 = arith.constant 0 : index
    %9 = vector.load %arg2[%c1, %c0_6, %c0_7] : memref<9x8x128xbf16, #tpu.memory_space<vmem>>, vector<1x8x128xbf16>
    %10 = vector.shape_cast %9 : vector<1x8x128xbf16> to vector<8x128xbf16>
    %cst_8 = arith.constant dense<0.000000e+00> : vector<256x128xf32>
    %11 = tpu.matmul %8, %10, %cst_8 {dimension_numbers = #tpu.dot_dimension_numbers<[1], [0], [0], [1], [0, 0, 1, 1], [], []>} : vector<256x8xbf16>, vector<8x128xbf16>, vector<256x128xf32> -> vector<256x128xf32>
    %12 = arith.addf %6, %11 : vector<256x128xf32>
    %13 = vector.extract_strided_slice %1 {offsets = [0, 2, 0], sizes = [16, 16, 8], strides = [1, 1, 1]} : vector<18x18x8xbf16> to vector<16x16x8xbf16>
    %14 = vector.shape_cast %13 : vector<16x16x8xbf16> to vector<256x8xbf16>
    %c2 = arith.constant 2 : index
    %c0_9 = arith.constant 0 : index
    %c0_10 = arith.constant 0 : index
    %15 = vector.load %arg2[%c2, %c0_9, %c0_10] : memref<9x8x128xbf16, #tpu.memory_space<vmem>>, vector<1x8x128xbf16>
    %16 = vector.shape_cast %15 : vector<1x8x128xbf16> to vector<8x128xbf16>
    %cst_11 = arith.constant dense<0.000000e+00> : vector<256x128xf32>
    %17 = tpu.matmul %14, %16, %cst_11 {dimension_numbers = #tpu.dot_dimension_numbers<[1], [0], [0], [1], [0, 0, 1, 1], [], []>} : vector<256x8xbf16>, vector<8x128xbf16>, vector<256x128xf32> -> vector<256x128xf32>
    %18 = arith.addf %12, %17 : vector<256x128xf32>
    %19 = vector.extract_strided_slice %1 {offsets = [1, 0, 0], sizes = [16, 16, 8], strides = [1, 1, 1]} : vector<18x18x8xbf16> to vector<16x16x8xbf16>
    %20 = vector.shape_cast %19 : vector<16x16x8xbf16> to vector<256x8xbf16>
    %c3 = arith.constant 3 : index
    %c0_12 = arith.constant 0 : index
    %c0_13 = arith.constant 0 : index
    %21 = vector.load %arg2[%c3, %c0_12, %c0_13] : memref<9x8x128xbf16, #tpu.memory_space<vmem>>, vector<1x8x128xbf16>
    %22 = vector.shape_cast %21 : vector<1x8x128xbf16> to vector<8x128xbf16>
    %cst_14 = arith.constant dense<0.000000e+00> : vector<256x128xf32>
    %23 = tpu.matmul %20, %22, %cst_14 {dimension_numbers = #tpu.dot_dimension_numbers<[1], [0], [0], [1], [0, 0, 1, 1], [], []>} : vector<256x8xbf16>, vector<8x128xbf16>, vector<256x128xf32> -> vector<256x128xf32>
    %24 = arith.addf %18, %23 : vector<256x128xf32>
    %25 = vector.extract_strided_slice %1 {offsets = [1, 1, 0], sizes = [16, 16, 8], strides = [1, 1, 1]} : vector<18x18x8xbf16> to vector<16x16x8xbf16>
    %26 = vector.shape_cast %25 : vector<16x16x8xbf16> to vector<256x8xbf16>
    %c4 = arith.constant 4 : index
    %c0_15 = arith.constant 0 : index
    %c0_16 = arith.constant 0 : index
    %27 = vector.load %arg2[%c4, %c0_15, %c0_16] : memref<9x8x128xbf16, #tpu.memory_space<vmem>>, vector<1x8x128xbf16>
    %28 = vector.shape_cast %27 : vector<1x8x128xbf16> to vector<8x128xbf16>
    %cst_17 = arith.constant dense<0.000000e+00> : vector<256x128xf32>
    %29 = tpu.matmul %26, %28, %cst_17 {dimension_numbers = #tpu.dot_dimension_numbers<[1], [0], [0], [1], [0, 0, 1, 1], [], []>} : vector<256x8xbf16>, vector<8x128xbf16>, vector<256x128xf32> -> vector<256x128xf32>
    %30 = arith.addf %24, %29 : vector<256x128xf32>
    %31 = vector.extract_strided_slice %1 {offsets = [1, 2, 0], sizes = [16, 16, 8], strides = [1, 1, 1]} : vector<18x18x8xbf16> to vector<16x16x8xbf16>
    %32 = vector.shape_cast %31 : vector<16x16x8xbf16> to vector<256x8xbf16>
    %c5 = arith.constant 5 : index
    %c0_18 = arith.constant 0 : index
    %c0_19 = arith.constant 0 : index
    %33 = vector.load %arg2[%c5, %c0_18, %c0_19] : memref<9x8x128xbf16, #tpu.memory_space<vmem>>, vector<1x8x128xbf16>
    %34 = vector.shape_cast %33 : vector<1x8x128xbf16> to vector<8x128xbf16>
    %cst_20 = arith.constant dense<0.000000e+00> : vector<256x128xf32>
    %35 = tpu.matmul %32, %34, %cst_20 {dimension_numbers = #tpu.dot_dimension_numbers<[1], [0], [0], [1], [0, 0, 1, 1], [], []>} : vector<256x8xbf16>, vector<8x128xbf16>, vector<256x128xf32> -> vector<256x128xf32>
    %36 = arith.addf %30, %35 : vector<256x128xf32>
    %37 = vector.extract_strided_slice %1 {offsets = [2, 0, 0], sizes = [16, 16, 8], strides = [1, 1, 1]} : vector<18x18x8xbf16> to vector<16x16x8xbf16>
    %38 = vector.shape_cast %37 : vector<16x16x8xbf16> to vector<256x8xbf16>
    %c6 = arith.constant 6 : index
    %c0_21 = arith.constant 0 : index
    %c0_22 = arith.constant 0 : index
    %39 = vector.load %arg2[%c6, %c0_21, %c0_22] : memref<9x8x128xbf16, #tpu.memory_space<vmem>>, vector<1x8x128xbf16>
    %40 = vector.shape_cast %39 : vector<1x8x128xbf16> to vector<8x128xbf16>
    %cst_23 = arith.constant dense<0.000000e+00> : vector<256x128xf32>
    %41 = tpu.matmul %38, %40, %cst_23 {dimension_numbers = #tpu.dot_dimension_numbers<[1], [0], [0], [1], [0, 0, 1, 1], [], []>} : vector<256x8xbf16>, vector<8x128xbf16>, vector<256x128xf32> -> vector<256x128xf32>
    %42 = arith.addf %36, %41 : vector<256x128xf32>
    %43 = vector.extract_strided_slice %1 {offsets = [2, 1, 0], sizes = [16, 16, 8], strides = [1, 1, 1]} : vector<18x18x8xbf16> to vector<16x16x8xbf16>
    %44 = vector.shape_cast %43 : vector<16x16x8xbf16> to vector<256x8xbf16>
    %c7 = arith.constant 7 : index
    %c0_24 = arith.constant 0 : index
    %c0_25 = arith.constant 0 : index
    %45 = vector.load %arg2[%c7, %c0_24, %c0_25] : memref<9x8x128xbf16, #tpu.memory_space<vmem>>, vector<1x8x128xbf16>
    %46 = vector.shape_cast %45 : vector<1x8x128xbf16> to vector<8x128xbf16>
    %cst_26 = arith.constant dense<0.000000e+00> : vector<256x128xf32>
    %47 = tpu.matmul %44, %46, %cst_26 {dimension_numbers = #tpu.dot_dimension_numbers<[1], [0], [0], [1], [0, 0, 1, 1], [], []>} : vector<256x8xbf16>, vector<8x128xbf16>, vector<256x128xf32> -> vector<256x128xf32>
    %48 = arith.addf %42, %47 : vector<256x128xf32>
    %49 = vector.extract_strided_slice %1 {offsets = [2, 2, 0], sizes = [16, 16, 8], strides = [1, 1, 1]} : vector<18x18x8xbf16> to vector<16x16x8xbf16>
    %50 = vector.shape_cast %49 : vector<16x16x8xbf16> to vector<256x8xbf16>
    %c8 = arith.constant 8 : index
    %c0_27 = arith.constant 0 : index
    %c0_28 = arith.constant 0 : index
    %51 = vector.load %arg2[%c8, %c0_27, %c0_28] : memref<9x8x128xbf16, #tpu.memory_space<vmem>>, vector<1x8x128xbf16>
    %52 = vector.shape_cast %51 : vector<1x8x128xbf16> to vector<8x128xbf16>
    %cst_29 = arith.constant dense<0.000000e+00> : vector<256x128xf32>
    %53 = tpu.matmul %50, %52, %cst_29 {dimension_numbers = #tpu.dot_dimension_numbers<[1], [0], [0], [1], [0, 0, 1, 1], [], []>} : vector<256x8xbf16>, vector<8x128xbf16>, vector<256x128xf32> -> vector<256x128xf32>
    %54 = arith.addf %48, %53 : vector<256x128xf32>
    %c0_30 = arith.constant 0 : index
    %c0_31 = arith.constant 0 : index
    %55 = vector.load %arg3[%c0_30, %c0_31] : memref<1x128xf32, #tpu.memory_space<vmem>>, vector<1x128xf32>
    %56 = vector.broadcast %55 : vector<1x128xf32> to vector<256x128xf32>
    %57 = arith.addf %54, %56 : vector<256x128xf32>
    %cst_32 = arith.constant 0.000000e+00 : f32
    %58 = vector.broadcast %cst_32 : f32 to vector<256x128xf32>
    %59 = arith.maximumf %57, %58 : vector<256x128xf32>
    %60 = arith.truncf %59 : vector<256x128xf32> to vector<256x128xbf16>
    %c0_33 = arith.constant 0 : index
    %c0_34 = arith.constant 0 : index
    %c0_35 = arith.constant 0 : index
    %61 = vector.load %arg4[%c0_33, %c0_34, %c0_35] : memref<1x256x128xbf16, #tpu.memory_space<vmem>>, vector<1x256x128xbf16>
    %62 = vector.shape_cast %61 : vector<1x256x128xbf16> to vector<256x128xbf16>
    %63 = vector.shape_cast %60 : vector<256x128xbf16> to vector<1x256x128xbf16>
    tpu.vector_store %arg4[%c0_33, %c0_34, %c0_35], %63 {strides = array<i32>} : memref<1x256x128xbf16, #tpu.memory_space<vmem>>, vector<1x256x128xbf16>,
    %cst_36 = arith.constant dense<0.000000e+00> : vector<128xf32>
    %64 = vector.multi_reduction <add>, %59, %cst_36 [0] : vector<256x128xf32> to vector<128xf32>
    %65 = vector.shape_cast %64 : vector<128xf32> to vector<1x128xf32>
    %66 = arith.mulf %59, %59 : vector<256x128xf32>
    %cst_37 = arith.constant dense<0.000000e+00> : vector<128xf32>
    %67 = vector.multi_reduction <add>, %66, %cst_37 [0] : vector<256x128xf32> to vector<128xf32>
    %68 = vector.shape_cast %67 : vector<128xf32> to vector<1x128xf32>
    %69 = tpu.concatenate %65, %68 in 0 : vector<1x128xf32>, vector<1x128xf32> -> vector<2x128xf32>
    %c0_38 = arith.constant 0 : index
    %c0_39 = arith.constant 0 : index
    %c0_40 = arith.constant 0 : index
    %70 = vector.load %arg5[%c0_38, %c0_39, %c0_40] : memref<1x2x128xf32, #tpu.memory_space<vmem>>, vector<1x2x128xf32>
    %71 = vector.shape_cast %70 : vector<1x2x128xf32> to vector<2x128xf32>
    %72 = vector.shape_cast %69 : vector<2x128xf32> to vector<1x2x128xf32>
    tpu.vector_store %arg5[%c0_38, %c0_39, %c0_40], %72 {strides = array<i32>} : memref<1x2x128xf32, #tpu.memory_space<vmem>>, vector<1x2x128xf32>,
    return
  }
  func.func @transform_0(%arg0: i32) -> (i32, i32, i32, i32) {
    %c0_i32 = arith.constant 0 : i32
    %c0_i32_0 = arith.constant 0 : i32
    %c0_i32_1 = arith.constant 0 : i32
    %c0_i32_2 = arith.constant 0 : i32
    return %arg0, %c0_i32, %c0_i32_0, %c0_i32_1 : i32, i32, i32, i32
  }
  func.func @transform_1(%arg0: i32) -> (i32, i32, i32) {
    %c0_i32 = arith.constant 0 : i32
    %c0_i32_0 = arith.constant 0 : i32
    %c0_i32_1 = arith.constant 0 : i32
    %c0_i32_2 = arith.constant 0 : i32
    return %c0_i32, %c0_i32_0, %c0_i32_1 : i32, i32, i32
  }
  func.func @transform_2(%arg0: i32) -> (i32, i32) {
    %c0_i32 = arith.constant 0 : i32
    %c0_i32_0 = arith.constant 0 : i32
    %c0_i32_1 = arith.constant 0 : i32
    return %c0_i32, %c0_i32_0 : i32, i32
  }
  func.func @transform_3(%arg0: i32) -> (i32, i32, i32) {
    %c0_i32 = arith.constant 0 : i32
    %c0_i32_0 = arith.constant 0 : i32
    %c0_i32_1 = arith.constant 0 : i32
    return %arg0, %c0_i32, %c0_i32_0 : i32, i32, i32
  }
  func.func @transform_4(%arg0: i32) -> (i32, i32, i32) {
    %c0_i32 = arith.constant 0 : i32
    %c0_i32_0 = arith.constant 0 : i32
    %c0_i32_1 = arith.constant 0 : i32
    return %arg0, %c0_i32, %c0_i32_0 : i32, i32, i32
  }
}

module attributes {stable_mosaic.version = 11 : i64} {
  func.func @_head_kernel(%arg0: i32, %arg1: memref<2x256x128xbf16, #tpu.memory_space<vmem>>, %arg2: memref<1x128xf32, #tpu.memory_space<vmem>>, %arg3: memref<1x128xf32, #tpu.memory_space<vmem>>, %arg4: memref<128x128xf32, #tpu.memory_space<vmem>>, %arg5: memref<1x128xf32, #tpu.memory_space<vmem>>, %arg6: memref<2x128xf32, #tpu.memory_space<vmem>>, %arg7: memref<2x128xf32, #tpu.memory_space<vmem>>) attributes {dimension_semantics = [#tpu.dimension_semantics<arbitrary>], iteration_bounds = array<i64: 1>, scalar_prefetch = 0 : i64, scratch_operands = 1 : i64, tpu.core_type = #tpu.core_type<tc>, window_params = [{transform_indices = @transform_0, window_bounds = array<i64: 2, 256, 128>}, {pipeline_mode = #tpu.pipeline_mode<synchronous>, transform_indices = @transform_1, window_bounds = array<i64: 1, 128>}, {pipeline_mode = #tpu.pipeline_mode<synchronous>, transform_indices = @transform_2, window_bounds = array<i64: 1, 128>}, {pipeline_mode = #tpu.pipeline_mode<synchronous>, transform_indices = @transform_3, window_bounds = array<i64: 128, 128>}, {pipeline_mode = #tpu.pipeline_mode<synchronous>, transform_indices = @transform_4, window_bounds = array<i64: 1, 128>}, {pipeline_mode = #tpu.pipeline_mode<synchronous>, transform_indices = @transform_5, window_bounds = array<i64: 2, 128>}]} {
    %c0_i32 = arith.constant 0 : i32
    %0 = arith.cmpi eq, %arg0, %c0_i32 : i32
    %1 = arith.extui %0 : i1 to i32
    %c0_i32_0 = arith.constant 0 : i32
    %2 = arith.cmpi ne, %1, %c0_i32_0 : i32
    scf.if %2 {
      %cst_15 = arith.constant -3.40282347E+38 : f32
      %28 = vector.broadcast %cst_15 : f32 to vector<2x128xf32>
      %c0_16 = arith.constant 0 : index
      %c0_17 = arith.constant 0 : index
      %29 = vector.load %arg7[%c0_16, %c0_17] : memref<2x128xf32, #tpu.memory_space<vmem>>, vector<2x128xf32>
      tpu.vector_store %arg7[%c0_16, %c0_17], %28 {strides = array<i32>} : memref<2x128xf32, #tpu.memory_space<vmem>>, vector<2x128xf32>,
    } else {
    }
    %c0 = arith.constant 0 : index
    %c0_1 = arith.constant 0 : index
    %c0_2 = arith.constant 0 : index
    %3 = vector.load %arg1[%c0, %c0_1, %c0_2] : memref<2x256x128xbf16, #tpu.memory_space<vmem>>, vector<2x256x128xbf16>
    %4 = arith.extf %3 : vector<2x256x128xbf16> to vector<2x256x128xf32>
    %c0_3 = arith.constant 0 : index
    %c0_4 = arith.constant 0 : index
    %5 = vector.load %arg2[%c0_3, %c0_4] : memref<1x128xf32, #tpu.memory_space<vmem>>, vector<1x128xf32>
    %6 = vector.shape_cast %5 : vector<1x128xf32> to vector<1x1x128xf32>
    %7 = vector.broadcast %6 : vector<1x1x128xf32> to vector<2x256x128xf32>
    %8 = arith.mulf %4, %7 : vector<2x256x128xf32>
    %c0_5 = arith.constant 0 : index
    %c0_6 = arith.constant 0 : index
    %9 = vector.load %arg3[%c0_5, %c0_6] : memref<1x128xf32, #tpu.memory_space<vmem>>, vector<1x128xf32>
    %10 = vector.shape_cast %9 : vector<1x128xf32> to vector<1x1x128xf32>
    %11 = vector.broadcast %10 : vector<1x1x128xf32> to vector<2x256x128xf32>
    %12 = arith.addf %8, %11 : vector<2x256x128xf32>
    %13 = tpu.iota {dimensions = array<i32: 1>} : vector<2x256x128xi32>
    %c256_i32 = arith.constant 256 : i32
    %14 = arith.muli %arg0, %c256_i32 : i32
    %15 = vector.broadcast %14 : i32 to vector<2x256x128xi32>
    %16 = arith.addi %13, %15 : vector<2x256x128xi32>
    %c256_i32_7 = arith.constant 256 : i32
    %17 = vector.broadcast %c256_i32_7 : i32 to vector<2x256x128xi32>
    %18 = arith.cmpi slt, %16, %17 : vector<2x256x128xi32>
    %cst = arith.constant -3.40282347E+38 : f32
    %19 = vector.broadcast %cst : f32 to vector<2x256x128xf32>
    %20 = arith.select %18, %12, %19 : vector<2x256x128xi1>, vector<2x256x128xf32>
    %c0_8 = arith.constant 0 : index
    %c0_9 = arith.constant 0 : index
    %21 = vector.load %arg7[%c0_8, %c0_9] : memref<2x128xf32, #tpu.memory_space<vmem>>, vector<2x128xf32>
    %cst_10 = arith.constant dense<0xFF800000> : vector<2x128xf32>
    %22 = vector.multi_reduction <maximumf>, %20, %cst_10 [1] : vector<2x256x128xf32> to vector<2x128xf32>
    %23 = arith.maximumf %21, %22 : vector<2x128xf32>
    %c0_11 = arith.constant 0 : index
    %c0_12 = arith.constant 0 : index
    %24 = vector.load %arg7[%c0_11, %c0_12] : memref<2x128xf32, #tpu.memory_space<vmem>>, vector<2x128xf32>
    tpu.vector_store %arg7[%c0_11, %c0_12], %23 {strides = array<i32>} : memref<2x128xf32, #tpu.memory_space<vmem>>, vector<2x128xf32>,
    %c0_i32_13 = arith.constant 0 : i32
    %25 = arith.cmpi eq, %arg0, %c0_i32_13 : i32
    %26 = arith.extui %25 : i1 to i32
    %c0_i32_14 = arith.constant 0 : i32
    %27 = arith.cmpi ne, %26, %c0_i32_14 : i32
    scf.if %27 {
      %c0_15 = arith.constant 0 : index
      %c0_16 = arith.constant 0 : index
      %28 = vector.load %arg7[%c0_15, %c0_16] : memref<2x128xf32, #tpu.memory_space<vmem>>, vector<2x128xf32>
      %c0_17 = arith.constant 0 : index
      %c0_18 = arith.constant 0 : index
      %29 = vector.load %arg4[%c0_17, %c0_18] : memref<128x128xf32, #tpu.memory_space<vmem>>, vector<128x128xf32>
      %cst_19 = arith.constant dense<0.000000e+00> : vector<2x128xf32>
      %30 = tpu.matmul %28, %29, %cst_19 {dimension_numbers = #tpu.dot_dimension_numbers<[1], [0], [0], [1], [0, 0, 1, 1], [], []>} : vector<2x128xf32>, vector<128x128xf32>, vector<2x128xf32> -> vector<2x128xf32>
      %c0_20 = arith.constant 0 : index
      %c0_21 = arith.constant 0 : index
      %31 = vector.load %arg5[%c0_20, %c0_21] : memref<1x128xf32, #tpu.memory_space<vmem>>, vector<1x128xf32>
      %32 = vector.broadcast %31 : vector<1x128xf32> to vector<2x128xf32>
      %33 = arith.addf %30, %32 : vector<2x128xf32>
      %c0_22 = arith.constant 0 : index
      %c0_23 = arith.constant 0 : index
      %34 = vector.load %arg6[%c0_22, %c0_23] : memref<2x128xf32, #tpu.memory_space<vmem>>, vector<2x128xf32>
      tpu.vector_store %arg6[%c0_22, %c0_23], %33 {strides = array<i32>} : memref<2x128xf32, #tpu.memory_space<vmem>>, vector<2x128xf32>,
    } else {
    }
    return
  }
  func.func @transform_0(%arg0: i32) -> (i32, i32, i32) {
    %c0_i32 = arith.constant 0 : i32
    %c0_i32_0 = arith.constant 0 : i32
    %c0_i32_1 = arith.constant 0 : i32
    return %c0_i32, %arg0, %c0_i32_0 : i32, i32, i32
  }
  func.func @transform_1(%arg0: i32) -> (i32, i32) {
    %c0_i32 = arith.constant 0 : i32
    %c0_i32_0 = arith.constant 0 : i32
    %c0_i32_1 = arith.constant 0 : i32
    return %c0_i32, %c0_i32_0 : i32, i32
  }
  func.func @transform_2(%arg0: i32) -> (i32, i32) {
    %c0_i32 = arith.constant 0 : i32
    %c0_i32_0 = arith.constant 0 : i32
    %c0_i32_1 = arith.constant 0 : i32
    return %c0_i32, %c0_i32_0 : i32, i32
  }
  func.func @transform_3(%arg0: i32) -> (i32, i32) {
    %c0_i32 = arith.constant 0 : i32
    %c0_i32_0 = arith.constant 0 : i32
    %c0_i32_1 = arith.constant 0 : i32
    return %c0_i32, %c0_i32_0 : i32, i32
  }
  func.func @transform_4(%arg0: i32) -> (i32, i32) {
    %c0_i32 = arith.constant 0 : i32
    %c0_i32_0 = arith.constant 0 : i32
    %c0_i32_1 = arith.constant 0 : i32
    return %c0_i32, %c0_i32_0 : i32, i32
  }
  func.func @transform_5(%arg0: i32) -> (i32, i32) {
    %c0_i32 = arith.constant 0 : i32
    %c0_i32_0 = arith.constant 0 : i32
    %c0_i32_1 = arith.constant 0 : i32
    return %c0_i32, %c0_i32_0 : i32, i32
  }
}

</mosaic_0001>

<llo_original>
// kernel: dcnet_forward.5
$region0: #{dcnet_forward.5}
  #allocation0 [shape = 'u32[]', space=smem, size = 0x4, offset = 0x4, fixed_abs, tag = 'smem constant byte address 0x4 - core index']
  #allocation1 [shape = 'u32[144,128]{1,0:T(1,128)}', space=vmem, size = 0x12000, scoped, tag = 'internal scratch']
  #allocation2 [shape = 'f32[2,128]{1,0:T(2,128)}', space=vmem, size = 0x400, scoped, tag = 'scratch operand']
  %s0 = inlined_call_operand.vmem [shape: bf16[2,256,128], index: 0, kind: input, shape index: {}]
  %s1 = inlined_call_operand.vmem [shape: f32[1,128], index: 1, kind: input, shape index: {}]
  %s2 = inlined_call_operand.vmem [shape: f32[1,128], index: 2, kind: input, shape index: {}]
  %s3 = inlined_call_operand.vmem [shape: f32[128,128], index: 3, kind: input, shape index: {}]
  %s4 = inlined_call_operand.vmem [shape: f32[1,128], index: 4, kind: input, shape index: {}]
  %s5 = inlined_call_operand.hbm [shape: f32[2,128], index: 5, kind: output, shape index: {}]
  %s6 = sld [smem:[#allocation0]]
  $region38: #{dcnet_forward.5} parent=0
    _
  %s8 = ssub.s32 1, %s6
  %s9 = scalar_select 0, %s8, %s6
  $region1: #{dcnet_forward.5} parent=0
    #allocation3 [shape = 'u8[1024]{0}', space=vmem, size = 0x400, scoped, tag = 'output window, operand 0, single buffered']
    #allocation4 [shape = 's32[1]{0}', space=sflag, size = 0x4, scoped, tag = 'scoped memory for dcnet_forward.5']
    %10 = vsyncpa [#allocation4], 0
    // Predicated region
    $region2: #{dcnet_forward.5} parent=1 // pred_check
      _
    $region3: #{dcnet_forward.5} parent=1 // pred_check_branch
      %12 = sbr.rel (0) target = $region5
    $region4: #{dcnet_forward.5} parent=1 // pred_region
      _
    $region5: #{dcnet_forward.5} parent=1 // pred_fallthru
      _
    // Predicated region
    $region6: #{dcnet_forward.5} parent=1 // pred_check
      _
    $region7: #{dcnet_forward.5} parent=1 // pred_check_branch
      %14 = sbr.rel (0) target = $region9
    $region8: #{dcnet_forward.5} parent=1 // pred_region
      _
    $region9: #{dcnet_forward.5} parent=1 // pred_fallthru
      _
    // Predicated region
    $region10: #{dcnet_forward.5} parent=1 // pred_check
      _
    $region11: #{dcnet_forward.5} parent=1 // pred_check_branch
      %16 = sbr.rel (0) target = $region13
    $region12: #{dcnet_forward.5} parent=1 // pred_region
      _
    $region13: #{dcnet_forward.5} parent=1 // pred_fallthru
      _
    // Predicated region
    $region14: #{dcnet_forward.5} parent=1 // pred_check
      _
    $region15: #{dcnet_forward.5} parent=1 // pred_check_branch
      %18 = sbr.rel (0) target = $region17
    $region16: #{dcnet_forward.5} parent=1 // pred_region
      _
    $region17: #{dcnet_forward.5} parent=1 // pred_fallthru
      _
    // Predicated region
    $region18: #{dcnet_forward.5} parent=1 // pred_check
      _
    $region19: #{dcnet_forward.5} parent=1 // pred_check_branch
      %20 = sbr.rel (0) target = $region21
    $region20: #{dcnet_forward.5} parent=1 // pred_region
      _
    $region21: #{dcnet_forward.5} parent=1 // pred_fallthru
      _
    %p21 = scmp.eq.s32.totalorder 0, 0
    // Predicated region
    $region22: #{dcnet_forward.5} parent=1 // pred_check
      %p22 = pneg %p21
    $region23: #{dcnet_forward.5} parent=1 // pred_check_branch
      %24 = sbr.rel (%p22) target = $region25
    $region24: #{dcnet_forward.5} parent=1 // pred_region
      %25 = vst [vmem:[#allocation2] sm:$0x3] -3.4028235e+38
    $region25: #{dcnet_forward.5} parent=1 // pred_fallthru
      _
    %v26 = vld [vmem:[%s0] sm:$0xf]
    %v27 = vld [vmem:[%s0 + $0x4] sm:$0xf]
    %v28 = vld [vmem:[%s0 + $0x8] sm:$0xf]
    %v29 = vld [vmem:[%s0 + $0xc] sm:$0xf]
    %v30 = vld [vmem:[%s0 + $0x10] sm:$0xf]
    %v31 = vld [vmem:[%s0 + $0x14] sm:$0xf]
    %v32 = vld [vmem:[%s0 + $0x18] sm:$0xf]
    %v33 = vld [vmem:[%s0 + $0x1c] sm:$0xf]
    %v34 = vld [vmem:[%s0 + $0x20] sm:$0xf]
    %v35 = vld [vmem:[%s0 + $0x24] sm:$0xf]
    %v36 = vld [vmem:[%s0 + $0x28] sm:$0xf]
    %v37 = vld [vmem:[%s0 + $0x2c] sm:$0xf]
    %v38 = vld [vmem:[%s0 + $0x30] sm:$0xf]
    %v39 = vld [vmem:[%s0 + $0x34] sm:$0xf]
    %v40 = vld [vmem:[%s0 + $0x38] sm:$0xf]
    %v41 = vld [vmem:[%s0 + $0x3c] sm:$0xf]
    %v42 = vld [vmem:[%s0 + $0x40] sm:$0xf]
    %v43 = vld [vmem:[%s0 + $0x44] sm:$0xf]
    %v44 = vld [vmem:[%s0 + $0x48] sm:$0xf]
    %v45 = vld [vmem:[%s0 + $0x4c] sm:$0xf]
    %v46 = vld [vmem:[%s0 + $0x50] sm:$0xf]
    %v47 = vld [vmem:[%s0 + $0x54] sm:$0xf]
    %v48 = vld [vmem:[%s0 + $0x58] sm:$0xf]
    %v49 = vld [vmem:[%s0 + $0x5c] sm:$0xf]
    %v50 = vld [vmem:[%s0 + $0x60] sm:$0xf]
    %v51 = vld [vmem:[%s0 + $0x64] sm:$0xf]
    %v52 = vld [vmem:[%s0 + $0x68] sm:$0xf]
    %v53 = vld [vmem:[%s0 + $0x6c] sm:$0xf]
    %v54 = vld [vmem:[%s0 + $0x70] sm:$0xf]
    %v55 = vld [vmem:[%s0 + $0x74] sm:$0xf]
    %v56 = vld [vmem:[%s0 + $0x78] sm:$0xf]
    %v57 = vld [vmem:[%s0 + $0x7c] sm:$0xf]
    %v58 = vld [vmem:[%s0 + $0x80] sm:$0xf]
    %v59 = vld [vmem:[%s0 + $0x84] sm:$0xf]
    %v60 = vld [vmem:[%s0 + $0x88] sm:$0xf]
    %v61 = vld [vmem:[%s0 + $0x8c] sm:$0xf]
    %v62 = vld [vmem:[%s0 + $0x90] sm:$0xf]
    %v63 = vld [vmem:[%s0 + $0x94] sm:$0xf]
    %v64 = vld [vmem:[%s0 + $0x98] sm:$0xf]
    %v65 = vld [vmem:[%s0 + $0x9c] sm:$0xf]
    %v66 = vld [vmem:[%s0 + $0xa0] sm:$0xf]
    %v67 = vld [vmem:[%s0 + $0xa4] sm:$0xf]
    %v68 = vld [vmem:[%s0 + $0xa8] sm:$0xf]
    %v69 = vld [vmem:[%s0 + $0xac] sm:$0xf]
    %v70 = vld [vmem:[%s0 + $0xb0] sm:$0xf]
    %v71 = vld [vmem:[%s0 + $0xb4] sm:$0xf]
    %v72 = vld [vmem:[%s0 + $0xb8] sm:$0xf]
    %v73 = vld [vmem:[%s0 + $0xbc] sm:$0xf]
    %v74 = vld [vmem:[%s0 + $0xc0] sm:$0xf]
    %v75 = vld [vmem:[%s0 + $0xc4] sm:$0xf]
    %v76 = vld [vmem:[%s0 + $0xc8] sm:$0xf]
    %v77 = vld [vmem:[%s0 + $0xcc] sm:$0xf]
    %v78 = vld [vmem:[%s0 + $0xd0] sm:$0xf]
    %v79 = vld [vmem:[%s0 + $0xd4] sm:$0xf]
    %v80 = vld [vmem:[%s0 + $0xd8] sm:$0xf]
    %v81 = vld [vmem:[%s0 + $0xdc] sm:$0xf]
    %v82 = vld [vmem:[%s0 + $0xe0] sm:$0xf]
    %v83 = vld [vmem:[%s0 + $0xe4] sm:$0xf]
    %v84 = vld [vmem:[%s0 + $0xe8] sm:$0xf]
    %v85 = vld [vmem:[%s0 + $0xec] sm:$0xf]
    %v86 = vld [vmem:[%s0 + $0xf0] sm:$0xf]
    %v87 = vld [vmem:[%s0 + $0xf4] sm:$0xf]
    %v88 = vld [vmem:[%s0 + $0xf8] sm:$0xf]
    %v89 = vld [vmem:[%s0 + $0xfc] sm:$0xf]
    %v90 = vunpack.c.l.bf16 %v26
    %v91 = vunpack.c.l.bf16 %v27
    %v92 = vunpack.c.l.bf16 %v28
    %v93 = vunpack.c.l.bf16 %v29
    %v94 = vunpack.c.l.bf16 %v30
    %v95 = vunpack.c.l.bf16 %v31
    %v96 = vunpack.c.l.bf16 %v32
    %v97 = vunpack.c.l.bf16 %v33
    %v98 = vunpack.c.l.bf16 %v34
    %v99 = vunpack.c.l.bf16 %v35
    %v100 = vunpack.c.l.bf16 %v36
    %v101 = vunpack.c.l.bf16 %v37
    %v102 = vunpack.c.l.bf16 %v38
    %v103 = vunpack.c.l.bf16 %v39
    %v104 = vunpack.c.l.bf16 %v40
    %v105 = vunpack.c.l.bf16 %v41
    %v106 = vunpack.c.l.bf16 %v42
    %v107 = vunpack.c.l.bf16 %v43
    %v108 = vunpack.c.l.bf16 %v44
    %v109 = vunpack.c.l.bf16 %v45
    %v110 = vunpack.c.l.bf16 %v46
    %v111 = vunpack.c.l.bf16 %v47
    %v112 = vunpack.c.l.bf16 %v48
    %v113 = vunpack.c.l.bf16 %v49
    %v114 = vunpack.c.l.bf16 %v50
    %v115 = vunpack.c.l.bf16 %v51
    %v116 = vunpack.c.l.bf16 %v52
    %v117 = vunpack.c.l.bf16 %v53
    %v118 = vunpack.c.l.bf16 %v54
    %v119 = vunpack.c.l.bf16 %v55
    %v120 = vunpack.c.l.bf16 %v56
    %v121 = vunpack.c.l.bf16 %v57
    %v122 = vunpack.c.l.bf16 %v58
    %v123 = vunpack.c.l.bf16 %v59
    %v124 = vunpack.c.l.bf16 %v60
    %v125 = vunpack.c.l.bf16 %v61
    %v126 = vunpack.c.l.bf16 %v62
    %v127 = vunpack.c.l.bf16 %v63
    %v128 = vunpack.c.l.bf16 %v64
    %v129 = vunpack.c.l.bf16 %v65
    %v130 = vunpack.c.l.bf16 %v66
    %v131 = vunpack.c.l.bf16 %v67
    %v132 = vunpack.c.l.bf16 %v68
    %v133 = vunpack.c.l.bf16 %v69
    %v134 = vunpack.c.l.bf16 %v70
    %v135 = vunpack.c.l.bf16 %v71
    %v136 = vunpack.c.l.bf16 %v72
    %v137 = vunpack.c.l.bf16 %v73
    %v138 = vunpack.c.l.bf16 %v74
    %v139 = vunpack.c.l.bf16 %v75
    %v140 = vunpack.c.l.bf16 %v76
    %v141 = vunpack.c.l.bf16 %v77
    %v142 = vunpack.c.l.bf16 %v78
    %v143 = vunpack.c.l.bf16 %v79
    %v144 = vunpack.c.l.bf16 %v80
    %v145 = vunpack.c.l.bf16 %v81
    %v146 = vunpack.c.l.bf16 %v82
    %v147 = vunpack.c.l.bf16 %v83
    %v148 = vunpack.c.l.bf16 %v84
    %v149 = vunpack.c.l.bf16 %v85
    %v150 = vunpack.c.l.bf16 %v86
    %v151 = vunpack.c.l.bf16 %v87
    %v152 = vunpack.c.l.bf16 %v88
    %v153 = vunpack.c.l.bf16 %v89
    %v154 = vld [vmem:[%s1] sm:$0x1]
    %v156 = vlaneseq
    %v157 = vshrl.u32 %v156, 7
    %v158 = vsub.s32 0, %v157
    %v159 = vrot.slane %v154, %v158
    %v161 = vmul.f32 %v90, %v159
    %v162 = vmul.f32 %v91, %v159
    %v163 = vmul.f32 %v92, %v159
    %v164 = vmul.f32 %v93, %v159
    %v165 = vmul.f32 %v94, %v159
    %v166 = vmul.f32 %v95, %v159
    %v167 = vmul.f32 %v96, %v159
    %v168 = vmul.f32 %v97, %v159
    %v169 = vmul.f32 %v98, %v159
    %v170 = vmul.f32 %v99, %v159
    %v171 = vmul.f32 %v100, %v159
    %v172 = vmul.f32 %v101, %v159
    %v173 = vmul.f32 %v102, %v159
    %v174 = vmul.f32 %v103, %v159
    %v175 = vmul.f32 %v104, %v159
    %v176 = vmul.f32 %v105, %v159
    %v177 = vmul.f32 %v106, %v159
    %v178 = vmul.f32 %v107, %v159
    %v179 = vmul.f32 %v108, %v159
    %v180 = vmul.f32 %v109, %v159
    %v181 = vmul.f32 %v110, %v159
    %v182 = vmul.f32 %v111, %v159
    %v183 = vmul.f32 %v112, %v159
    %v184 = vmul.f32 %v113, %v159
    %v185 = vmul.f32 %v114, %v159
    %v186 = vmul.f32 %v115, %v159
    %v187 = vmul.f32 %v116, %v159
    %v188 = vmul.f32 %v117, %v159
    %v189 = vmul.f32 %v118, %v159
    %v190 = vmul.f32 %v119, %v159
    %v191 = vmul.f32 %v120, %v159
    %v192 = vmul.f32 %v121, %v159
    %v193 = vmul.f32 %v122, %v159
    %v194 = vmul.f32 %v123, %v159
    %v195 = vmul.f32 %v124, %v159
    %v196 = vmul.f32 %v125, %v159
    %v197 = vmul.f32 %v126, %v159
    %v198 = vmul.f32 %v127, %v159
    %v199 = vmul.f32 %v128, %v159
    %v200 = vmul.f32 %v129, %v159
    %v201 = vmul.f32 %v130, %v159
    %v202 = vmul.f32 %v131, %v159
    %v203 = vmul.f32 %v132, %v159
    %v204 = vmul.f32 %v133, %v159
    %v205 = vmul.f32 %v134, %v159
    %v206 = vmul.f32 %v135, %v159
    %v207 = vmul.f32 %v136, %v159
    %v208 = vmul.f32 %v137, %v159
    %v209 = vmul.f32 %v138, %v159
    %v210 = vmul.f32 %v139, %v159
    %v211 = vmul.f32 %v140, %v159
    %v212 = vmul.f32 %v141, %v159
    %v213 = vmul.f32 %v142, %v159
    %v214 = vmul.f32 %v143, %v159
    %v215 = vmul.f32 %v144, %v159
    %v216 = vmul.f32 %v145, %v159
    %v217 = vmul.f32 %v146, %v159
    %v218 = vmul.f32 %v147, %v159
    %v219 = vmul.f32 %v148, %v159
    %v220 = vmul.f32 %v149, %v159
    %v221 = vmul.f32 %v150, %v159
    %v222 = vmul.f32 %v151, %v159
    %v223 = vmul.f32 %v152, %v159
    %v224 = vmul.f32 %v153, %v159
    %v225 = vld [vmem:[%s2] sm:$0x1]
    %v227 = vlaneseq
    %v228 = vshrl.u32 %v227, 7
    %v229 = vsub.s32 0, %v228
    %v230 = vrot.slane %v225, %v229
    %v232 = vadd.f32 %v161, %v230
    %v233 = vadd.f32 %v162, %v230
    %v234 = vadd.f32 %v163, %v230
    %v235 = vadd.f32 %v164, %v230
    %v236 = vadd.f32 %v165, %v230
    %v237 = vadd.f32 %v166, %v230
    %v238 = vadd.f32 %v167, %v230
    %v239 = vadd.f32 %v168, %v230
    %v240 = vadd.f32 %v169, %v230
    %v241 = vadd.f32 %v170, %v230
    %v242 = vadd.f32 %v171, %v230
    %v243 = vadd.f32 %v172, %v230
    %v244 = vadd.f32 %v173, %v230
    %v245 = vadd.f32 %v174, %v230
    %v246 = vadd.f32 %v175, %v230
    %v247 = vadd.f32 %v176, %v230
    %v248 = vadd.f32 %v177, %v230
    %v249 = vadd.f32 %v178, %v230
    %v250 = vadd.f32 %v179, %v230
    %v251 = vadd.f32 %v180, %v230
    %v252 = vadd.f32 %v181, %v230
    %v253 = vadd.f32 %v182, %v230
    %v254 = vadd.f32 %v183, %v230
    %v255 = vadd.f32 %v184, %v230
    %v256 = vadd.f32 %v185, %v230
    %v257 = vadd.f32 %v186, %v230
    %v258 = vadd.f32 %v187, %v230
    %v259 = vadd.f32 %v188, %v230
    %v260 = vadd.f32 %v189, %v230
    %v261 = vadd.f32 %v190, %v230
    %v262 = vadd.f32 %v191, %v230
    %v263 = vadd.f32 %v192, %v230
    %v264 = vadd.f32 %v193, %v230
    %v265 = vadd.f32 %v194, %v230
    %v266 = vadd.f32 %v195, %v230
    %v267 = vadd.f32 %v196, %v230
    %v268 = vadd.f32 %v197, %v230
    %v269 = vadd.f32 %v198, %v230
    %v270 = vadd.f32 %v199, %v230
    %v271 = vadd.f32 %v200, %v230
    %v272 = vadd.f32 %v201, %v230
    %v273 = vadd.f32 %v202, %v230
    %v274 = vadd.f32 %v203, %v230
    %v275 = vadd.f32 %v204, %v230
    %v276 = vadd.f32 %v205, %v230
    %v277 = vadd.f32 %v206, %v230
    %v278 = vadd.f32 %v207, %v230
    %v279 = vadd.f32 %v208, %v230
    %v280 = vadd.f32 %v209, %v230
    %v281 = vadd.f32 %v210, %v230
    %v282 = vadd.f32 %v211, %v230
    %v283 = vadd.f32 %v212, %v230
    %v284 = vadd.f32 %v213, %v230
    %v285 = vadd.f32 %v214, %v230
    %v286 = vadd.f32 %v215, %v230
    %v287 = vadd.f32 %v216, %v230
    %v288 = vadd.f32 %v217, %v230
    %v289 = vadd.f32 %v218, %v230
    %v290 = vadd.f32 %v219, %v230
    %v291 = vadd.f32 %v220, %v230
    %v292 = vadd.f32 %v221, %v230
    %v293 = vadd.f32 %v222, %v230
    %v294 = vadd.f32 %v223, %v230
    %v295 = vadd.f32 %v224, %v230
    %v296 = vlaneseq
    %v297 = vshrl.u32 %v296, 7
    %v298 = vadd.s32 %v297, 8
    %v299 = vadd.s32 %v297, 16
    %v300 = vadd.s32 %v297, 24
    %v301 = vadd.s32 %v297, 32
    %v302 = vadd.s32 %v297, 40
    %v303 = vadd.s32 %v297, 48
    %v304 = vadd.s32 %v297, 56
    %v305 = vadd.s32 %v297, 64
    %v306 = vadd.s32 %v297, 72
    %v307 = vadd.s32 %v297, 80
    %v308 = vadd.s32 %v297, 88
    %v309 = vadd.s32 %v297, 96
    %v310 = vadd.s32 %v297, 104
    %v311 = vadd.s32 %v297, 112
    %v312 = vadd.s32 %v297, 120
    %v313 = vadd.s32 %v297, 128
    %v314 = vadd.s32 %v297, 136
    %v315 = vadd.s32 %v297, 144
    %v316 = vadd.s32 %v297, 152
    %v317 = vadd.s32 %v297, 160
    %v318 = vadd.s32 %v297, 168
    %v319 = vadd.s32 %v297, 176
    %v320 = vadd.s32 %v297, 184
    %v321 = vadd.s32 %v297, 192
    %v322 = vadd.s32 %v297, 200
    %v323 = vadd.s32 %v297, 208
    %v324 = vadd.s32 %v297, 216
    %v325 = vadd.s32 %v297, 224
    %v326 = vadd.s32 %v297, 232
    %v327 = vadd.s32 %v297, 240
    %v328 = vadd.s32 %v297, 248
    %s329 = smul.u32 0, 256
    %v330 = vstv %s329
    %v331 = vadd.s32 %v297, %v330
    %v332 = vadd.s32 %v298, %v330
    %v333 = vadd.s32 %v299, %v330
    %v334 = vadd.s32 %v300, %v330
    %v335 = vadd.s32 %v301, %v330
    %v336 = vadd.s32 %v302, %v330
    %v337 = vadd.s32 %v303, %v330
    %v338 = vadd.s32 %v304, %v330
    %v339 = vadd.s32 %v305, %v330
    %v340 = vadd.s32 %v306, %v330
    %v341 = vadd.s32 %v307, %v330
    %v342 = vadd.s32 %v308, %v330
    %v343 = vadd.s32 %v309, %v330
    %v344 = vadd.s32 %v310, %v330
    %v345 = vadd.s32 %v311, %v330
    %v346 = vadd.s32 %v312, %v330
    %v347 = vadd.s32 %v313, %v330
    %v348 = vadd.s32 %v314, %v330
    %v349 = vadd.s32 %v315, %v330
    %v350 = vadd.s32 %v316, %v330
    %v351 = vadd.s32 %v317, %v330
    %v352 = vadd.s32 %v318, %v330
    %v353 = vadd.s32 %v319, %v330
    %v354 = vadd.s32 %v320, %v330
    %v355 = vadd.s32 %v321, %v330
    %v356 = vadd.s32 %v322, %v330
    %v357 = vadd.s32 %v323, %v330
    %v358 = vadd.s32 %v324, %v330
    %v359 = vadd.s32 %v325, %v330
    %v360 = vadd.s32 %v326, %v330
    %v361 = vadd.s32 %v327, %v330
    %v362 = vadd.s32 %v328, %v330
    %vm363 = vcmp.lt.s32.totalorder %v331, 256
    %vm364 = vcmp.lt.s32.totalorder %v332, 256
    %vm365 = vcmp.lt.s32.totalorder %v333, 256
    %vm366 = vcmp.lt.s32.totalorder %v334, 256
    %vm367 = vcmp.lt.s32.totalorder %v335, 256
    %vm368 = vcmp.lt.s32.totalorder %v336, 256
    %vm369 = vcmp.lt.s32.totalorder %v337, 256
    %vm370 = vcmp.lt.s32.totalorder %v338, 256
    %vm371 = vcmp.lt.s32.totalorder %v339, 256
    %vm372 = vcmp.lt.s32.totalorder %v340, 256
    %vm373 = vcmp.lt.s32.totalorder %v341, 256
    %vm374 = vcmp.lt.s32.totalorder %v342, 256
    %vm375 = vcmp.lt.s32.totalorder %v343, 256
    %vm376 = vcmp.lt.s32.totalorder %v344, 256
    %vm377 = vcmp.lt.s32.totalorder %v345, 256
    %vm378 = vcmp.lt.s32.totalorder %v346, 256
    %vm379 = vcmp.lt.s32.totalorder %v347, 256
    %vm380 = vcmp.lt.s32.totalorder %v348, 256
    %vm381 = vcmp.lt.s32.totalorder %v349, 256
    %vm382 = vcmp.lt.s32.totalorder %v350, 256
    %vm383 = vcmp.lt.s32.totalorder %v351, 256
    %vm384 = vcmp.lt.s32.totalorder %v352, 256
    %vm385 = vcmp.lt.s32.totalorder %v353, 256
    %vm386 = vcmp.lt.s32.totalorder %v354, 256
    %vm387 = vcmp.lt.s32.totalorder %v355, 256
    %vm388 = vcmp.lt.s32.totalorder %v356, 256
    %vm389 = vcmp.lt.s32.totalorder %v357, 256
    %vm390 = vcmp.lt.s32.totalorder %v358, 256
    %vm391 = vcmp.lt.s32.totalorder %v359, 256
    %vm392 = vcmp.lt.s32.totalorder %v360, 256
    %vm393 = vcmp.lt.s32.totalorder %v361, 256
    %vm394 = vcmp.lt.s32.totalorder %v362, 256
    %v395 = vsel %vm363, %v232, -3.4028235e+38
    %v396 = vsel %vm364, %v233, -3.4028235e+38
    %v397 = vsel %vm365, %v234, -3.4028235e+38
    %v398 = vsel %vm366, %v235, -3.4028235e+38
    %v399 = vsel %vm367, %v236, -3.4028235e+38
    %v400 = vsel %vm368, %v237, -3.4028235e+38
    %v401 = vsel %vm369, %v238, -3.4028235e+38
    %v402 = vsel %vm370, %v239, -3.4028235e+38
    %v403 = vsel %vm371, %v240, -3.4028235e+38
    %v404 = vsel %vm372, %v241, -3.4028235e+38
    %v405 = vsel %vm373, %v242, -3.4028235e+38
    %v406 = vsel %vm374, %v243, -3.4028235e+38
    %v407 = vsel %vm375, %v244, -3.4028235e+38
    %v408 = vsel %vm376, %v245, -3.4028235e+38
    %v409 = vsel %vm377, %v246, -3.4028235e+38
    %v410 = vsel %vm378, %v247, -3.4028235e+38
    %v411 = vsel %vm379, %v248, -3.4028235e+38
    %v412 = vsel %vm380, %v249, -3.4028235e+38
    %v413 = vsel %vm381, %v250, -3.4028235e+38
    %v414 = vsel %vm382, %v251, -3.4028235e+38
    %v415 = vsel %vm383, %v252, -3.4028235e+38
    %v416 = vsel %vm384, %v253, -3.4028235e+38
    %v417 = vsel %vm385, %v254, -3.4028235e+38
    %v418 = vsel %vm386, %v255, -3.4028235e+38
    %v419 = vsel %vm387, %v256, -3.4028235e+38
    %v420 = vsel %vm388, %v257, -3.4028235e+38
    %v421 = vsel %vm389, %v258, -3.4028235e+38
    %v422 = vsel %vm390, %v259, -3.4028235e+38
    %v423 = vsel %vm391, %v260, -3.4028235e+38
    %v424 = vsel %vm392, %v261, -3.4028235e+38
    %v425 = vsel %vm393, %v262, -3.4028235e+38
    %v426 = vsel %vm394, %v263, -3.4028235e+38
    %v427 = vsel %vm363, %v264, -3.4028235e+38
    %v428 = vsel %vm364, %v265, -3.4028235e+38
    %v429 = vsel %vm365, %v266, -3.4028235e+38
    %v430 = vsel %vm366, %v267, -3.4028235e+38
    %v431 = vsel %vm367, %v268, -3.4028235e+38
    %v432 = vsel %vm368, %v269, -3.4028235e+38
    %v433 = vsel %vm369, %v270, -3.4028235e+38
    %v434 = vsel %vm370, %v271, -3.4028235e+38
    %v435 = vsel %vm371, %v272, -3.4028235e+38
    %v436 = vsel %vm372, %v273, -3.4028235e+38
    %v437 = vsel %vm373, %v274, -3.4028235e+38
    %v438 = vsel %vm374, %v275, -3.4028235e+38
    %v439 = vsel %vm375, %v276, -3.4028235e+38
    %v440 = vsel %vm376, %v277, -3.4028235e+38
    %v441 = vsel %vm377, %v278, -3.4028235e+38
    %v442 = vsel %vm378, %v279, -3.4028235e+38
    %v443 = vsel %vm379, %v280, -3.4028235e+38
    %v444 = vsel %vm380, %v281, -3.4028235e+38
    %v445 = vsel %vm381, %v282, -3.4028235e+38
    %v446 = vsel %vm382, %v283, -3.4028235e+38
    %v447 = vsel %vm383, %v284, -3.4028235e+38
    %v448 = vsel %vm384, %v285, -3.4028235e+38
    %v449 = vsel %vm385, %v286, -3.4028235e+38
    %v450 = vsel %vm386, %v287, -3.4028235e+38
    %v451 = vsel %vm387, %v288, -3.4028235e+38
    %v452 = vsel %vm388, %v289, -3.4028235e+38
    %v453 = vsel %vm389, %v290, -3.4028235e+38
    %v454 = vsel %vm390, %v291, -3.4028235e+38
    %v455 = vsel %vm391, %v292, -3.4028235e+38
    %v456 = vsel %vm392, %v293, -3.4028235e+38
    %v457 = vsel %vm393, %v294, -3.4028235e+38
    %v458 = vsel %vm394, %v295, -3.4028235e+38
    %v459 = vld [vmem:[#allocation2] sm:$0x3]
    %v460 = vmax.f32 %v395, %v397
    %v461 = vmax.f32 %v396, %v398
    %v462 = vmax.f32 %v460, %v399
    %v463 = vmax.f32 %v461, %v400
    %v464 = vmax.f32 %v462, %v401
    %v465 = vmax.f32 %v463, %v402
    %v466 = vmax.f32 %v464, %v403
    %v467 = vmax.f32 %v465, %v404
    %v468 = vmax.f32 %v466, %v405
    %v469 = vmax.f32 %v467, %v406
    %v470 = vmax.f32 %v468, %v407
    %v471 = vmax.f32 %v469, %v408
    %v472 = vmax.f32 %v470, %v409
    %v473 = vmax.f32 %v471, %v410
    %v474 = vmax.f32 %v472, %v411
    %v475 = vmax.f32 %v473, %v412
    %v476 = vmax.f32 %v474, %v413
    %v477 = vmax.f32 %v475, %v414
    %v478 = vmax.f32 %v476, %v415
    %v479 = vmax.f32 %v477, %v416
    %v480 = vmax.f32 %v478, %v417
    %v481 = vmax.f32 %v479, %v418
    %v482 = vmax.f32 %v480, %v419
    %v483 = vmax.f32 %v481, %v420
    %v484 = vmax.f32 %v482, %v421
    %v485 = vmax.f32 %v483, %v422
    %v486 = vmax.f32 %v484, %v423
    %v487 = vmax.f32 %v485, %v424
    %v488 = vmax.f32 %v486, %v425
    %v489 = vmax.f32 %v487, %v426
    %v490 = vmax.f32 %v488, %v489
    %v491 = vrot.slane %v490, 4
    %v492 = vmax.f32 %v490, %v491
    %v493 = vrot.slane %v492, 2
    %v494 = vmax.f32 %v492, %v493
    %v495 = vrot.slane %v494, 1
    %v496 = vmax.f32 %v494, %v495
    %v497 = vmax.f32 %v427, %v429
    %v498 = vmax.f32 %v428, %v430
    %v499 = vmax.f32 %v497, %v431
    %v500 = vmax.f32 %v498, %v432
    %v501 = vmax.f32 %v499, %v433
    %v502 = vmax.f32 %v500, %v434
    %v503 = vmax.f32 %v501, %v435
    %v504 = vmax.f32 %v502, %v436
    %v505 = vmax.f32 %v503, %v437
    %v506 = vmax.f32 %v504, %v438
    %v507 = vmax.f32 %v505, %v439
    %v508 = vmax.f32 %v506, %v440
    %v509 = vmax.f32 %v507, %v441
    %v510 = vmax.f32 %v508, %v442
    %v511 = vmax.f32 %v509, %v443
    %v512 = vmax.f32 %v510, %v444
    %v513 = vmax.f32 %v511, %v445
    %v514 = vmax.f32 %v512, %v446
    %v515 = vmax.f32 %v513, %v447
    %v516 = vmax.f32 %v514, %v448
    %v517 = vmax.f32 %v515, %v449
    %v518 = vmax.f32 %v516, %v450
    %v519 = vmax.f32 %v517, %v451
    %v520 = vmax.f32 %v518, %v452
    %v521 = vmax.f32 %v519, %v453
    %v522 = vmax.f32 %v520, %v454
    %v523 = vmax.f32 %v521, %v455
    %v524 = vmax.f32 %v522, %v456
    %v525 = vmax.f32 %v523, %v457
    %v526 = vmax.f32 %v524, %v458
    %v527 = vmax.f32 %v525, %v526
    %v528 = vrot.slane %v527, 4
    %v529 = vmax.f32 %v527, %v528
    %v530 = vrot.slane %v529, 2
    %v531 = vmax.f32 %v529, %v530
    %v532 = vrot.slane %v531, 1
    %v533 = vmax.f32 %v531, %v532
    %vm536 = vcmask 1041409
    %v537 = vsel %vm536, %v533, %v496
    %v539 = vmax.f32 %v459, %v537
    %540 = vst [vmem:[#allocation2] sm:$0x3] %v539
    // Predicated region
    $region26: #{dcnet_forward.5} parent=1 // pred_check
      %p541 = pneg %p21
    $region27: #{dcnet_forward.5} parent=1 // pred_check_branch
      %543 = sbr.rel (%p541) target = $region29
    $region28: #{dcnet_forward.5} parent=1 // pred_region
      %v544 = vld [vmem:[#allocation2] sm:$0x3]
      %v545 = vld [vmem:[%s3] sm:$0xff]
      %v546 = vld [vmem:[%s3 + $0x8] sm:$0xff]
      %v547 = vld [vmem:[%s3 + $0x10] sm:$0xff]
      %v548 = vld [vmem:[%s3 + $0x18] sm:$0xff]
      %v549 = vld [vmem:[%s3 + $0x20] sm:$0xff]
      %v550 = vld [vmem:[%s3 + $0x28] sm:$0xff]
      %v551 = vld [vmem:[%s3 + $0x30] sm:$0xff]
      %v552 = vld [vmem:[%s3 + $0x38] sm:$0xff]
      %v553 = vld [vmem:[%s3 + $0x40] sm:$0xff]
      %v554 = vld [vmem:[%s3 + $0x48] sm:$0xff]
      %v555 = vld [vmem:[%s3 + $0x50] sm:$0xff]
      %v556 = vld [vmem:[%s3 + $0x58] sm:$0xff]
      %v557 = vld [vmem:[%s3 + $0x60] sm:$0xff]
      %v558 = vld [vmem:[%s3 + $0x68] sm:$0xff]
      %v559 = vld [vmem:[%s3 + $0x70] sm:$0xff]
      %v560 = vld [vmem:[%s3 + $0x78] sm:$0xff]
      %v561 = vld [vmem:[%s4] sm:$0x1]
      %v563 = vlaneseq
      %v564 = vshrl.u32 %v563, 7
      %v565 = vsub.s32 0, %v564
      %v566 = vrot.slane %v561, %v565
      %568 = vmatprep.subr.mxu0 0.0
      %569 = vmatpush1.msra.mxu0 %v560
      %570 = vmatprep.subr.mxu0 0.0
      %571 = vmatpush1.msra.mxu0 %v559
      %572 = vmatprep.subr.mxu0 0.0
      %573 = vmatpush1.msra.mxu0 %v558
      %574 = vmatprep.subr.mxu0 0.0
      %575 = vmatpush1.msra.mxu0 %v557
      %576 = vmatprep.subr.mxu0 0.0
      %577 = vmatpush1.msra.mxu0 %v556
      %578 = vmatprep.subr.mxu0 0.0
      %579 = vmatpush1.msra.mxu0 %v555
      %580 = vmatprep.subr.mxu0 0.0
      %581 = vmatpush1.msra.mxu0 %v554
      %582 = vmatprep.subr.mxu0 0.0
      %583 = vmatpush1.msra.mxu0 %v553
      %584 = vmatprep.subr.mxu0 0.0
      %585 = vmatpush1.msra.mxu0 %v552
      %586 = vmatprep.subr.mxu0 0.0
      %587 = vmatpush1.msra.mxu0 %v551
      %588 = vmatprep.subr.mxu0 0.0
      %589 = vmatpush1.msra.mxu0 %v550
      %590 = vmatprep.subr.mxu0 0.0
      %591 = vmatpush1.msra.mxu0 %v549
      %592 = vmatprep.subr.mxu0 0.0
      %593 = vmatpush1.msra.mxu0 %v548
      %594 = vmatprep.subr.mxu0 0.0
      %595 = vmatpush1.msra.mxu0 %v547
      %596 = vmatprep.subr.mxu0 0.0
      %597 = vmatpush1.msra.mxu0 %v546
      %598 = vmatprep.subr.mxu0 0.0
      %599 = vmatpush1.msra.mxu0 %v545
      %600 = vmatprep.subr.mxu0 0.0
      %601 = vmatpush2.msra.mxu0 0.0
      %602 = vmatprep.subr.mxu0 0.0
      %603 = vmatpush2.msra.mxu0 0.0
      %604 = vmatprep.subr.mxu0 0.0
      %605 = vmatpush2.msra.mxu0 0.0
      %606 = vmatprep.subr.mxu0 0.0
      %607 = vmatpush2.msra.mxu0 0.0
      %608 = vmatprep.subr.mxu0 0.0
      %609 = vmatpush2.msra.mxu0 0.0
      %610 = vmatprep.subr.mxu0 0.0
      %611 = vmatpush2.msra.mxu0 0.0
      %612 = vmatprep.subr.mxu0 0.0
      %613 = vmatpush2.msra.mxu0 0.0
      %614 = vmatprep.subr.mxu0 0.0
      %615 = vmatpush2.msra.mxu0 0.0
      %616 = vmatprep.subr.mxu0 0.0
      %617 = vmatpush2.msra.mxu0 0.0
      %618 = vmatprep.subr.mxu0 0.0
      %619 = vmatpush2.msra.mxu0 0.0
      %620 = vmatprep.subr.mxu0 0.0
      %621 = vmatpush2.msra.mxu0 0.0
      %622 = vmatprep.subr.mxu0 0.0
      %623 = vmatpush2.msra.mxu0 0.0
      %624 = vmatprep.subr.mxu0 0.0
      %625 = vmatpush2.msra.mxu0 0.0
      %626 = vmatprep.subr.mxu0 0.0
      %627 = vmatpush2.msra.mxu0 0.0
      %628 = vmatprep.subr.mxu0 0.0
      %629 = vmatpush2.msra.mxu0 0.0
      %630 = vmatprep.subr.mxu0 0.0
      %631 = vmatpush2.msra.mxu0 0.0
      %632 = vmatprep.mubr.f32.mxu0 0.0
      %633 = vmatmul.mubr.f32.gmra.mxu0 %v544
      %v634 = vpop.f32.mrf.mxu0
      %v635 = vadd.f32 %v566, %v634
      %v636 = vpop.f32.mrf.mxu0
      %637 = vdwg.mxu0
      %638 = vst [vmem:[#allocation3] sm:$0x3] %v635
    $region29: #{dcnet_forward.5} parent=1 // pred_fallthru
      _
    // Predicated region
    $region30: #{dcnet_forward.5} parent=1 // pred_check
      _
    $region31: #{dcnet_forward.5} parent=1 // pred_check_branch
      %640 = sbr.rel (0) target = $region33
    $region32: #{dcnet_forward.5} parent=1 // pred_region
      %s642 = ssub.s32 32, 32
      %643 = vsyncadd [#allocation4], %s642
      %s645 = sshll.u32 [#allocation3], 4
      %s646 = int_to_ptr.vmem [resolvable:$true] %s645
      %648 = dma.vmem_to_hbm [thread:$0]  %s646, 32, %s5, [#allocation4]
    $region33: #{dcnet_forward.5} parent=1 // pred_fallthru
      _
    // Predicated region
    $region34: #{dcnet_forward.5} parent=1 // pred_check
      _
    $region35: #{dcnet_forward.5} parent=1 // pred_check_branch
      %650 = sbr.rel (0) target = $region37
    $region36: #{dcnet_forward.5} parent=1 // pred_region
      %651 = dma.done [#allocation4], 32
    $region37: #{dcnet_forward.5} parent=1 // pred_fallthru
      _
    %652 = vsyncpa [#allocation4], 1

// kernel: dcnet_forward.3
$region0: #{dcnet_forward.3}
  #allocation0 [shape = 'u32[]', space=smem, size = 0x4, offset = 0x4, fixed_abs, tag = 'smem constant byte address 0x4 - core index']
  #allocation1 [shape = 'u32[144,128]{1,0:T(1,128)}', space=vmem, size = 0x12000, scoped, tag = 'internal scratch']
  %s0 = inlined_call_operand.vmem [shape: bf16[2,18,18,8], index: 0, kind: input, shape index: {}]
  %s1 = inlined_call_operand.vmem [shape: bf16[9,8,128], index: 1, kind: input, shape index: {}]
  %s2 = inlined_call_operand.vmem [shape: f32[1,128], index: 2, kind: input, shape index: {}]
  %s3 = inlined_call_operand.vmem [shape: bf16[2,256,128], index: 3, kind: output, shape index: {0}]
  %s4 = inlined_call_operand.vmem [shape: f32[2,2,128], index: 4, kind: output, shape index: {1}]
  %5 = xla_tuple %s3, %s4
  %s6 = sld [smem:[#allocation0]]
  $region53: #{dcnet_forward.3} parent=0
    _
  %s8 = ssub.s32 1, %s6
  %s9 = scalar_select 0, %s8, %s6
  loop: start=0, step=1, limit=4
  $region2: #{dcnet_forward.3} parent=0 // loop_pre_header
    _
  $region3: #{dcnet_forward.3} parent=0 // loop_header
    %s11 = sphi 0, %s15
    %p12 = scmp.ge.s32.totalorder %s11, 4
    %s21 = sphi 0, %s23
    %s24 = sphi 0, %s21
    %s25 = sphi 0, %s24
    %s41 = sphi 0, %s25
    %s45 = sphi 0, %s45
    %s47 = sphi 0, %s45
    %s48 = sphi 0, %s47
    %s62 = sphi 0, %s48
    %s66 = sphi 0, %s66
    %s68 = sphi 0, %s66
    %s69 = sphi 0, %s68
    %s83 = sphi 0, %s69
    %s89 = sphi 0, %s91
    %s92 = sphi 0, %s89
    %s93 = sphi 0, %s92
    %s109 = sphi 0, %s93
    %s115 = sphi 0, %s117
    %s118 = sphi 0, %s115
    %s119 = sphi 0, %s118
    %s135 = sphi 0, %s119
  $region4: #{dcnet_forward.3} parent=0 // loop_header_branch
    %14 = sbr.rel (%p12) target = $region8
  $region5: #{dcnet_forward.3} parent=0 // loop_body
    %s16 = ssub.s32 %s11, 1
    %s17 = ssub.s32 %s11, 2
    %s18 = sadd.s32 %s11, 1
    %s19 = ssub.s32 %s11, %s18
    %p20 = scmp.eq.s32.totalorder %s19, 0
    %s22 = sadd.s32 %s21, 1
    %s23 = scalar_select %p20, %s21, %s22
    %p26 = pneg %p20
    %p27 = scmp.eq.s32.totalorder %s11, 1
    %p28 = por %p26, %p27
    %p29 = scmp.ne.s32.totalorder %s21, %s24
    %p30 = scmp.eq.s32.totalorder %s11, 0
    %p31 = por %p29, %p30
    %p32 = scmp.ne.s32.totalorder %s21, %s24
    %p33 = scmp.eq.s32.totalorder %s16, 1
    %p34 = por %p32, %p33
    %p35 = scmp.ne.s32.totalorder %s24, %s25
    %p36 = scmp.eq.s32.totalorder %s16, 0
    %p37 = por %p35, %p36
    %p38 = scmp.ne.s32.totalorder %s24, %s25
    %p39 = scmp.eq.s32.totalorder %s17, 1
    %p40 = por %p38, %p39
    %p42 = scmp.ne.s32.totalorder %s25, %s41
    %p43 = scmp.eq.s32.totalorder %s17, 0
    %p44 = por %p42, %p43
    %s46 = sadd.s32 %s45, 1
    %p49 = scmp.eq.s32.totalorder %s11, 1
    %p50 = scmp.ne.s32.totalorder %s45, %s47
    %p51 = scmp.eq.s32.totalorder %s11, 0
    %p52 = por %p50, %p51
    %p53 = scmp.ne.s32.totalorder %s45, %s47
    %p54 = scmp.eq.s32.totalorder %s16, 1
    %p55 = por %p53, %p54
    %p56 = scmp.ne.s32.totalorder %s47, %s48
    %p57 = scmp.eq.s32.totalorder %s16, 0
    %p58 = por %p56, %p57
    %p59 = scmp.ne.s32.totalorder %s47, %s48
    %p60 = scmp.eq.s32.totalorder %s17, 1
    %p61 = por %p59, %p60
    %p63 = scmp.ne.s32.totalorder %s48, %s62
    %p64 = scmp.eq.s32.totalorder %s17, 0
    %p65 = por %p63, %p64
    %s67 = sadd.s32 %s66, 1
    %p70 = scmp.eq.s32.totalorder %s11, 1
    %p71 = scmp.ne.s32.totalorder %s66, %s68
    %p72 = scmp.eq.s32.totalorder %s11, 0
    %p73 = por %p71, %p72
    %p74 = scmp.ne.s32.totalorder %s66, %s68
    %p75 = scmp.eq.s32.totalorder %s16, 1
    %p76 = por %p74, %p75
    %p77 = scmp.ne.s32.totalorder %s68, %s69
    %p78 = scmp.eq.s32.totalorder %s16, 0
    %p79 = por %p77, %p78
    %p80 = scmp.ne.s32.totalorder %s68, %s69
    %p81 = scmp.eq.s32.totalorder %s17, 1
    %p82 = por %p80, %p81
    %p84 = scmp.ne.s32.totalorder %s69, %s83
    %p85 = scmp.eq.s32.totalorder %s17, 0
    %p86 = por %p84, %p85
    %s87 = ssub.s32 %s11, %s18
    %p88 = scmp.eq.s32.totalorder %s87, 0
    %s90 = sadd.s32 %s89, 1
    %s91 = scalar_select %p88, %s89, %s90
    %p94 = pneg %p88
    %p95 = scmp.eq.s32.totalorder %s11, 1
    %p96 = por %p94, %p95
    %p97 = scmp.ne.s32.totalorder %s89, %s92
    %p98 = scmp.eq.s32.totalorder %s11, 0
    %p99 = por %p97, %p98
    %p100 = scmp.ne.s32.totalorder %s89, %s92
    %p101 = scmp.eq.s32.totalorder %s16, 1
    %p102 = por %p100, %p101
    %p103 = scmp.ne.s32.totalorder %s92, %s93
    %p104 = scmp.eq.s32.totalorder %s16, 0
    %p105 = por %p103, %p104
    %p106 = scmp.ne.s32.totalorder %s92, %s93
    %p107 = scmp.eq.s32.totalorder %s17, 1
    %p108 = por %p106, %p107
    %p110 = scmp.ne.s32.totalorder %s93, %s109
    %p111 = scmp.eq.s32.totalorder %s17, 0
    %p112 = por %p110, %p111
    %s113 = ssub.s32 %s11, %s18
    %p114 = scmp.eq.s32.totalorder %s113, 0
    %s116 = sadd.s32 %s115, 1
    %s117 = scalar_select %p114, %s115, %s116
    %p120 = pneg %p114
    %p121 = scmp.eq.s32.totalorder %s11, 1
    %p122 = por %p120, %p121
    %p123 = scmp.ne.s32.totalorder %s115, %s118
    %p124 = scmp.eq.s32.totalorder %s11, 0
    %p125 = por %p123, %p124
    %p126 = scmp.ne.s32.totalorder %s115, %s118
    %p127 = scmp.eq.s32.totalorder %s16, 1
    %p128 = por %p126, %p127
    %p129 = scmp.ne.s32.totalorder %s118, %s119
    %p130 = scmp.eq.s32.totalorder %s16, 0
    %p131 = por %p129, %p130
    %p132 = scmp.ne.s32.totalorder %s118, %s119
    %p133 = scmp.eq.s32.totalorder %s17, 1
    %p134 = por %p132, %p133
    %p136 = scmp.ne.s32.totalorder %s119, %s135
    %p137 = scmp.eq.s32.totalorder %s17, 0
    %p138 = por %p136, %p137
    %p139 = scmp.le.s32.totalorder 1, %s11
    %p140 = scmp.lt.s32.totalorder %s11, 3
    %p141 = pnand %p139, %p140
    %p142 = pneg %p141
    // Predicated region
    $region9: #{dcnet_forward.3} parent=5 // pred_check
      _
    $region10: #{dcnet_forward.3} parent=5 // pred_check_branch
      %144 = sbr.rel (%p141) target = $region12
    $region11: #{dcnet_forward.3} parent=5 // pred_region
      %s145 = ssub.s32 %s11, 1
      // Predicated region
      $region13: #{dcnet_forward.3} parent=11 // pred_check
        %p146 = pneg %p58
      $region14: #{dcnet_forward.3} parent=11 // pred_check_branch
        %148 = sbr.rel (%p146) target = $region16
      $region15: #{dcnet_forward.3} parent=11 // pred_region
        _
      $region16: #{dcnet_forward.3} parent=11 // pred_fallthru
        _
      // Predicated region
      $region17: #{dcnet_forward.3} parent=11 // pred_check
        %p149 = pneg %p79
      $region18: #{dcnet_forward.3} parent=11 // pred_check_branch
        %151 = sbr.rel (%p149) target = $region20
      $region19: #{dcnet_forward.3} parent=11 // pred_region
        _
      $region20: #{dcnet_forward.3} parent=11 // pred_fallthru
        _
    $region12: #{dcnet_forward.3} parent=5 // pred_fallthru
      _
    %p152 = scmp.lt.s32.totalorder %s11, 2
    // Predicated region
    $region21: #{dcnet_forward.3} parent=5 // pred_check
      %p153 = pneg %p152
    $region22: #{dcnet_forward.3} parent=5 // pred_check_branch
      %155 = sbr.rel (%p153) target = $region24
    $region23: #{dcnet_forward.3} parent=5 // pred_region
      // Predicated region
      $region25: #{dcnet_forward.3} parent=23 // pred_check
        %p156 = pneg %p31
      $region26: #{dcnet_forward.3} parent=23 // pred_check_branch
        %158 = sbr.rel (%p156) target = $region28
      $region27: #{dcnet_forward.3} parent=23 // pred_region
        %p159 = scmp.lt.s32.totalorder %s11, 1
        %s160 = scalar_select %p159, %s11, 1
        %s161 = smul.addr %s160, 54
        %s162 = smul.addr %s161, 4
        %s163 = scalar_lea.vmem %s0, %s162
      $region28: #{dcnet_forward.3} parent=23 // pred_fallthru
        _
    $region24: #{dcnet_forward.3} parent=5 // pred_fallthru
      _
    %p164 = scmp.le.s32.totalorder 1, %s11
    %p165 = scmp.lt.s32.totalorder %s11, 3
    %p166 = pnand %p164, %p165
    %p167 = pneg %p166
    // Predicated region
    $region29: #{dcnet_forward.3} parent=5 // pred_check
      _
    $region30: #{dcnet_forward.3} parent=5 // pred_check_branch
      %169 = sbr.rel (%p166) target = $region32
    $region31: #{dcnet_forward.3} parent=5 // pred_region
      %s170 = ssub.s32 %s11, 1
      %p171 = scmp.lt.s32.totalorder %s16, 1
      %s172 = scalar_select %p171, %s16, 1
      %s173 = smul.addr %s172, 54
      %s174 = smul.addr %s173, 4
      %s175 = scalar_lea.vmem %s0, %s174
      %p176 = pneg %p37
      %p177 = pneg %p34
      %p178 = pneg %p58
      %p179 = pneg %p55
      %p180 = pneg %p79
      %p181 = pneg %p76
      %p182 = pneg %p105
      %p183 = pneg %p102
      %p184 = scmp.lt.s32.totalorder %s16, 1
      %s185 = scalar_select %p184, %s16, 1
      %s186 = smul.addr %s185, 32
      %s187 = smul.addr %s186, 4
      %s188 = scalar_lea.vmem %s3, %s187
      %p189 = pneg %p131
      %p190 = pneg %p128
      %p191 = scmp.lt.s32.totalorder %s16, 1
      %s192 = scalar_select %p191, %s16, 1
      %s193 = smul.addr %s192, 2
      %s194 = scalar_lea.vmem %s4, %s193
      %p195 = scmp.lt.s32.totalorder %s16, 1
      %s196 = scalar_select %p195, %s16, 1
      %s197 = smul.addr %s196, 54
      %s198 = smul.addr %s197, 4
      %s199 = scalar_lea.vmem %s0, %s198
      %p200 = scmp.lt.s32.totalorder %s16, 1
      %s201 = scalar_select %p200, %s16, 1
      %s202 = smul.addr %s201, 32
      %s203 = smul.addr %s202, 4
      %s204 = scalar_lea.vmem %s3, %s203
      %p205 = scmp.lt.s32.totalorder %s16, 1
      %s206 = scalar_select %p205, %s16, 1
      %s207 = smul.addr %s206, 2
      %s208 = scalar_lea.vmem %s4, %s207
      %v210 = vld [vmem:[%s199] sm:$0xf]
      %v211 = vld [vmem:[%s199 + $0x4] sm:$0xf]
      %v212 = vld [vmem:[%s199 + $0x8] sm:$0x1]
      %v213 = vld [vmem:[%s199 + $0xc] sm:$0xf]
      %v214 = vld [vmem:[%s199 + $0x10] sm:$0xf]
      %v215 = vld [vmem:[%s199 + $0x14] sm:$0x1]
      %v216 = vld [vmem:[%s199 + $0x18] sm:$0xf]
      %v217 = vld [vmem:[%s199 + $0x1c] sm:$0xf]
      %v218 = vld [vmem:[%s199 + $0x20] sm:$0x1]
      %v219 = vld [vmem:[%s199 + $0x24] sm:$0xf]
      %v220 = vld [vmem:[%s199 + $0x28] sm:$0xf]
      %v221 = vld [vmem:[%s199 + $0x2c] sm:$0x1]
      %v222 = vld [vmem:[%s199 + $0x30] sm:$0xf]
      %v223 = vld [vmem:[%s199 + $0x34] sm:$0xf]
      %v224 = vld [vmem:[%s199 + $0x38] sm:$0x1]
      %v225 = vld [vmem:[%s199 + $0x3c] sm:$0xf]
      %v226 = vld [vmem:[%s199 + $0x40] sm:$0xf]
      %v227 = vld [vmem:[%s199 + $0x44] sm:$0x1]
      %v228 = vld [vmem:[%s199 + $0x48] sm:$0xf]
      %v229 = vld [vmem:[%s199 + $0x4c] sm:$0xf]
      %v230 = vld [vmem:[%s199 + $0x50] sm:$0x1]
      %v231 = vld [vmem:[%s199 + $0x54] sm:$0xf]
      %v232 = vld [vmem:[%s199 + $0x58] sm:$0xf]
      %v233 = vld [vmem:[%s199 + $0x5c] sm:$0x1]
      %v234 = vld [vmem:[%s199 + $0x60] sm:$0xf]
      %v235 = vld [vmem:[%s199 + $0x64] sm:$0xf]
      %v236 = vld [vmem:[%s199 + $0x68] sm:$0x1]
      %v237 = vld [vmem:[%s199 + $0x6c] sm:$0xf]
      %v238 = vld [vmem:[%s199 + $0x70] sm:$0xf]
      %v239 = vld [vmem:[%s199 + $0x74] sm:$0x1]
      %v240 = vld [vmem:[%s199 + $0x78] sm:$0xf]
      %v241 = vld [vmem:[%s199 + $0x7c] sm:$0xf]
      %v242 = vld [vmem:[%s199 + $0x80] sm:$0x1]
      %v243 = vld [vmem:[%s199 + $0x84] sm:$0xf]
      %v244 = vld [vmem:[%s199 + $0x88] sm:$0xf]
      %v245 = vld [vmem:[%s199 + $0x8c] sm:$0x1]
      %v246 = vld [vmem:[%s199 + $0x90] sm:$0xf]
      %v247 = vld [vmem:[%s199 + $0x94] sm:$0xf]
      %v248 = vld [vmem:[%s199 + $0x98] sm:$0x1]
      %v249 = vld [vmem:[%s199 + $0x9c] sm:$0xf]
      %v250 = vld [vmem:[%s199 + $0xa0] sm:$0xf]
      %v251 = vld [vmem:[%s199 + $0xa4] sm:$0x1]
      %v252 = vld [vmem:[%s199 + $0xa8] sm:$0xf]
      %v253 = vld [vmem:[%s199 + $0xac] sm:$0xf]
      %v254 = vld [vmem:[%s199 + $0xb0] sm:$0x1]
      %v255 = vld [vmem:[%s199 + $0xb4] sm:$0xf]
      %v256 = vld [vmem:[%s199 + $0xb8] sm:$0xf]
      %v257 = vld [vmem:[%s199 + $0xbc] sm:$0x1]
      %v258 = vld [vmem:[%s199 + $0xc0] sm:$0xf]
      %v259 = vld [vmem:[%s199 + $0xc4] sm:$0xf]
      %v260 = vld [vmem:[%s199 + $0xc8] sm:$0x1]
      %v261 = vld [vmem:[%s199 + $0xcc] sm:$0xf]
      %v262 = vld [vmem:[%s199 + $0xd0] sm:$0xf]
      %v263 = vld [vmem:[%s199 + $0xd4] sm:$0x1]
      %v264 = vld [vmem:[%s1] sm:$0xf]
      %vm265 = vsmask.f32 3328
      %vm266 = vsmask.f32 7440
      %vm267 = vmor %vm265, %vm266
      %v269 = vshrl.u32 %v210, 16
      %v271 = vrot.slane %v269, 4
      %v272 = vshll.u32 %v210, 16
      %v274 = vrot.slane %v272, 5
      %v275 = vor.u32 %v271, %v274
      %v276 = vrot.slane %v275, 4
      %v278 = vshll.u32 %v211, 16
      %v280 = vrot.slane %v278, 5
      %v281 = vsel %vm267, %v276, %v280
      %v282 = vshrl.u32 %v211, 16
      %v284 = vrot.slane %v282, 4
      %v285 = vor.u32 %v284, %v280
      %v286 = vrot.slane %v285, 4
      %v288 = vshll.u32 %v212, 16
      %v290 = vrot.slane %v288, 5
      %v291 = vsel %vm267, %v286, %v290
      %v293 = vshrl.u32 %v213, 16
      %v295 = vrot.slane %v293, 4
      %v296 = vshll.u32 %v213, 16
      %v298 = vrot.slane %v296, 5
      %v299 = vor.u32 %v295, %v298
      %v300 = vrot.slane %v299, 4
      %v302 = vshll.u32 %v214, 16
      %v304 = vrot.slane %v302, 5
      %v305 = vsel %vm267, %v300, %v304
      %v306 = vshrl.u32 %v214, 16
      %v308 = vrot.slane %v306, 4
      %v309 = vor.u32 %v308, %v304
      %v310 = vrot.slane %v309, 4
      %v312 = vshll.u32 %v215, 16
      %v314 = vrot.slane %v312, 5
      %v315 = vsel %vm267, %v310, %v314
      %v317 = vshrl.u32 %v216, 16
      %v319 = vrot.slane %v317, 4
      %v320 = vshll.u32 %v216, 16
      %v322 = vrot.slane %v320, 5
      %v323 = vor.u32 %v319, %v322
      %v324 = vrot.slane %v323, 4
      %v326 = vshll.u32 %v217, 16
      %v328 = vrot.slane %v326, 5
      %v329 = vsel %vm267, %v324, %v328
      %v330 = vshrl.u32 %v217, 16
      %v332 = vrot.slane %v330, 4
      %v333 = vor.u32 %v332, %v328
      %v334 = vrot.slane %v333, 4
      %v336 = vshll.u32 %v218, 16
      %v338 = vrot.slane %v336, 5
      %v339 = vsel %vm267, %v334, %v338
      %v341 = vshrl.u32 %v219, 16
      %v343 = vrot.slane %v341, 4
      %v344 = vshll.u32 %v219, 16
      %v346 = vrot.slane %v344, 5
      %v347 = vor.u32 %v343, %v346
      %v348 = vrot.slane %v347, 4
      %v350 = vshll.u32 %v220, 16
      %v352 = vrot.slane %v350, 5
      %v353 = vsel %vm267, %v348, %v352
      %v354 = vshrl.u32 %v220, 16
      %v356 = vrot.slane %v354, 4
      %v357 = vor.u32 %v356, %v352
      %v358 = vrot.slane %v357, 4
      %v360 = vshll.u32 %v221, 16
      %v362 = vrot.slane %v360, 5
      %v363 = vsel %vm267, %v358, %v362
      %v365 = vshrl.u32 %v222, 16
      %v367 = vrot.slane %v365, 4
      %v368 = vshll.u32 %v222, 16
      %v370 = vrot.slane %v368, 5
      %v371 = vor.u32 %v367, %v370
      %v372 = vrot.slane %v371, 4
      %v374 = vshll.u32 %v223, 16
      %v376 = vrot.slane %v374, 5
      %v377 = vsel %vm267, %v372, %v376
      %v378 = vshrl.u32 %v223, 16
      %v380 = vrot.slane %v378, 4
      %v381 = vor.u32 %v380, %v376
      %v382 = vrot.slane %v381, 4
      %v384 = vshll.u32 %v224, 16
      %v386 = vrot.slane %v384, 5
      %v387 = vsel %vm267, %v382, %v386
      %v389 = vshrl.u32 %v225, 16
      %v391 = vrot.slane %v389, 4
      %v392 = vshll.u32 %v225, 16
      %v394 = vrot.slane %v392, 5
      %v395 = vor.u32 %v391, %v394
      %v396 = vrot.slane %v395, 4
      %v398 = vshll.u32 %v226, 16
      %v400 = vrot.slane %v398, 5
      %v401 = vsel %vm267, %v396, %v400
      %v402 = vshrl.u32 %v226, 16
      %v404 = vrot.slane %v402, 4
      %v405 = vor.u32 %v404, %v400
      %v406 = vrot.slane %v405, 4
      %v408 = vshll.u32 %v227, 16
      %v410 = vrot.slane %v408, 5
      %v411 = vsel %vm267, %v406, %v410
      %v413 = vshrl.u32 %v228, 16
      %v415 = vrot.slane %v413, 4
      %v416 = vshll.u32 %v228, 16
      %v418 = vrot.slane %v416, 5
      %v419 = vor.u32 %v415, %v418
      %v420 = vrot.slane %v419, 4
      %v422 = vshll.u32 %v229, 16
      %v424 = vrot.slane %v422, 5
      %v425 = vsel %vm267, %v420, %v424
      %v426 = vshrl.u32 %v229, 16
      %v428 = vrot.slane %v426, 4
      %v429 = vor.u32 %v428, %v424
      %v430 = vrot.slane %v429, 4
      %v432 = vshll.u32 %v230, 16
      %v434 = vrot.slane %v432, 5
      %v435 = vsel %vm267, %v430, %v434
      %v437 = vshrl.u32 %v231, 16
      %v439 = vrot.slane %v437, 4
      %v440 = vshll.u32 %v231, 16
      %v442 = vrot.slane %v440, 5
      %v443 = vor.u32 %v439, %v442
      %v444 = vrot.slane %v443, 4
      %v446 = vshll.u32 %v232, 16
      %v448 = vrot.slane %v446, 5
      %v449 = vsel %vm267, %v444, %v448
      %v450 = vshrl.u32 %v232, 16
      %v452 = vrot.slane %v450, 4
      %v453 = vor.u32 %v452, %v448
      %v454 = vrot.slane %v453, 4
      %v456 = vshll.u32 %v233, 16
      %v458 = vrot.slane %v456, 5
      %v459 = vsel %vm267, %v454, %v458
      %v461 = vshrl.u32 %v234, 16
      %v463 = vrot.slane %v461, 4
      %v464 = vshll.u32 %v234, 16
      %v466 = vrot.slane %v464, 5
      %v467 = vor.u32 %v463, %v466
      %v468 = vrot.slane %v467, 4
      %v470 = vshll.u32 %v235, 16
      %v472 = vrot.slane %v470, 5
      %v473 = vsel %vm267, %v468, %v472
      %v474 = vshrl.u32 %v235, 16
      %v476 = vrot.slane %v474, 4
      %v477 = vor.u32 %v476, %v472
      %v478 = vrot.slane %v477, 4
      %v480 = vshll.u32 %v236, 16
      %v482 = vrot.slane %v480, 5
      %v483 = vsel %vm267, %v478, %v482
      %v485 = vshrl.u32 %v237, 16
      %v487 = vrot.slane %v485, 4
      %v488 = vshll.u32 %v237, 16
      %v490 = vrot.slane %v488, 5
      %v491 = vor.u32 %v487, %v490
      %v492 = vrot.slane %v491, 4
      %v494 = vshll.u32 %v238, 16
      %v496 = vrot.slane %v494, 5
      %v497 = vsel %vm267, %v492, %v496
      %v498 = vshrl.u32 %v238, 16
      %v500 = vrot.slane %v498, 4
      %v501 = vor.u32 %v500, %v496
      %v502 = vrot.slane %v501, 4
      %v504 = vshll.u32 %v239, 16
      %v506 = vrot.slane %v504, 5
      %v507 = vsel %vm267, %v502, %v506
      %v509 = vshrl.u32 %v240, 16
      %v511 = vrot.slane %v509, 4
      %v512 = vshll.u32 %v240, 16
      %v514 = vrot.slane %v512, 5
      %v515 = vor.u32 %v511, %v514
      %v516 = vrot.slane %v515, 4
      %v518 = vshll.u32 %v241, 16
      %v520 = vrot.slane %v518, 5
      %v521 = vsel %vm267, %v516, %v520
      %v522 = vshrl.u32 %v241, 16
      %v524 = vrot.slane %v522, 4
      %v525 = vor.u32 %v524, %v520
      %v526 = vrot.slane %v525, 4
      %v528 = vshll.u32 %v242, 16
      %v530 = vrot.slane %v528, 5
      %v531 = vsel %vm267, %v526, %v530
      %v533 = vshrl.u32 %v243, 16
      %v535 = vrot.slane %v533, 4
      %v536 = vshll.u32 %v243, 16
      %v538 = vrot.slane %v536, 5
      %v539 = vor.u32 %v535, %v538
      %v540 = vrot.slane %v539, 4
      %v542 = vshll.u32 %v244, 16
      %v544 = vrot.slane %v542, 5
      %v545 = vsel %vm267, %v540, %v544
      %v546 = vshrl.u32 %v244, 16
      %v548 = vrot.slane %v546, 4
      %v549 = vor.u32 %v548, %v544
      %v550 = vrot.slane %v549, 4
      %v552 = vshll.u32 %v245, 16
      %v554 = vrot.slane %v552, 5
      %v555 = vsel %vm267, %v550, %v554
      %v557 = vshrl.u32 %v246, 16
      %v559 = vrot.slane %v557, 4
      %v560 = vshll.u32 %v246, 16
      %v562 = vrot.slane %v560, 5
      %v563 = vor.u32 %v559, %v562
      %v564 = vrot.slane %v563, 4
      %v566 = vshll.u32 %v247, 16
      %v568 = vrot.slane %v566, 5
      %v569 = vsel %vm267, %v564, %v568
      %v570 = vshrl.u32 %v247, 16
      %v572 = vrot.slane %v570, 4
      %v573 = vor.u32 %v572, %v568
      %v574 = vrot.slane %v573, 4
      %v576 = vshll.u32 %v248, 16
      %v578 = vrot.slane %v576, 5
      %v579 = vsel %vm267, %v574, %v578
      %v581 = vshrl.u32 %v249, 16
      %v583 = vrot.slane %v581, 4
      %v584 = vshll.u32 %v249, 16
      %v586 = vrot.slane %v584, 5
      %v587 = vor.u32 %v583, %v586
      %v588 = vrot.slane %v587, 4
      %v590 = vshll.u32 %v250, 16
      %v592 = vrot.slane %v590, 5
      %v593 = vsel %vm267, %v588, %v592
      %v594 = vshrl.u32 %v250, 16
      %v596 = vrot.slane %v594, 4
      %v597 = vor.u32 %v596, %v592
      %v598 = vrot.slane %v597, 4
      %v600 = vshll.u32 %v251, 16
      %v602 = vrot.slane %v600, 5
      %v603 = vsel %vm267, %v598, %v602
      %v605 = vshrl.u32 %v252, 16
      %v607 = vrot.slane %v605, 4
      %v608 = vshll.u32 %v252, 16
      %v610 = vrot.slane %v608, 5
      %v611 = vor.u32 %v607, %v610
      %v612 = vrot.slane %v611, 4
      %v614 = vshll.u32 %v253, 16
      %v616 = vrot.slane %v614, 5
      %v617 = vsel %vm267, %v612, %v616
      %v618 = vshrl.u32 %v253, 16
      %v620 = vrot.slane %v618, 4
      %v621 = vor.u32 %v620, %v616
      %v622 = vrot.slane %v621, 4
      %v624 = vshll.u32 %v254, 16
      %v626 = vrot.slane %v624, 5
      %v627 = vsel %vm267, %v622, %v626
      %v629 = vshrl.u32 %v255, 16
      %v631 = vrot.slane %v629, 4
      %v632 = vshll.u32 %v255, 16
      %v634 = vrot.slane %v632, 5
      %v635 = vor.u32 %v631, %v634
      %v636 = vrot.slane %v635, 4
      %v638 = vshll.u32 %v256, 16
      %v640 = vrot.slane %v638, 5
      %v641 = vsel %vm267, %v636, %v640
      %v642 = vshrl.u32 %v256, 16
      %v644 = vrot.slane %v642, 4
      %v645 = vor.u32 %v644, %v640
      %v646 = vrot.slane %v645, 4
      %v648 = vshll.u32 %v257, 16
      %v650 = vrot.slane %v648, 5
      %v651 = vsel %vm267, %v646, %v650
      %s652 = scalar_lea.vmem %s1, 4
      %v653 = vld [vmem:[%s652] sm:$0xf]
      %v654 = vunpack.c.l.b16 %v281
      %v655 = vunpack.c.l.b16 %v291
      %v656 = vunpack.c.l.b16 %v305
      %v657 = vunpack.c.l.b16 %v315
      %v658 = vunpack.c.l.b16 %v329
      %v659 = vunpack.c.l.b16 %v339
      %v660 = vunpack.c.l.b16 %v353
      %v661 = vunpack.c.l.b16 %v363
      %v662 = vunpack.c.l.b16 %v377
      %v663 = vunpack.c.l.b16 %v387
      %v664 = vunpack.c.l.b16 %v401
      %v665 = vunpack.c.l.b16 %v411
      %v666 = vunpack.c.l.b16 %v425
      %v667 = vunpack.c.l.b16 %v435
      %v668 = vunpack.c.l.b16 %v449
      %v669 = vunpack.c.l.b16 %v459
      %v670 = vunpack.c.l.b16 %v473
      %v671 = vunpack.c.l.b16 %v483
      %v672 = vunpack.c.l.b16 %v497
      %v673 = vunpack.c.l.b16 %v507
      %v674 = vunpack.c.l.b16 %v521
      %v675 = vunpack.c.l.b16 %v531
      %v676 = vunpack.c.l.b16 %v545
      %v677 = vunpack.c.l.b16 %v555
      %v678 = vunpack.c.l.b16 %v569
      %v679 = vunpack.c.l.b16 %v579
      %v680 = vunpack.c.l.b16 %v593
      %v681 = vunpack.c.l.b16 %v603
      %v682 = vunpack.c.l.b16 %v617
      %v683 = vunpack.c.l.b16 %v627
      %v684 = vunpack.c.l.b16 %v641
      %v685 = vunpack.c.l.b16 %v651
      %v686 = vpack.c.b16 %v655, %v654
      %v687 = vpack.c.b16 %v657, %v656
      %v688 = vpack.c.b16 %v659, %v658
      %v689 = vpack.c.b16 %v661, %v660
      %v690 = vpack.c.b16 %v663, %v662
      %v691 = vpack.c.b16 %v665, %v664
      %v692 = vpack.c.b16 %v667, %v666
      %v693 = vpack.c.b16 %v669, %v668
      %v694 = vpack.c.b16 %v671, %v670
      %v695 = vpack.c.b16 %v673, %v672
      %v696 = vpack.c.b16 %v675, %v674
      %v697 = vpack.c.b16 %v677, %v676
      %v698 = vpack.c.b16 %v679, %v678
      %v699 = vpack.c.b16 %v681, %v680
      %v700 = vpack.c.b16 %v683, %v682
      %v701 = vpack.c.b16 %v685, %v684
      %vm702 = vcmask 64512
      %v704 = vsel %vm702, %v686, 0
      %v707 = vsel %vm702, %v687, 0
      %v710 = vsel %vm702, %v688, 0
      %v713 = vsel %vm702, %v689, 0
      %v716 = vsel %vm702, %v690, 0
      %v719 = vsel %vm702, %v691, 0
      %v722 = vsel %vm702, %v692, 0
      %v725 = vsel %vm702, %v693, 0
      %v728 = vsel %vm702, %v694, 0
      %v731 = vsel %vm702, %v695, 0
      %v734 = vsel %vm702, %v696, 0
      %v737 = vsel %vm702, %v697, 0
      %v740 = vsel %vm702, %v698, 0
      %v743 = vsel %vm702, %v699, 0
      %v746 = vsel %vm702, %v700, 0
      %v749 = vsel %vm702, %v701, 0
      %vm751 = vcmask 1043456
      %v753 = vsel %vm751, %v653, 0
      %755 = vmatprep.subr.bf16.mxu0 0
      %756 = vmatpush1.bf16.msra.mxu0 0
      %757 = vmatprep.subr.bf16.mxu0 0
      %758 = vmatpush1.bf16.msra.mxu0 0
      %759 = vmatprep.subr.bf16.mxu0 0
      %760 = vmatpush1.bf16.msra.mxu0 0
      %761 = vmatprep.subr.bf16.mxu0 0
      %762 = vmatpush1.bf16.msra.mxu0 0
      %763 = vmatprep.subr.bf16.mxu0 0
      %764 = vmatpush1.bf16.msra.mxu0 0
      %765 = vmatprep.subr.bf16.mxu0 0
      %766 = vmatpush1.bf16.msra.mxu0 0
      %767 = vmatprep.subr.bf16.mxu0 0
      %768 = vmatpush1.bf16.msra.mxu0 0
      %769 = vmatprep.subr.bf16.mxu0 0
      %770 = vmatpush1.bf16.msra.mxu0 %v753
      %771 = vmatprep.subr.bf16.mxu0 0
      %772 = vmatpush2.bf16.msra.mxu0 0
      %773 = vmatprep.subr.bf16.mxu0 0
      %774 = vmatpush2.bf16.msra.mxu0 0
      %775 = vmatprep.subr.bf16.mxu0 0
      %776 = vmatpush2.bf16.msra.mxu0 0
      %777 = vmatprep.subr.bf16.mxu0 0
      %778 = vmatpush2.bf16.msra.mxu0 0
      %779 = vmatprep.subr.bf16.mxu0 0
      %780 = vmatpush2.bf16.msra.mxu0 0
      %781 = vmatprep.subr.bf16.mxu0 0
      %782 = vmatpush2.bf16.msra.mxu0 0
      %783 = vmatprep.subr.bf16.mxu0 0
      %784 = vmatpush2.bf16.msra.mxu0 0
      %785 = vmatprep.subr.bf16.mxu0 0
      %786 = vmatpush2.bf16.msra.mxu0 0
      %787 = vmatprep.mubr.bf16.mxu0 0
      %788 = vmatmul.mubr.bf16.gmra.mxu0 %v704
      %v789 = vpop.f32.mrf.mxu0
      %v790 = vadd.f32 0.0, %v789
      %v791 = vpop.f32.mrf.mxu0
      %v792 = vpop.f32.mrf.mxu0
      %v793 = vadd.f32 0.0, %v792
      %v794 = vpop.f32.mrf.mxu0
      %795 = vmatprep.mubr.bf16.mxu0 0
      %796 = vmatmul.mubr.bf16.gmra.mxu0 %v707
      %v797 = vpop.f32.mrf.mxu0
      %v798 = vadd.f32 0.0, %v797
      %v799 = vpop.f32.mrf.mxu0
      %v800 = vpop.f32.mrf.mxu0
      %v801 = vadd.f32 0.0, %v800
      %v802 = vpop.f32.mrf.mxu0
      %803 = vmatprep.mubr.bf16.mxu0 0
      %804 = vmatmul.mubr.bf16.gmra.mxu0 %v710
      %v805 = vpop.f32.mrf.mxu0
      %v806 = vadd.f32 0.0, %v805
      %v807 = vpop.f32.mrf.mxu0
      %v808 = vpop.f32.mrf.mxu0
      %v809 = vadd.f32 0.0, %v808
      %v810 = vpop.f32.mrf.mxu0
      %811 = vmatprep.mubr.bf16.mxu0 0
      %812 = vmatmul.mubr.bf16.gmra.mxu0 %v713
      %v813 = vpop.f32.mrf.mxu0
      %v814 = vadd.f32 0.0, %v813
      %v815 = vpop.f32.mrf.mxu0
      %v816 = vpop.f32.mrf.mxu0
      %v817 = vadd.f32 0.0, %v816
      %v818 = vpop.f32.mrf.mxu0
      %819 = vmatprep.mubr.bf16.mxu0 0
      %820 = vmatmul.mubr.bf16.gmra.mxu0 %v716
      %v821 = vpop.f32.mrf.mxu0
      %v822 = vadd.f32 0.0, %v821
      %v823 = vpop.f32.mrf.mxu0
      %v824 = vpop.f32.mrf.mxu0
      %v825 = vadd.f32 0.0, %v824
      %v826 = vpop.f32.mrf.mxu0
      %827 = vmatprep.mubr.bf16.mxu0 0
      %828 = vmatmul.mubr.bf16.gmra.mxu0 %v719
      %v829 = vpop.f32.mrf.mxu0
      %v830 = vadd.f32 0.0, %v829
      %v831 = vpop.f32.mrf.mxu0
      %v832 = vpop.f32.mrf.mxu0
      %v833 = vadd.f32 0.0, %v832
      %v834 = vpop.f32.mrf.mxu0
      %835 = vmatprep.mubr.bf16.mxu0 0
      %836 = vmatmul.mubr.bf16.gmra.mxu0 %v722
      %v837 = vpop.f32.mrf.mxu0
      %v838 = vadd.f32 0.0, %v837
      %v839 = vpop.f32.mrf.mxu0
      %v840 = vpop.f32.mrf.mxu0
      %v841 = vadd.f32 0.0, %v840
      %v842 = vpop.f32.mrf.mxu0
      %843 = vmatprep.mubr.bf16.mxu0 0
      %844 = vmatmul.mubr.bf16.gmra.mxu0 %v725
      %v845 = vpop.f32.mrf.mxu0
      %v846 = vadd.f32 0.0, %v845
      %v847 = vpop.f32.mrf.mxu0
      %v848 = vpop.f32.mrf.mxu0
      %v849 = vadd.f32 0.0, %v848
      %v850 = vpop.f32.mrf.mxu0
      %851 = vmatprep.mubr.bf16.mxu0 0
      %852 = vmatmul.mubr.bf16.gmra.mxu0 %v728
      %v853 = vpop.f32.mrf.mxu0
      %v854 = vadd.f32 0.0, %v853
      %v855 = vpop.f32.mrf.mxu0
      %v856 = vpop.f32.mrf.mxu0
      %v857 = vadd.f32 0.0, %v856
      %v858 = vpop.f32.mrf.mxu0
      %859 = vmatprep.mubr.bf16.mxu0 0
      %860 = vmatmul.mubr.bf16.gmra.mxu0 %v731
      %v861 = vpop.f32.mrf.mxu0
      %v862 = vadd.f32 0.0, %v861
      %v863 = vpop.f32.mrf.mxu0
      %v864 = vpop.f32.mrf.mxu0
      %v865 = vadd.f32 0.0, %v864
      %v866 = vpop.f32.mrf.mxu0
      %867 = vmatprep.mubr.bf16.mxu0 0
      %868 = vmatmul.mubr.bf16.gmra.mxu0 %v734
      %v869 = vpop.f32.mrf.mxu0
      %v870 = vadd.f32 0.0, %v869
      %v871 = vpop.f32.mrf.mxu0
      %v872 = vpop.f32.mrf.mxu0
      %v873 = vadd.f32 0.0, %v872
      %v874 = vpop.f32.mrf.mxu0
      %875 = vmatprep.mubr.bf16.mxu0 0
      %876 = vmatmul.mubr.bf16.gmra.mxu0 %v737
      %v877 = vpop.f32.mrf.mxu0
      %v878 = vadd.f32 0.0, %v877
      %v879 = vpop.f32.mrf.mxu0
      %v880 = vpop.f32.mrf.mxu0
      %v881 = vadd.f32 0.0, %v880
      %v882 = vpop.f32.mrf.mxu0
      %883 = vmatprep.mubr.bf16.mxu0 0
      %884 = vmatmul.mubr.bf16.gmra.mxu0 %v740
      %v885 = vpop.f32.mrf.mxu0
      %v886 = vadd.f32 0.0, %v885
      %v887 = vpop.f32.mrf.mxu0
      %v888 = vpop.f32.mrf.mxu0
      %v889 = vadd.f32 0.0, %v888
      %v890 = vpop.f32.mrf.mxu0
      %891 = vmatprep.mubr.bf16.mxu0 0
      %892 = vmatmul.mubr.bf16.gmra.mxu0 %v743
      %v893 = vpop.f32.mrf.mxu0
      %v894 = vadd.f32 0.0, %v893
      %v895 = vpop.f32.mrf.mxu0
      %v896 = vpop.f32.mrf.mxu0
      %v897 = vadd.f32 0.0, %v896
      %v898 = vpop.f32.mrf.mxu0
      %899 = vmatprep.mubr.bf16.mxu0 0
      %900 = vmatmul.mubr.bf16.gmra.mxu0 %v746
      %v901 = vpop.f32.mrf.mxu0
      %v902 = vadd.f32 0.0, %v901
      %v903 = vpop.f32.mrf.mxu0
      %v904 = vpop.f32.mrf.mxu0
      %v905 = vadd.f32 0.0, %v904
      %v906 = vpop.f32.mrf.mxu0
      %907 = vmatprep.mubr.bf16.mxu0 0
      %908 = vmatmul.mubr.bf16.gmra.mxu0 %v749
      %v909 = vpop.f32.mrf.mxu0
      %v910 = vadd.f32 0.0, %v909
      %v911 = vpop.f32.mrf.mxu0
      %v912 = vpop.f32.mrf.mxu0
      %v913 = vadd.f32 0.0, %v912
      %v914 = vpop.f32.mrf.mxu0
      %915 = vdwg.mxu0
      %v948 = vunpack.c.l.b16 %v210
      %v949 = vunpack.c.l.b16 %v211
      %v950 = vunpack.c.l.b16 %v213
      %v951 = vunpack.c.l.b16 %v214
      %v952 = vunpack.c.l.b16 %v216
      %v953 = vunpack.c.l.b16 %v217
      %v954 = vunpack.c.l.b16 %v219
      %v955 = vunpack.c.l.b16 %v220
      %v956 = vunpack.c.l.b16 %v222
      %v957 = vunpack.c.l.b16 %v223
      %v958 = vunpack.c.l.b16 %v225
      %v959 = vunpack.c.l.b16 %v226
      %v960 = vunpack.c.l.b16 %v228
      %v961 = vunpack.c.l.b16 %v229
      %v962 = vunpack.c.l.b16 %v231
      %v963 = vunpack.c.l.b16 %v232
      %v964 = vunpack.c.l.b16 %v234
      %v965 = vunpack.c.l.b16 %v235
      %v966 = vunpack.c.l.b16 %v237
      %v967 = vunpack.c.l.b16 %v238
      %v968 = vunpack.c.l.b16 %v240
      %v969 = vunpack.c.l.b16 %v241
      %v970 = vunpack.c.l.b16 %v243
      %v971 = vunpack.c.l.b16 %v244
      %v972 = vunpack.c.l.b16 %v246
      %v973 = vunpack.c.l.b16 %v247
      %v974 = vunpack.c.l.b16 %v249
      %v975 = vunpack.c.l.b16 %v250
      %v976 = vunpack.c.l.b16 %v252
      %v977 = vunpack.c.l.b16 %v253
      %v978 = vunpack.c.l.b16 %v255
      %v979 = vunpack.c.l.b16 %v256
      %v980 = vpack.c.b16 %v949, %v948
      %v981 = vpack.c.b16 %v951, %v950
      %v982 = vpack.c.b16 %v953, %v952
      %v983 = vpack.c.b16 %v955, %v954
      %v984 = vpack.c.b16 %v957, %v956
      %v985 = vpack.c.b16 %v959, %v958
      %v986 = vpack.c.b16 %v961, %v960
      %v987 = vpack.c.b16 %v963, %v962
      %v988 = vpack.c.b16 %v965, %v964
      %v989 = vpack.c.b16 %v967, %v966
      %v990 = vpack.c.b16 %v969, %v968
      %v991 = vpack.c.b16 %v971, %v970
      %v992 = vpack.c.b16 %v973, %v972
      %v993 = vpack.c.b16 %v975, %v974
      %v994 = vpack.c.b16 %v977, %v976
      %v995 = vpack.c.b16 %v979, %v978
      %v997 = vsel %vm702, %v980, 0
      %v1000 = vsel %vm702, %v981, 0
      %v1003 = vsel %vm702, %v982, 0
      %v1006 = vsel %vm702, %v983, 0
      %v1009 = vsel %vm702, %v984, 0
      %v1012 = vsel %vm702, %v985, 0
      %v1015 = vsel %vm702, %v986, 0
      %v1018 = vsel %vm702, %v987, 0
      %v1021 = vsel %vm702, %v988, 0
      %v1024 = vsel %vm702, %v989, 0
      %v1027 = vsel %vm702, %v990, 0
      %v1030 = vsel %vm702, %v991, 0
      %v1033 = vsel %vm702, %v992, 0
      %v1036 = vsel %vm702, %v993, 0
      %v1039 = vsel %vm702, %v994, 0
      %v1042 = vsel %vm702, %v995, 0
      %v1045 = vsel %vm751, %v264, 0
      %1047 = vmatprep.subr.bf16.mxu0 0
      %1048 = vmatpush1.bf16.msra.mxu0 0
      %1049 = vmatprep.subr.bf16.mxu0 0
      %1050 = vmatpush1.bf16.msra.mxu0 0
      %1051 = vmatprep.subr.bf16.mxu0 0
      %1052 = vmatpush1.bf16.msra.mxu0 0
      %1053 = vmatprep.subr.bf16.mxu0 0
      %1054 = vmatpush1.bf16.msra.mxu0 0
      %1055 = vmatprep.subr.bf16.mxu0 0
      %1056 = vmatpush1.bf16.msra.mxu0 0
      %1057 = vmatprep.subr.bf16.mxu0 0
      %1058 = vmatpush1.bf16.msra.mxu0 0
      %1059 = vmatprep.subr.bf16.mxu0 0
      %1060 = vmatpush1.bf16.msra.mxu0 0
      %1061 = vmatprep.subr.bf16.mxu0 0
      %1062 = vmatpush1.bf16.msra.mxu0 %v1045
      %1063 = vmatprep.subr.bf16.mxu0 0
      %1064 = vmatpush2.bf16.msra.mxu0 0
      %1065 = vmatprep.subr.bf16.mxu0 0
      %1066 = vmatpush2.bf16.msra.mxu0 0
      %1067 = vmatprep.subr.bf16.mxu0 0
      %1068 = vmatpush2.bf16.msra.mxu0 0
      %1069 = vmatprep.subr.bf16.mxu0 0
      %1070 = vmatpush2.bf16.msra.mxu0 0
      %1071 = vmatprep.subr.bf16.mxu0 0
      %1072 = vmatpush2.bf16.msra.mxu0 0
      %1073 = vmatprep.subr.bf16.mxu0 0
      %1074 = vmatpush2.bf16.msra.mxu0 0
      %1075 = vmatprep.subr.bf16.mxu0 0
      %1076 = vmatpush2.bf16.msra.mxu0 0
      %1077 = vmatprep.subr.bf16.mxu0 0
      %1078 = vmatpush2.bf16.msra.mxu0 0
      %1079 = vmatprep.mubr.bf16.mxu0 0
      %1080 = vmatmul.mubr.bf16.gmra.mxu0 %v997
      %v1081 = vpop.f32.mrf.mxu0
      %v1082 = vadd.f32 %v790, %v1081
      %v1083 = vpop.f32.mrf.mxu0
      %v1084 = vpop.f32.mrf.mxu0
      %v1085 = vadd.f32 %v793, %v1084
      %v1086 = vpop.f32.mrf.mxu0
      %1087 = vmatprep.mubr.bf16.mxu0 0
      %1088 = vmatmul.mubr.bf16.gmra.mxu0 %v1000
      %v1089 = vpop.f32.mrf.mxu0
      %v1090 = vadd.f32 %v798, %v1089
      %v1091 = vpop.f32.mrf.mxu0
      %v1092 = vpop.f32.mrf.mxu0
      %v1093 = vadd.f32 %v801, %v1092
      %v1094 = vpop.f32.mrf.mxu0
      %1095 = vmatprep.mubr.bf16.mxu0 0
      %1096 = vmatmul.mubr.bf16.gmra.mxu0 %v1003
      %v1097 = vpop.f32.mrf.mxu0
      %v1098 = vadd.f32 %v806, %v1097
      %v1099 = vpop.f32.mrf.mxu0
      %v1100 = vpop.f32.mrf.mxu0
      %v1101 = vadd.f32 %v809, %v1100
      %v1102 = vpop.f32.mrf.mxu0
      %1103 = vmatprep.mubr.bf16.mxu0 0
      %1104 = vmatmul.mubr.bf16.gmra.mxu0 %v1006
      %v1105 = vpop.f32.mrf.mxu0
      %v1106 = vadd.f32 %v814, %v1105
      %v1107 = vpop.f32.mrf.mxu0
      %v1108 = vpop.f32.mrf.mxu0
      %v1109 = vadd.f32 %v817, %v1108
      %v1110 = vpop.f32.mrf.mxu0
      %1111 = vmatprep.mubr.bf16.mxu0 0
      %1112 = vmatmul.mubr.bf16.gmra.mxu0 %v1009
      %v1113 = vpop.f32.mrf.mxu0
      %v1114 = vadd.f32 %v822, %v1113
      %v1115 = vpop.f32.mrf.mxu0
      %v1116 = vpop.f32.mrf.mxu0
      %v1117 = vadd.f32 %v825, %v1116
      %v1118 = vpop.f32.mrf.mxu0
      %1119 = vmatprep.mubr.bf16.mxu0 0
      %1120 = vmatmul.mubr.bf16.gmra.mxu0 %v1012
      %v1121 = vpop.f32.mrf.mxu0
      %v1122 = vadd.f32 %v830, %v1121
      %v1123 = vpop.f32.mrf.mxu0
      %v1124 = vpop.f32.mrf.mxu0
      %v1125 = vadd.f32 %v833, %v1124
      %v1126 = vpop.f32.mrf.mxu0
      %1127 = vmatprep.mubr.bf16.mxu0 0
      %1128 = vmatmul.mubr.bf16.gmra.mxu0 %v1015
      %v1129 = vpop.f32.mrf.mxu0
      %v1130 = vadd.f32 %v838, %v1129
      %v1131 = vpop.f32.mrf.mxu0
      %v1132 = vpop.f32.mrf.mxu0
      %v1133 = vadd.f32 %v841, %v1132
      %v1134 = vpop.f32.mrf.mxu0
      %1135 = vmatprep.mubr.bf16.mxu0 0
      %1136 = vmatmul.mubr.bf16.gmra.mxu0 %v1018
      %v1137 = vpop.f32.mrf.mxu0
      %v1138 = vadd.f32 %v846, %v1137
      %v1139 = vpop.f32.mrf.mxu0
      %v1140 = vpop.f32.mrf.mxu0
      %v1141 = vadd.f32 %v849, %v1140
      %v1142 = vpop.f32.mrf.mxu0
      %1143 = vmatprep.mubr.bf16.mxu0 0
      %1144 = vmatmul.mubr.bf16.gmra.mxu0 %v1021
      %v1145 = vpop.f32.mrf.mxu0
      %v1146 = vadd.f32 %v854, %v1145
      %v1147 = vpop.f32.mrf.mxu0
      %v1148 = vpop.f32.mrf.mxu0
      %v1149 = vadd.f32 %v857, %v1148
      %v1150 = vpop.f32.mrf.mxu0
      %1151 = vmatprep.mubr.bf16.mxu0 0
      %1152 = vmatmul.mubr.bf16.gmra.mxu0 %v1024
      %v1153 = vpop.f32.mrf.mxu0
      %v1154 = vadd.f32 %v862, %v1153
      %v1155 = vpop.f32.mrf.mxu0
      %v1156 = vpop.f32.mrf.mxu0
      %v1157 = vadd.f32 %v865, %v1156
      %v1158 = vpop.f32.mrf.mxu0
      %1159 = vmatprep.mubr.bf16.mxu0 0
      %1160 = vmatmul.mubr.bf16.gmra.mxu0 %v1027
      %v1161 = vpop.f32.mrf.mxu0
      %v1162 = vadd.f32 %v870, %v1161
      %v1163 = vpop.f32.mrf.mxu0
      %v1164 = vpop.f32.mrf.mxu0
      %v1165 = vadd.f32 %v873, %v1164
      %v1166 = vpop.f32.mrf.mxu0
      %1167 = vmatprep.mubr.bf16.mxu0 0
      %1168 = vmatmul.mubr.bf16.gmra.mxu0 %v1030
      %v1169 = vpop.f32.mrf.mxu0
      %v1170 = vadd.f32 %v878, %v1169
      %v1171 = vpop.f32.mrf.mxu0
      %v1172 = vpop.f32.mrf.mxu0
      %v1173 = vadd.f32 %v881, %v1172
      %v1174 = vpop.f32.mrf.mxu0
      %1175 = vmatprep.mubr.bf16.mxu0 0
      %1176 = vmatmul.mubr.bf16.gmra.mxu0 %v1033
      %v1177 = vpop.f32.mrf.mxu0
      %v1178 = vadd.f32 %v886, %v1177
      %v1179 = vpop.f32.mrf.mxu0
      %v1180 = vpop.f32.mrf.mxu0
      %v1181 = vadd.f32 %v889, %v1180
      %v1182 = vpop.f32.mrf.mxu0
      %1183 = vmatprep.mubr.bf16.mxu0 0
      %1184 = vmatmul.mubr.bf16.gmra.mxu0 %v1036
      %v1185 = vpop.f32.mrf.mxu0
      %v1186 = vadd.f32 %v894, %v1185
      %v1187 = vpop.f32.mrf.mxu0
      %v1188 = vpop.f32.mrf.mxu0
      %v1189 = vadd.f32 %v897, %v1188
      %v1190 = vpop.f32.mrf.mxu0
      %1191 = vmatprep.mubr.bf16.mxu0 0
      %1192 = vmatmul.mubr.bf16.gmra.mxu0 %v1039
      %v1193 = vpop.f32.mrf.mxu0
      %v1194 = vadd.f32 %v902, %v1193
      %v1195 = vpop.f32.mrf.mxu0
      %v1196 = vpop.f32.mrf.mxu0
      %v1197 = vadd.f32 %v905, %v1196
      %v1198 = vpop.f32.mrf.mxu0
      %1199 = vmatprep.mubr.bf16.mxu0 0
      %1200 = vmatmul.mubr.bf16.gmra.mxu0 %v1042
      %v1201 = vpop.f32.mrf.mxu0
      %v1202 = vadd.f32 %v910, %v1201
      %v1203 = vpop.f32.mrf.mxu0
      %v1204 = vpop.f32.mrf.mxu0
      %v1205 = vadd.f32 %v913, %v1204
      %v1206 = vpop.f32.mrf.mxu0
      %1207 = vdwg.mxu0
      %vm1224 = vcmask 1042432
      %vm1225 = vcmask 1046532
      %vm1226 = vmor %vm1224, %vm1225
      %v1227 = vrot.slane %v210, 5
      %v1228 = vrot.slane %v1227, 4
      %v1229 = vrot.slane %v211, 5
      %v1230 = vsel %vm1226, %v1228, %v1229
      %v1231 = vrot.slane %v1229, 4
      %v1232 = vrot.slane %v212, 5
      %v1233 = vsel %vm1226, %v1231, %v1232
      %v1234 = vrot.slane %v213, 5
      %v1235 = vrot.slane %v1234, 4
      %v1236 = vrot.slane %v214, 5
      %v1237 = vsel %vm1226, %v1235, %v1236
      %v1238 = vrot.slane %v1236, 4
      %v1239 = vrot.slane %v215, 5
      %v1240 = vsel %vm1226, %v1238, %v1239
      %v1241 = vrot.slane %v216, 5
      %v1242 = vrot.slane %v1241, 4
      %v1243 = vrot.slane %v217, 5
      %v1244 = vsel %vm1226, %v1242, %v1243
      %v1245 = vrot.slane %v1243, 4
      %v1246 = vrot.slane %v218, 5
      %v1247 = vsel %vm1226, %v1245, %v1246
      %v1248 = vrot.slane %v219, 5
      %v1249 = vrot.slane %v1248, 4
      %v1250 = vrot.slane %v220, 5
      %v1251 = vsel %vm1226, %v1249, %v1250
      %v1252 = vrot.slane %v1250, 4
      %v1253 = vrot.slane %v221, 5
      %v1254 = vsel %vm1226, %v1252, %v1253
      %v1255 = vrot.slane %v222, 5
      %v1256 = vrot.slane %v1255, 4
      %v1257 = vrot.slane %v223, 5
      %v1258 = vsel %vm1226, %v1256, %v1257
      %v1259 = vrot.slane %v1257, 4
      %v1260 = vrot.slane %v224, 5
      %v1261 = vsel %vm1226, %v1259, %v1260
      %v1262 = vrot.slane %v225, 5
      %v1263 = vrot.slane %v1262, 4
      %v1264 = vrot.slane %v226, 5
      %v1265 = vsel %vm1226, %v1263, %v1264
      %v1266 = vrot.slane %v1264, 4
      %v1267 = vrot.slane %v227, 5
      %v1268 = vsel %vm1226, %v1266, %v1267
      %v1269 = vrot.slane %v228, 5
      %v1270 = vrot.slane %v1269, 4
      %v1271 = vrot.slane %v229, 5
      %v1272 = vsel %vm1226, %v1270, %v1271
      %v1273 = vrot.slane %v1271, 4
      %v1274 = vrot.slane %v230, 5
      %v1275 = vsel %vm1226, %v1273, %v1274
      %v1276 = vrot.slane %v231, 5
      %v1277 = vrot.slane %v1276, 4
      %v1278 = vrot.slane %v232, 5
      %v1279 = vsel %vm1226, %v1277, %v1278
      %v1280 = vrot.slane %v1278, 4
      %v1281 = vrot.slane %v233, 5
      %v1282 = vsel %vm1226, %v1280, %v1281
      %v1283 = vrot.slane %v234, 5
      %v1284 = vrot.slane %v1283, 4
      %v1285 = vrot.slane %v235, 5
      %v1286 = vsel %vm1226, %v1284, %v1285
      %v1287 = vrot.slane %v1285, 4
      %v1288 = vrot.slane %v236, 5
      %v1289 = vsel %vm1226, %v1287, %v1288
      %v1290 = vrot.slane %v237, 5
      %v1291 = vrot.slane %v1290, 4
      %v1292 = vrot.slane %v238, 5
      %v1293 = vsel %vm1226, %v1291, %v1292
      %v1294 = vrot.slane %v1292, 4
      %v1295 = vrot.slane %v239, 5
      %v1296 = vsel %vm1226, %v1294, %v1295
      %v1297 = vrot.slane %v240, 5
      %v1298 = vrot.slane %v1297, 4
      %v1299 = vrot.slane %v241, 5
      %v1300 = vsel %vm1226, %v1298, %v1299
      %v1301 = vrot.slane %v1299, 4
      %v1302 = vrot.slane %v242, 5
      %v1303 = vsel %vm1226, %v1301, %v1302
      %v1304 = vrot.slane %v243, 5
      %v1305 = vrot.slane %v1304, 4
      %v1306 = vrot.slane %v244, 5
      %v1307 = vsel %vm1226, %v1305, %v1306
      %v1308 = vrot.slane %v1306, 4
      %v1309 = vrot.slane %v245, 5
      %v1310 = vsel %vm1226, %v1308, %v1309
      %v1311 = vrot.slane %v246, 5
      %v1312 = vrot.slane %v1311, 4
      %v1313 = vrot.slane %v247, 5
      %v1314 = vsel %vm1226, %v1312, %v1313
      %v1315 = vrot.slane %v1313, 4
      %v1316 = vrot.slane %v248, 5
      %v1317 = vsel %vm1226, %v1315, %v1316
      %v1318 = vrot.slane %v249, 5
      %v1319 = vrot.slane %v1318, 4
      %v1320 = vrot.slane %v250, 5
      %v1321 = vsel %vm1226, %v1319, %v1320
      %v1322 = vrot.slane %v1320, 4
      %v1323 = vrot.slane %v251, 5
      %v1324 = vsel %vm1226, %v1322, %v1323
      %v1325 = vrot.slane %v252, 5
      %v1326 = vrot.slane %v1325, 4
      %v1327 = vrot.slane %v253, 5
      %v1328 = vsel %vm1226, %v1326, %v1327
      %v1329 = vrot.slane %v1327, 4
      %v1330 = vrot.slane %v254, 5
      %v1331 = vsel %vm1226, %v1329, %v1330
      %v1332 = vrot.slane %v255, 5
      %v1333 = vrot.slane %v1332, 4
      %v1334 = vrot.slane %v256, 5
      %v1335 = vsel %vm1226, %v1333, %v1334
      %v1336 = vrot.slane %v1334, 4
      %v1337 = vrot.slane %v257, 5
      %v1338 = vsel %vm1226, %v1336, %v1337
      %s1339 = scalar_lea.vmem %s1, 8
      %v1340 = vld [vmem:[%s1339] sm:$0xf]
      %v1341 = vunpack.c.l.b16 %v1230
      %v1342 = vunpack.c.l.b16 %v1233
      %v1343 = vunpack.c.l.b16 %v1237
      %v1344 = vunpack.c.l.b16 %v1240
      %v1345 = vunpack.c.l.b16 %v1244
      %v1346 = vunpack.c.l.b16 %v1247
      %v1347 = vunpack.c.l.b16 %v1251
      %v1348 = vunpack.c.l.b16 %v1254
      %v1349 = vunpack.c.l.b16 %v1258
      %v1350 = vunpack.c.l.b16 %v1261
      %v1351 = vunpack.c.l.b16 %v1265
      %v1352 = vunpack.c.l.b16 %v1268
      %v1353 = vunpack.c.l.b16 %v1272
      %v1354 = vunpack.c.l.b16 %v1275
      %v1355 = vunpack.c.l.b16 %v1279
      %v1356 = vunpack.c.l.b16 %v1282
      %v1357 = vunpack.c.l.b16 %v1286
      %v1358 = vunpack.c.l.b16 %v1289
      %v1359 = vunpack.c.l.b16 %v1293
      %v1360 = vunpack.c.l.b16 %v1296
      %v1361 = vunpack.c.l.b16 %v1300
      %v1362 = vunpack.c.l.b16 %v1303
      %v1363 = vunpack.c.l.b16 %v1307
      %v1364 = vunpack.c.l.b16 %v1310
      %v1365 = vunpack.c.l.b16 %v1314
      %v1366 = vunpack.c.l.b16 %v1317
      %v1367 = vunpack.c.l.b16 %v1321
      %v1368 = vunpack.c.l.b16 %v1324
      %v1369 = vunpack.c.l.b16 %v1328
      %v1370 = vunpack.c.l.b16 %v1331
      %v1371 = vunpack.c.l.b16 %v1335
      %v1372 = vunpack.c.l.b16 %v1338
      %v1373 = vpack.c.b16 %v1342, %v1341
      %v1374 = vpack.c.b16 %v1344, %v1343
      %v1375 = vpack.c.b16 %v1346, %v1345
      %v1376 = vpack.c.b16 %v1348, %v1347
      %v1377 = vpack.c.b16 %v1350, %v1349
      %v1378 = vpack.c.b16 %v1352, %v1351
      %v1379 = vpack.c.b16 %v1354, %v1353
      %v1380 = vpack.c.b16 %v1356, %v1355
      %v1381 = vpack.c.b16 %v1358, %v1357
      %v1382 = vpack.c.b16 %v1360, %v1359
      %v1383 = vpack.c.b16 %v1362, %v1361
      %v1384 = vpack.c.b16 %v1364, %v1363
      %v1385 = vpack.c.b16 %v1366, %v1365
      %v1386 = vpack.c.b16 %v1368, %v1367
      %v1387 = vpack.c.b16 %v1370, %v1369
      %v1388 = vpack.c.b16 %v1372, %v1371
      %v1390 = vsel %vm702, %v1373, 0
      %v1393 = vsel %vm702, %v1374, 0
      %v1396 = vsel %vm702, %v1375, 0
      %v1399 = vsel %vm702, %v1376, 0
      %v1402 = vsel %vm702, %v1377, 0
      %v1405 = vsel %vm702, %v1378, 0
      %v1408 = vsel %vm702, %v1379, 0
      %v1411 = vsel %vm702, %v1380, 0
      %v1414 = vsel %vm702, %v1381, 0
      %v1417 = vsel %vm702, %v1382, 0
      %v1420 = vsel %vm702, %v1383, 0
      %v1423 = vsel %vm702, %v1384, 0
      %v1426 = vsel %vm702, %v1385, 0
      %v1429 = vsel %vm702, %v1386, 0
      %v1432 = vsel %vm702, %v1387, 0
      %v1435 = vsel %vm702, %v1388, 0
      %v1438 = vsel %vm751, %v1340, 0
      %1440 = vmatprep.subr.bf16.mxu0 0
      %1441 = vmatpush1.bf16.msra.mxu0 0
      %1442 = vmatprep.subr.bf16.mxu0 0
      %1443 = vmatpush1.bf16.msra.mxu0 0
      %1444 = vmatprep.subr.bf16.mxu0 0
      %1445 = vmatpush1.bf16.msra.mxu0 0
      %1446 = vmatprep.subr.bf16.mxu0 0
      %1447 = vmatpush1.bf16.msra.mxu0 0
      %1448 = vmatprep.subr.bf16.mxu0 0
      %1449 = vmatpush1.bf16.msra.mxu0 0
      %1450 = vmatprep.subr.bf16.mxu0 0
      %1451 = vmatpush1.bf16.msra.mxu0 0
      %1452 = vmatprep.subr.bf16.mxu0 0
      %1453 = vmatpush1.bf16.msra.mxu0 0
      %1454 = vmatprep.subr.bf16.mxu0 0
      %1455 = vmatpush1.bf16.msra.mxu0 %v1438
      %1456 = vmatprep.subr.bf16.mxu0 0
      %1457 = vmatpush2.bf16.msra.mxu0 0
      %1458 = vmatprep.subr.bf16.mxu0 0
      %1459 = vmatpush2.bf16.msra.mxu0 0
      %1460 = vmatprep.subr.bf16.mxu0 0
      %1461 = vmatpush2.bf16.msra.mxu0 0
      %1462 = vmatprep.subr.bf16.mxu0 0
      %1463 = vmatpush2.bf16.msra.mxu0 0
      %1464 = vmatprep.subr.bf16.mxu0 0
      %1465 = vmatpush2.bf16.msra.mxu0 0
      %1466 = vmatprep.subr.bf16.mxu0 0
      %1467 = vmatpush2.bf16.msra.mxu0 0
      %1468 = vmatprep.subr.bf16.mxu0 0
      %1469 = vmatpush2.bf16.msra.mxu0 0
      %1470 = vmatprep.subr.bf16.mxu0 0
      %1471 = vmatpush2.bf16.msra.mxu0 0
      %1472 = vmatprep.mubr.bf16.mxu0 0
      %1473 = vmatmul.mubr.bf16.gmra.mxu0 %v1390
      %v1474 = vpop.f32.mrf.mxu0
      %v1475 = vadd.f32 0.0, %v1474
      %v1476 = vpop.f32.mrf.mxu0
      %v1477 = vpop.f32.mrf.mxu0
      %v1478 = vadd.f32 0.0, %v1477
      %v1479 = vpop.f32.mrf.mxu0
      %1480 = vmatprep.mubr.bf16.mxu0 0
      %1481 = vmatmul.mubr.bf16.gmra.mxu0 %v1393
      %v1482 = vpop.f32.mrf.mxu0
      %v1483 = vadd.f32 0.0, %v1482
      %v1484 = vpop.f32.mrf.mxu0
      %v1485 = vpop.f32.mrf.mxu0
      %v1486 = vadd.f32 0.0, %v1485
      %v1487 = vpop.f32.mrf.mxu0
      %1488 = vmatprep.mubr.bf16.mxu0 0
      %1489 = vmatmul.mubr.bf16.gmra.mxu0 %v1396
      %v1490 = vpop.f32.mrf.mxu0
      %v1491 = vadd.f32 0.0, %v1490
      %v1492 = vpop.f32.mrf.mxu0
      %v1493 = vpop.f32.mrf.mxu0
      %v1494 = vadd.f32 0.0, %v1493
      %v1495 = vpop.f32.mrf.mxu0
      %1496 = vmatprep.mubr.bf16.mxu0 0
      %1497 = vmatmul.mubr.bf16.gmra.mxu0 %v1399
      %v1498 = vpop.f32.mrf.mxu0
      %v1499 = vadd.f32 0.0, %v1498
      %v1500 = vpop.f32.mrf.mxu0
      %v1501 = vpop.f32.mrf.mxu0
      %v1502 = vadd.f32 0.0, %v1501
      %v1503 = vpop.f32.mrf.mxu0
      %1504 = vmatprep.mubr.bf16.mxu0 0
      %1505 = vmatmul.mubr.bf16.gmra.mxu0 %v1402
      %v1506 = vpop.f32.mrf.mxu0
      %v1507 = vadd.f32 0.0, %v1506
      %v1508 = vpop.f32.mrf.mxu0
      %v1509 = vpop.f32.mrf.mxu0
      %v1510 = vadd.f32 0.0, %v1509
      %v1511 = vpop.f32.mrf.mxu0
      %1512 = vmatprep.mubr.bf16.mxu0 0
      %1513 = vmatmul.mubr.bf16.gmra.mxu0 %v1405
      %v1514 = vpop.f32.mrf.mxu0
      %v1515 = vadd.f32 0.0, %v1514
      %v1516 = vpop.f32.mrf.mxu0
      %v1517 = vpop.f32.mrf.mxu0
      %v1518 = vadd.f32 0.0, %v1517
      %v1519 = vpop.f32.mrf.mxu0
      %1520 = vmatprep.mubr.bf16.mxu0 0
      %1521 = vmatmul.mubr.bf16.gmra.mxu0 %v1408
      %v1522 = vpop.f32.mrf.mxu0
      %v1523 = vadd.f32 0.0, %v1522
      %v1524 = vpop.f32.mrf.mxu0
      %v1525 = vpop.f32.mrf.mxu0
      %v1526 = vadd.f32 0.0, %v1525
      %v1527 = vpop.f32.mrf.mxu0
      %1528 = vmatprep.mubr.bf16.mxu0 0
      %1529 = vmatmul.mubr.bf16.gmra.mxu0 %v1411
      %v1530 = vpop.f32.mrf.mxu0
      %v1531 = vadd.f32 0.0, %v1530
      %v1532 = vpop.f32.mrf.mxu0
      %v1533 = vpop.f32.mrf.mxu0
      %v1534 = vadd.f32 0.0, %v1533
      %v1535 = vpop.f32.mrf.mxu0
      %1536 = vmatprep.mubr.bf16.mxu0 0
      %1537 = vmatmul.mubr.bf16.gmra.mxu0 %v1414
      %v1538 = vpop.f32.mrf.mxu0
      %v1539 = vadd.f32 0.0, %v1538
      %v1540 = vpop.f32.mrf.mxu0
      %v1541 = vpop.f32.mrf.mxu0
      %v1542 = vadd.f32 0.0, %v1541
      %v1543 = vpop.f32.mrf.mxu0
      %1544 = vmatprep.mubr.bf16.mxu0 0
      %1545 = vmatmul.mubr.bf16.gmra.mxu0 %v1417
      %v1546 = vpop.f32.mrf.mxu0
      %v1547 = vadd.f32 0.0, %v1546
      %v1548 = vpop.f32.mrf.mxu0
      %v1549 = vpop.f32.mrf.mxu0
      %v1550 = vadd.f32 0.0, %v1549
      %v1551 = vpop.f32.mrf.mxu0
      %1552 = vmatprep.mubr.bf16.mxu0 0
      %1553 = vmatmul.mubr.bf16.gmra.mxu0 %v1420
      %v1554 = vpop.f32.mrf.mxu0
      %v1555 = vadd.f32 0.0, %v1554
      %v1556 = vpop.f32.mrf.mxu0
      %v1557 = vpop.f32.mrf.mxu0
      %v1558 = vadd.f32 0.0, %v1557
      %v1559 = vpop.f32.mrf.mxu0
      %1560 = vmatprep.mubr.bf16.mxu0 0
      %1561 = vmatmul.mubr.bf16.gmra.mxu0 %v1423
      %v1562 = vpop.f32.mrf.mxu0
      %v1563 = vadd.f32 0.0, %v1562
      %v1564 = vpop.f32.mrf.mxu0
      %v1565 = vpop.f32.mrf.mxu0
      %v1566 = vadd.f32 0.0, %v1565
      %v1567 = vpop.f32.mrf.mxu0
      %1568 = vmatprep.mubr.bf16.mxu0 0
      %1569 = vmatmul.mubr.bf16.gmra.mxu0 %v1426
      %v1570 = vpop.f32.mrf.mxu0
      %v1571 = vadd.f32 0.0, %v1570
      %v1572 = vpop.f32.mrf.mxu0
      %v1573 = vpop.f32.mrf.mxu0
      %v1574 = vadd.f32 0.0, %v1573
      %v1575 = vpop.f32.mrf.mxu0
      %1576 = vmatprep.mubr.bf16.mxu0 0
      %1577 = vmatmul.mubr.bf16.gmra.mxu0 %v1429
      %v1578 = vpop.f32.mrf.mxu0
      %v1579 = vadd.f32 0.0, %v1578
      %v1580 = vpop.f32.mrf.mxu0
      %v1581 = vpop.f32.mrf.mxu0
      %v1582 = vadd.f32 0.0, %v1581
      %v1583 = vpop.f32.mrf.mxu0
      %1584 = vmatprep.mubr.bf16.mxu0 0
      %1585 = vmatmul.mubr.bf16.gmra.mxu0 %v1432
      %v1586 = vpop.f32.mrf.mxu0
      %v1587 = vadd.f32 0.0, %v1586
      %v1588 = vpop.f32.mrf.mxu0
      %v1589 = vpop.f32.mrf.mxu0
      %v1590 = vadd.f32 0.0, %v1589
      %v1591 = vpop.f32.mrf.mxu0
      %1592 = vmatprep.mubr.bf16.mxu0 0
      %1593 = vmatmul.mubr.bf16.gmra.mxu0 %v1435
      %v1594 = vpop.f32.mrf.mxu0
      %v1595 = vadd.f32 0.0, %v1594
      %v1596 = vpop.f32.mrf.mxu0
      %v1597 = vpop.f32.mrf.mxu0
      %v1598 = vadd.f32 0.0, %v1597
      %v1599 = vpop.f32.mrf.mxu0
      %1600 = vdwg.mxu0
      %v1601 = vadd.f32 %v1082, %v1475
      %v1602 = vadd.f32 %v1085, %v1478
      %v1603 = vadd.f32 %v1090, %v1483
      %v1604 = vadd.f32 %v1093, %v1486
      %v1605 = vadd.f32 %v1098, %v1491
      %v1606 = vadd.f32 %v1101, %v1494
      %v1607 = vadd.f32 %v1106, %v1499
      %v1608 = vadd.f32 %v1109, %v1502
      %v1609 = vadd.f32 %v1114, %v1507
      %v1610 = vadd.f32 %v1117, %v1510
      %v1611 = vadd.f32 %v1122, %v1515
      %v1612 = vadd.f32 %v1125, %v1518
      %v1613 = vadd.f32 %v1130, %v1523
      %v1614 = vadd.f32 %v1133, %v1526
      %v1615 = vadd.f32 %v1138, %v1531
      %v1616 = vadd.f32 %v1141, %v1534
      %v1617 = vadd.f32 %v1146, %v1539
      %v1618 = vadd.f32 %v1149, %v1542
      %v1619 = vadd.f32 %v1154, %v1547
      %v1620 = vadd.f32 %v1157, %v1550
      %v1621 = vadd.f32 %v1162, %v1555
      %v1622 = vadd.f32 %v1165, %v1558
      %v1623 = vadd.f32 %v1170, %v1563
      %v1624 = vadd.f32 %v1173, %v1566
      %v1625 = vadd.f32 %v1178, %v1571
      %v1626 = vadd.f32 %v1181, %v1574
      %v1627 = vadd.f32 %v1186, %v1579
      %v1628 = vadd.f32 %v1189, %v1582
      %v1629 = vadd.f32 %v1194, %v1587
      %v1630 = vadd.f32 %v1197, %v1590
      %v1631 = vadd.f32 %v1202, %v1595
      %v1632 = vadd.f32 %v1205, %v1598
      %s1633 = scalar_lea.vmem %s1, 12
      %v1634 = vld [vmem:[%s1633] sm:$0xf]
      %v1637 = vunpack.c.l.b16 %v258
      %v1638 = vunpack.c.l.b16 %v259
      %v1639 = vpack.c.b16 %v1638, %v1637
      %v1641 = vsel %vm702, %v1639, 0
      %v1644 = vsel %vm751, %v1634, 0
      %1646 = vmatprep.subr.bf16.mxu0 0
      %1647 = vmatpush1.bf16.msra.mxu0 0
      %1648 = vmatprep.subr.bf16.mxu0 0
      %1649 = vmatpush1.bf16.msra.mxu0 0
      %1650 = vmatprep.subr.bf16.mxu0 0
      %1651 = vmatpush1.bf16.msra.mxu0 0
      %1652 = vmatprep.subr.bf16.mxu0 0
      %1653 = vmatpush1.bf16.msra.mxu0 0
      %1654 = vmatprep.subr.bf16.mxu0 0
      %1655 = vmatpush1.bf16.msra.mxu0 0
      %1656 = vmatprep.subr.bf16.mxu0 0
      %1657 = vmatpush1.bf16.msra.mxu0 0
      %1658 = vmatprep.subr.bf16.mxu0 0
      %1659 = vmatpush1.bf16.msra.mxu0 0
      %1660 = vmatprep.subr.bf16.mxu0 0
      %1661 = vmatpush1.bf16.msra.mxu0 %v1644
      %1662 = vmatprep.subr.bf16.mxu0 0
      %1663 = vmatpush2.bf16.msra.mxu0 0
      %1664 = vmatprep.subr.bf16.mxu0 0
      %1665 = vmatpush2.bf16.msra.mxu0 0
      %1666 = vmatprep.subr.bf16.mxu0 0
      %1667 = vmatpush2.bf16.msra.mxu0 0
      %1668 = vmatprep.subr.bf16.mxu0 0
      %1669 = vmatpush2.bf16.msra.mxu0 0
      %1670 = vmatprep.subr.bf16.mxu0 0
      %1671 = vmatpush2.bf16.msra.mxu0 0
      %1672 = vmatprep.subr.bf16.mxu0 0
      %1673 = vmatpush2.bf16.msra.mxu0 0
      %1674 = vmatprep.subr.bf16.mxu0 0
      %1675 = vmatpush2.bf16.msra.mxu0 0
      %1676 = vmatprep.subr.bf16.mxu0 0
      %1677 = vmatpush2.bf16.msra.mxu0 0
      %1678 = vmatprep.mubr.bf16.mxu0 0
      %1679 = vmatmul.mubr.bf16.gmra.mxu0 %v1000
      %v1680 = vpop.f32.mrf.mxu0
      %v1681 = vadd.f32 0.0, %v1680
      %v1682 = vpop.f32.mrf.mxu0
      %v1683 = vpop.f32.mrf.mxu0
      %v1684 = vadd.f32 0.0, %v1683
      %v1685 = vpop.f32.mrf.mxu0
      %1686 = vmatprep.mubr.bf16.mxu0 0
      %1687 = vmatmul.mubr.bf16.gmra.mxu0 %v1003
      %v1688 = vpop.f32.mrf.mxu0
      %v1689 = vadd.f32 0.0, %v1688
      %v1690 = vpop.f32.mrf.mxu0
      %v1691 = vpop.f32.mrf.mxu0
      %v1692 = vadd.f32 0.0, %v1691
      %v1693 = vpop.f32.mrf.mxu0
      %1694 = vmatprep.mubr.bf16.mxu0 0
      %1695 = vmatmul.mubr.bf16.gmra.mxu0 %v1006
      %v1696 = vpop.f32.mrf.mxu0
      %v1697 = vadd.f32 0.0, %v1696
      %v1698 = vpop.f32.mrf.mxu0
      %v1699 = vpop.f32.mrf.mxu0
      %v1700 = vadd.f32 0.0, %v1699
      %v1701 = vpop.f32.mrf.mxu0
      %1702 = vmatprep.mubr.bf16.mxu0 0
      %1703 = vmatmul.mubr.bf16.gmra.mxu0 %v1009
      %v1704 = vpop.f32.mrf.mxu0
      %v1705 = vadd.f32 0.0, %v1704
      %v1706 = vpop.f32.mrf.mxu0
      %v1707 = vpop.f32.mrf.mxu0
      %v1708 = vadd.f32 0.0, %v1707
      %v1709 = vpop.f32.mrf.mxu0
      %1710 = vmatprep.mubr.bf16.mxu0 0
      %1711 = vmatmul.mubr.bf16.gmra.mxu0 %v1012
      %v1712 = vpop.f32.mrf.mxu0
      %v1713 = vadd.f32 0.0, %v1712
      %v1714 = vpop.f32.mrf.mxu0
      %v1715 = vpop.f32.mrf.mxu0
      %v1716 = vadd.f32 0.0, %v1715
      %v1717 = vpop.f32.mrf.mxu0
      %1718 = vmatprep.mubr.bf16.mxu0 0
      %1719 = vmatmul.mubr.bf16.gmra.mxu0 %v1015
      %v1720 = vpop.f32.mrf.mxu0
      %v1721 = vadd.f32 0.0, %v1720
      %v1722 = vpop.f32.mrf.mxu0
      %v1723 = vpop.f32.mrf.mxu0
      %v1724 = vadd.f32 0.0, %v1723
      %v1725 = vpop.f32.mrf.mxu0
      %1726 = vmatprep.mubr.bf16.mxu0 0
      %1727 = vmatmul.mubr.bf16.gmra.mxu0 %v1018
      %v1728 = vpop.f32.mrf.mxu0
      %v1729 = vadd.f32 0.0, %v1728
      %v1730 = vpop.f32.mrf.mxu0
      %v1731 = vpop.f32.mrf.mxu0
      %v1732 = vadd.f32 0.0, %v1731
      %v1733 = vpop.f32.mrf.mxu0
      %1734 = vmatprep.mubr.bf16.mxu0 0
      %1735 = vmatmul.mubr.bf16.gmra.mxu0 %v1021
      %v1736 = vpop.f32.mrf.mxu0
      %v1737 = vadd.f32 0.0, %v1736
      %v1738 = vpop.f32.mrf.mxu0
      %v1739 = vpop.f32.mrf.mxu0
      %v1740 = vadd.f32 0.0, %v1739
      %v1741 = vpop.f32.mrf.mxu0
      %1742 = vmatprep.mubr.bf16.mxu0 0
      %1743 = vmatmul.mubr.bf16.gmra.mxu0 %v1024
      %v1744 = vpop.f32.mrf.mxu0
      %v1745 = vadd.f32 0.0, %v1744
      %v1746 = vpop.f32.mrf.mxu0
      %v1747 = vpop.f32.mrf.mxu0
      %v1748 = vadd.f32 0.0, %v1747
      %v1749 = vpop.f32.mrf.mxu0
      %1750 = vmatprep.mubr.bf16.mxu0 0
      %1751 = vmatmul.mubr.bf16.gmra.mxu0 %v1027
      %v1752 = vpop.f32.mrf.mxu0
      %v1753 = vadd.f32 0.0, %v1752
      %v1754 = vpop.f32.mrf.mxu0
      %v1755 = vpop.f32.mrf.mxu0
      %v1756 = vadd.f32 0.0, %v1755
      %v1757 = vpop.f32.mrf.mxu0
      %1758 = vmatprep.mubr.bf16.mxu0 0
      %1759 = vmatmul.mubr.bf16.gmra.mxu0 %v1030
      %v1760 = vpop.f32.mrf.mxu0
      %v1761 = vadd.f32 0.0, %v1760
      %v1762 = vpop.f32.mrf.mxu0
      %v1763 = vpop.f32.mrf.mxu0
      %v1764 = vadd.f32 0.0, %v1763
      %v1765 = vpop.f32.mrf.mxu0
      %1766 = vmatprep.mubr.bf16.mxu0 0
      %1767 = vmatmul.mubr.bf16.gmra.mxu0 %v1033
      %v1768 = vpop.f32.mrf.mxu0
      %v1769 = vadd.f32 0.0, %v1768
      %v1770 = vpop.f32.mrf.mxu0
      %v1771 = vpop.f32.mrf.mxu0
      %v1772 = vadd.f32 0.0, %v1771
      %v1773 = vpop.f32.mrf.mxu0
      %1774 = vmatprep.mubr.bf16.mxu0 0
      %1775 = vmatmul.mubr.bf16.gmra.mxu0 %v1036
      %v1776 = vpop.f32.mrf.mxu0
      %v1777 = vadd.f32 0.0, %v1776
      %v1778 = vpop.f32.mrf.mxu0
      %v1779 = vpop.f32.mrf.mxu0
      %v1780 = vadd.f32 0.0, %v1779
      %v1781 = vpop.f32.mrf.mxu0
      %1782 = vmatprep.mubr.bf16.mxu0 0
      %1783 = vmatmul.mubr.bf16.gmra.mxu0 %v1039
      %v1784 = vpop.f32.mrf.mxu0
      %v1785 = vadd.f32 0.0, %v1784
      %v1786 = vpop.f32.mrf.mxu0
      %v1787 = vpop.f32.mrf.mxu0
      %v1788 = vadd.f32 0.0, %v1787
      %v1789 = vpop.f32.mrf.mxu0
      %1790 = vmatprep.mubr.bf16.mxu0 0
      %1791 = vmatmul.mubr.bf16.gmra.mxu0 %v1042
      %v1792 = vpop.f32.mrf.mxu0
      %v1793 = vadd.f32 0.0, %v1792
      %v1794 = vpop.f32.mrf.mxu0
      %v1795 = vpop.f32.mrf.mxu0
      %v1796 = vadd.f32 0.0, %v1795
      %v1797 = vpop.f32.mrf.mxu0
      %1798 = vmatprep.mubr.bf16.mxu0 0
      %1799 = vmatmul.mubr.bf16.gmra.mxu0 %v1641
      %v1800 = vpop.f32.mrf.mxu0
      %v1801 = vadd.f32 0.0, %v1800
      %v1802 = vpop.f32.mrf.mxu0
      %v1803 = vpop.f32.mrf.mxu0
      %v1804 = vadd.f32 0.0, %v1803
      %v1805 = vpop.f32.mrf.mxu0
      %1806 = vdwg.mxu0
      %v1807 = vadd.f32 %v1601, %v1681
      %v1808 = vadd.f32 %v1602, %v1684
      %v1809 = vadd.f32 %v1603, %v1689
      %v1810 = vadd.f32 %v1604, %v1692
      %v1811 = vadd.f32 %v1605, %v1697
      %v1812 = vadd.f32 %v1606, %v1700
      %v1813 = vadd.f32 %v1607, %v1705
      %v1814 = vadd.f32 %v1608, %v1708
      %v1815 = vadd.f32 %v1609, %v1713
      %v1816 = vadd.f32 %v1610, %v1716
      %v1817 = vadd.f32 %v1611, %v1721
      %v1818 = vadd.f32 %v1612, %v1724
      %v1819 = vadd.f32 %v1613, %v1729
      %v1820 = vadd.f32 %v1614, %v1732
      %v1821 = vadd.f32 %v1615, %v1737
      %v1822 = vadd.f32 %v1616, %v1740
      %v1823 = vadd.f32 %v1617, %v1745
      %v1824 = vadd.f32 %v1618, %v1748
      %v1825 = vadd.f32 %v1619, %v1753
      %v1826 = vadd.f32 %v1620, %v1756
      %v1827 = vadd.f32 %v1621, %v1761
      %v1828 = vadd.f32 %v1622, %v1764
      %v1829 = vadd.f32 %v1623, %v1769
      %v1830 = vadd.f32 %v1624, %v1772
      %v1831 = vadd.f32 %v1625, %v1777
      %v1832 = vadd.f32 %v1626, %v1780
      %v1833 = vadd.f32 %v1627, %v1785
      %v1834 = vadd.f32 %v1628, %v1788
      %v1835 = vadd.f32 %v1629, %v1793
      %v1836 = vadd.f32 %v1630, %v1796
      %v1837 = vadd.f32 %v1631, %v1801
      %v1838 = vadd.f32 %v1632, %v1804
      %v1840 = vshrl.u32 %v258, 16
      %v1842 = vrot.slane %v1840, 4
      %v1843 = vshll.u32 %v258, 16
      %v1845 = vrot.slane %v1843, 5
      %v1846 = vor.u32 %v1842, %v1845
      %v1847 = vrot.slane %v1846, 4
      %v1849 = vshll.u32 %v259, 16
      %v1851 = vrot.slane %v1849, 5
      %v1852 = vsel %vm267, %v1847, %v1851
      %v1853 = vshrl.u32 %v259, 16
      %v1855 = vrot.slane %v1853, 4
      %v1856 = vor.u32 %v1855, %v1851
      %v1857 = vrot.slane %v1856, 4
      %v1859 = vshll.u32 %v260, 16
      %v1861 = vrot.slane %v1859, 5
      %v1862 = vsel %vm267, %v1857, %v1861
      %s1863 = scalar_lea.vmem %s1, 16
      %v1864 = vld [vmem:[%s1863] sm:$0xf]
      %v1865 = vunpack.c.l.b16 %v1852
      %v1866 = vunpack.c.l.b16 %v1862
      %v1867 = vpack.c.b16 %v1866, %v1865
      %v1869 = vsel %vm702, %v1867, 0
      %v1872 = vsel %vm751, %v1864, 0
      %1874 = vmatprep.subr.bf16.mxu0 0
      %1875 = vmatpush1.bf16.msra.mxu0 0
      %1876 = vmatprep.subr.bf16.mxu0 0
      %1877 = vmatpush1.bf16.msra.mxu0 0
      %1878 = vmatprep.subr.bf16.mxu0 0
      %1879 = vmatpush1.bf16.msra.mxu0 0
      %1880 = vmatprep.subr.bf16.mxu0 0
      %1881 = vmatpush1.bf16.msra.mxu0 0
      %1882 = vmatprep.subr.bf16.mxu0 0
      %1883 = vmatpush1.bf16.msra.mxu0 0
      %1884 = vmatprep.subr.bf16.mxu0 0
      %1885 = vmatpush1.bf16.msra.mxu0 0
      %1886 = vmatprep.subr.bf16.mxu0 0
      %1887 = vmatpush1.bf16.msra.mxu0 0
      %1888 = vmatprep.subr.bf16.mxu0 0
      %1889 = vmatpush1.bf16.msra.mxu0 %v1872
      %1890 = vmatprep.subr.bf16.mxu0 0
      %1891 = vmatpush2.bf16.msra.mxu0 0
      %1892 = vmatprep.subr.bf16.mxu0 0
      %1893 = vmatpush2.bf16.msra.mxu0 0
      %1894 = vmatprep.subr.bf16.mxu0 0
      %1895 = vmatpush2.bf16.msra.mxu0 0
      %1896 = vmatprep.subr.bf16.mxu0 0
      %1897 = vmatpush2.bf16.msra.mxu0 0
      %1898 = vmatprep.subr.bf16.mxu0 0
      %1899 = vmatpush2.bf16.msra.mxu0 0
      %1900 = vmatprep.subr.bf16.mxu0 0
      %1901 = vmatpush2.bf16.msra.mxu0 0
      %1902 = vmatprep.subr.bf16.mxu0 0
      %1903 = vmatpush2.bf16.msra.mxu0 0
      %1904 = vmatprep.subr.bf16.mxu0 0
      %1905 = vmatpush2.bf16.msra.mxu0 0
      %1906 = vmatprep.mubr.bf16.mxu0 0
      %1907 = vmatmul.mubr.bf16.gmra.mxu0 %v707
      %v1908 = vpop.f32.mrf.mxu0
      %v1909 = vadd.f32 0.0, %v1908
      %v1910 = vpop.f32.mrf.mxu0
      %v1911 = vpop.f32.mrf.mxu0
      %v1912 = vadd.f32 0.0, %v1911
      %v1913 = vpop.f32.mrf.mxu0
      %1914 = vmatprep.mubr.bf16.mxu0 0
      %1915 = vmatmul.mubr.bf16.gmra.mxu0 %v710
      %v1916 = vpop.f32.mrf.mxu0
      %v1917 = vadd.f32 0.0, %v1916
      %v1918 = vpop.f32.mrf.mxu0
      %v1919 = vpop.f32.mrf.mxu0
      %v1920 = vadd.f32 0.0, %v1919
      %v1921 = vpop.f32.mrf.mxu0
      %1922 = vmatprep.mubr.bf16.mxu0 0
      %1923 = vmatmul.mubr.bf16.gmra.mxu0 %v713
      %v1924 = vpop.f32.mrf.mxu0
      %v1925 = vadd.f32 0.0, %v1924
      %v1926 = vpop.f32.mrf.mxu0
      %v1927 = vpop.f32.mrf.mxu0
      %v1928 = vadd.f32 0.0, %v1927
      %v1929 = vpop.f32.mrf.mxu0
      %1930 = vmatprep.mubr.bf16.mxu0 0
      %1931 = vmatmul.mubr.bf16.gmra.mxu0 %v716
      %v1932 = vpop.f32.mrf.mxu0
      %v1933 = vadd.f32 0.0, %v1932
      %v1934 = vpop.f32.mrf.mxu0
      %v1935 = vpop.f32.mrf.mxu0
      %v1936 = vadd.f32 0.0, %v1935
      %v1937 = vpop.f32.mrf.mxu0
      %1938 = vmatprep.mubr.bf16.mxu0 0
      %1939 = vmatmul.mubr.bf16.gmra.mxu0 %v719
      %v1940 = vpop.f32.mrf.mxu0
      %v1941 = vadd.f32 0.0, %v1940
      %v1942 = vpop.f32.mrf.mxu0
      %v1943 = vpop.f32.mrf.mxu0
      %v1944 = vadd.f32 0.0, %v1943
      %v1945 = vpop.f32.mrf.mxu0
      %1946 = vmatprep.mubr.bf16.mxu0 0
      %1947 = vmatmul.mubr.bf16.gmra.mxu0 %v722
      %v1948 = vpop.f32.mrf.mxu0
      %v1949 = vadd.f32 0.0, %v1948
      %v1950 = vpop.f32.mrf.mxu0
      %v1951 = vpop.f32.mrf.mxu0
      %v1952 = vadd.f32 0.0, %v1951
      %v1953 = vpop.f32.mrf.mxu0
      %1954 = vmatprep.mubr.bf16.mxu0 0
      %1955 = vmatmul.mubr.bf16.gmra.mxu0 %v725
      %v1956 = vpop.f32.mrf.mxu0
      %v1957 = vadd.f32 0.0, %v1956
      %v1958 = vpop.f32.mrf.mxu0
      %v1959 = vpop.f32.mrf.mxu0
      %v1960 = vadd.f32 0.0, %v1959
      %v1961 = vpop.f32.mrf.mxu0
      %1962 = vmatprep.mubr.bf16.mxu0 0
      %1963 = vmatmul.mubr.bf16.gmra.mxu0 %v728
      %v1964 = vpop.f32.mrf.mxu0
      %v1965 = vadd.f32 0.0, %v1964
      %v1966 = vpop.f32.mrf.mxu0
      %v1967 = vpop.f32.mrf.mxu0
      %v1968 = vadd.f32 0.0, %v1967
      %v1969 = vpop.f32.mrf.mxu0
      %1970 = vmatprep.mubr.bf16.mxu0 0
      %1971 = vmatmul.mubr.bf16.gmra.mxu0 %v731
      %v1972 = vpop.f32.mrf.mxu0
      %v1973 = vadd.f32 0.0, %v1972
      %v1974 = vpop.f32.mrf.mxu0
      %v1975 = vpop.f32.mrf.mxu0
      %v1976 = vadd.f32 0.0, %v1975
      %v1977 = vpop.f32.mrf.mxu0
      %1978 = vmatprep.mubr.bf16.mxu0 0
      %1979 = vmatmul.mubr.bf16.gmra.mxu0 %v734
      %v1980 = vpop.f32.mrf.mxu0
      %v1981 = vadd.f32 0.0, %v1980
      %v1982 = vpop.f32.mrf.mxu0
      %v1983 = vpop.f32.mrf.mxu0
      %v1984 = vadd.f32 0.0, %v1983
      %v1985 = vpop.f32.mrf.mxu0
      %1986 = vmatprep.mubr.bf16.mxu0 0
      %1987 = vmatmul.mubr.bf16.gmra.mxu0 %v737
      %v1988 = vpop.f32.mrf.mxu0
      %v1989 = vadd.f32 0.0, %v1988
      %v1990 = vpop.f32.mrf.mxu0
      %v1991 = vpop.f32.mrf.mxu0
      %v1992 = vadd.f32 0.0, %v1991
      %v1993 = vpop.f32.mrf.mxu0
      %1994 = vmatprep.mubr.bf16.mxu0 0
      %1995 = vmatmul.mubr.bf16.gmra.mxu0 %v740
      %v1996 = vpop.f32.mrf.mxu0
      %v1997 = vadd.f32 0.0, %v1996
      %v1998 = vpop.f32.mrf.mxu0
      %v1999 = vpop.f32.mrf.mxu0
      %v2000 = vadd.f32 0.0, %v1999
      %v2001 = vpop.f32.mrf.mxu0
      %2002 = vmatprep.mubr.bf16.mxu0 0
      %2003 = vmatmul.mubr.bf16.gmra.mxu0 %v743
      %v2004 = vpop.f32.mrf.mxu0
      %v2005 = vadd.f32 0.0, %v2004
      %v2006 = vpop.f32.mrf.mxu0
      %v2007 = vpop.f32.mrf.mxu0
      %v2008 = vadd.f32 0.0, %v2007
      %v2009 = vpop.f32.mrf.mxu0
      %2010 = vmatprep.mubr.bf16.mxu0 0
      %2011 = vmatmul.mubr.bf16.gmra.mxu0 %v746
      %v2012 = vpop.f32.mrf.mxu0
      %v2013 = vadd.f32 0.0, %v2012
      %v2014 = vpop.f32.mrf.mxu0
      %v2015 = vpop.f32.mrf.mxu0
      %v2016 = vadd.f32 0.0, %v2015
      %v2017 = vpop.f32.mrf.mxu0
      %2018 = vmatprep.mubr.bf16.mxu0 0
      %2019 = vmatmul.mubr.bf16.gmra.mxu0 %v749
      %v2020 = vpop.f32.mrf.mxu0
      %v2021 = vadd.f32 0.0, %v2020
      %v2022 = vpop.f32.mrf.mxu0
      %v2023 = vpop.f32.mrf.mxu0
      %v2024 = vadd.f32 0.0, %v2023
      %v2025 = vpop.f32.mrf.mxu0
      %2026 = vmatprep.mubr.bf16.mxu0 0
      %2027 = vmatmul.mubr.bf16.gmra.mxu0 %v1869
      %v2028 = vpop.f32.mrf.mxu0
      %v2029 = vadd.f32 0.0, %v2028
      %v2030 = vpop.f32.mrf.mxu0
      %v2031 = vpop.f32.mrf.mxu0
      %v2032 = vadd.f32 0.0, %v2031
      %v2033 = vpop.f32.mrf.mxu0
      %2034 = vdwg.mxu0
      %v2035 = vadd.f32 %v1807, %v1909
      %v2036 = vadd.f32 %v1808, %v1912
      %v2037 = vadd.f32 %v1809, %v1917
      %v2038 = vadd.f32 %v1810, %v1920
      %v2039 = vadd.f32 %v1811, %v1925
      %v2040 = vadd.f32 %v1812, %v1928
      %v2041 = vadd.f32 %v1813, %v1933
      %v2042 = vadd.f32 %v1814, %v1936
      %v2043 = vadd.f32 %v1815, %v1941
      %v2044 = vadd.f32 %v1816, %v1944
      %v2045 = vadd.f32 %v1817, %v1949
      %v2046 = vadd.f32 %v1818, %v1952
      %v2047 = vadd.f32 %v1819, %v1957
      %v2048 = vadd.f32 %v1820, %v1960
      %v2049 = vadd.f32 %v1821, %v1965
      %v2050 = vadd.f32 %v1822, %v1968
      %v2051 = vadd.f32 %v1823, %v1973
      %v2052 = vadd.f32 %v1824, %v1976
      %v2053 = vadd.f32 %v1825, %v1981
      %v2054 = vadd.f32 %v1826, %v1984
      %v2055 = vadd.f32 %v1827, %v1989
      %v2056 = vadd.f32 %v1828, %v1992
      %v2057 = vadd.f32 %v1829, %v1997
      %v2058 = vadd.f32 %v1830, %v2000
      %v2059 = vadd.f32 %v1831, %v2005
      %v2060 = vadd.f32 %v1832, %v2008
      %v2061 = vadd.f32 %v1833, %v2013
      %v2062 = vadd.f32 %v1834, %v2016
      %v2063 = vadd.f32 %v1835, %v2021
      %v2064 = vadd.f32 %v1836, %v2024
      %v2065 = vadd.f32 %v1837, %v2029
      %v2066 = vadd.f32 %v1838, %v2032
      %v2068 = vrot.slane %v258, 5
      %v2069 = vrot.slane %v2068, 4
      %v2070 = vrot.slane %v259, 5
      %v2071 = vsel %vm1226, %v2069, %v2070
      %v2072 = vrot.slane %v2070, 4
      %v2073 = vrot.slane %v260, 5
      %v2074 = vsel %vm1226, %v2072, %v2073
      %s2075 = scalar_lea.vmem %s1, 20
      %v2076 = vld [vmem:[%s2075] sm:$0xf]
      %v2077 = vunpack.c.l.b16 %v2071
      %v2078 = vunpack.c.l.b16 %v2074
      %v2079 = vpack.c.b16 %v2078, %v2077
      %v2081 = vsel %vm702, %v2079, 0
      %v2084 = vsel %vm751, %v2076, 0
      %2086 = vmatprep.subr.bf16.mxu0 0
      %2087 = vmatpush1.bf16.msra.mxu0 0
      %2088 = vmatprep.subr.bf16.mxu0 0
      %2089 = vmatpush1.bf16.msra.mxu0 0
      %2090 = vmatprep.subr.bf16.mxu0 0
      %2091 = vmatpush1.bf16.msra.mxu0 0
      %2092 = vmatprep.subr.bf16.mxu0 0
      %2093 = vmatpush1.bf16.msra.mxu0 0
      %2094 = vmatprep.subr.bf16.mxu0 0
      %2095 = vmatpush1.bf16.msra.mxu0 0
      %2096 = vmatprep.subr.bf16.mxu0 0
      %2097 = vmatpush1.bf16.msra.mxu0 0
      %2098 = vmatprep.subr.bf16.mxu0 0
      %2099 = vmatpush1.bf16.msra.mxu0 0
      %2100 = vmatprep.subr.bf16.mxu0 0
      %2101 = vmatpush1.bf16.msra.mxu0 %v2084
      %2102 = vmatprep.subr.bf16.mxu0 0
      %2103 = vmatpush2.bf16.msra.mxu0 0
      %2104 = vmatprep.subr.bf16.mxu0 0
      %2105 = vmatpush2.bf16.msra.mxu0 0
      %2106 = vmatprep.subr.bf16.mxu0 0
      %2107 = vmatpush2.bf16.msra.mxu0 0
      %2108 = vmatprep.subr.bf16.mxu0 0
      %2109 = vmatpush2.bf16.msra.mxu0 0
      %2110 = vmatprep.subr.bf16.mxu0 0
      %2111 = vmatpush2.bf16.msra.mxu0 0
      %2112 = vmatprep.subr.bf16.mxu0 0
      %2113 = vmatpush2.bf16.msra.mxu0 0
      %2114 = vmatprep.subr.bf16.mxu0 0
      %2115 = vmatpush2.bf16.msra.mxu0 0
      %2116 = vmatprep.subr.bf16.mxu0 0
      %2117 = vmatpush2.bf16.msra.mxu0 0
      %2118 = vmatprep.mubr.bf16.mxu0 0
      %2119 = vmatmul.mubr.bf16.gmra.mxu0 %v1393
      %v2120 = vpop.f32.mrf.mxu0
      %v2121 = vadd.f32 0.0, %v2120
      %v2122 = vpop.f32.mrf.mxu0
      %v2123 = vpop.f32.mrf.mxu0
      %v2124 = vadd.f32 0.0, %v2123
      %v2125 = vpop.f32.mrf.mxu0
      %2126 = vmatprep.mubr.bf16.mxu0 0
      %2127 = vmatmul.mubr.bf16.gmra.mxu0 %v1396
      %v2128 = vpop.f32.mrf.mxu0
      %v2129 = vadd.f32 0.0, %v2128
      %v2130 = vpop.f32.mrf.mxu0
      %v2131 = vpop.f32.mrf.mxu0
      %v2132 = vadd.f32 0.0, %v2131
      %v2133 = vpop.f32.mrf.mxu0
      %2134 = vmatprep.mubr.bf16.mxu0 0
      %2135 = vmatmul.mubr.bf16.gmra.mxu0 %v1399
      %v2136 = vpop.f32.mrf.mxu0
      %v2137 = vadd.f32 0.0, %v2136
      %v2138 = vpop.f32.mrf.mxu0
      %v2139 = vpop.f32.mrf.mxu0
      %v2140 = vadd.f32 0.0, %v2139
      %v2141 = vpop.f32.mrf.mxu0
      %2142 = vmatprep.mubr.bf16.mxu0 0
      %2143 = vmatmul.mubr.bf16.gmra.mxu0 %v1402
      %v2144 = vpop.f32.mrf.mxu0
      %v2145 = vadd.f32 0.0, %v2144
      %v2146 = vpop.f32.mrf.mxu0
      %v2147 = vpop.f32.mrf.mxu0
      %v2148 = vadd.f32 0.0, %v2147
      %v2149 = vpop.f32.mrf.mxu0
      %2150 = vmatprep.mubr.bf16.mxu0 0
      %2151 = vmatmul.mubr.bf16.gmra.mxu0 %v1405
      %v2152 = vpop.f32.mrf.mxu0
      %v2153 = vadd.f32 0.0, %v2152
      %v2154 = vpop.f32.mrf.mxu0
      %v2155 = vpop.f32.mrf.mxu0
      %v2156 = vadd.f32 0.0, %v2155
      %v2157 = vpop.f32.mrf.mxu0
      %2158 = vmatprep.mubr.bf16.mxu0 0
      %2159 = vmatmul.mubr.bf16.gmra.mxu0 %v1408
      %v2160 = vpop.f32.mrf.mxu0
      %v2161 = vadd.f32 0.0, %v2160
      %v2162 = vpop.f32.mrf.mxu0
      %v2163 = vpop.f32.mrf.mxu0
      %v2164 = vadd.f32 0.0, %v2163
      %v2165 = vpop.f32.mrf.mxu0
      %2166 = vmatprep.mubr.bf16.mxu0 0
      %2167 = vmatmul.mubr.bf16.gmra.mxu0 %v1411
      %v2168 = vpop.f32.mrf.mxu0
      %v2169 = vadd.f32 0.0, %v2168
      %v2170 = vpop.f32.mrf.mxu0
      %v2171 = vpop.f32.mrf.mxu0
      %v2172 = vadd.f32 0.0, %v2171
      %v2173 = vpop.f32.mrf.mxu0
      %2174 = vmatprep.mubr.bf16.mxu0 0
      %2175 = vmatmul.mubr.bf16.gmra.mxu0 %v1414
      %v2176 = vpop.f32.mrf.mxu0
      %v2177 = vadd.f32 0.0, %v2176
      %v2178 = vpop.f32.mrf.mxu0
      %v2179 = vpop.f32.mrf.mxu0
      %v2180 = vadd.f32 0.0, %v2179
      %v2181 = vpop.f32.mrf.mxu0
      %2182 = vmatprep.mubr.bf16.mxu0 0
      %2183 = vmatmul.mubr.bf16.gmra.mxu0 %v1417
      %v2184 = vpop.f32.mrf.mxu0
      %v2185 = vadd.f32 0.0, %v2184
      %v2186 = vpop.f32.mrf.mxu0
      %v2187 = vpop.f32.mrf.mxu0
      %v2188 = vadd.f32 0.0, %v2187
      %v2189 = vpop.f32.mrf.mxu0
      %2190 = vmatprep.mubr.bf16.mxu0 0
      %2191 = vmatmul.mubr.bf16.gmra.mxu0 %v1420
      %v2192 = vpop.f32.mrf.mxu0
      %v2193 = vadd.f32 0.0, %v2192
      %v2194 = vpop.f32.mrf.mxu0
      %v2195 = vpop.f32.mrf.mxu0
      %v2196 = vadd.f32 0.0, %v2195
      %v2197 = vpop.f32.mrf.mxu0
      %2198 = vmatprep.mubr.bf16.mxu0 0
      %2199 = vmatmul.mubr.bf16.gmra.mxu0 %v1423
      %v2200 = vpop.f32.mrf.mxu0
      %v2201 = vadd.f32 0.0, %v2200
      %v2202 = vpop.f32.mrf.mxu0
      %v2203 = vpop.f32.mrf.mxu0
      %v2204 = vadd.f32 0.0, %v2203
      %v2205 = vpop.f32.mrf.mxu0
      %2206 = vmatprep.mubr.bf16.mxu0 0
      %2207 = vmatmul.mubr.bf16.gmra.mxu0 %v1426
      %v2208 = vpop.f32.mrf.mxu0
      %v2209 = vadd.f32 0.0, %v2208
      %v2210 = vpop.f32.mrf.mxu0
      %v2211 = vpop.f32.mrf.mxu0
      %v2212 = vadd.f32 0.0, %v2211
      %v2213 = vpop.f32.mrf.mxu0
      %2214 = vmatprep.mubr.bf16.mxu0 0
      %2215 = vmatmul.mubr.bf16.gmra.mxu0 %v1429
      %v2216 = vpop.f32.mrf.mxu0
      %v2217 = vadd.f32 0.0, %v2216
      %v2218 = vpop.f32.mrf.mxu0
      %v2219 = vpop.f32.mrf.mxu0
      %v2220 = vadd.f32 0.0, %v2219
      %v2221 = vpop.f32.mrf.mxu0
      %2222 = vmatprep.mubr.bf16.mxu0 0
      %2223 = vmatmul.mubr.bf16.gmra.mxu0 %v1432
      %v2224 = vpop.f32.mrf.mxu0
      %v2225 = vadd.f32 0.0, %v2224
      %v2226 = vpop.f32.mrf.mxu0
      %v2227 = vpop.f32.mrf.mxu0
      %v2228 = vadd.f32 0.0, %v2227
      %v2229 = vpop.f32.mrf.mxu0
      %2230 = vmatprep.mubr.bf16.mxu0 0
      %2231 = vmatmul.mubr.bf16.gmra.mxu0 %v1435
      %v2232 = vpop.f32.mrf.mxu0
      %v2233 = vadd.f32 0.0, %v2232
      %v2234 = vpop.f32.mrf.mxu0
      %v2235 = vpop.f32.mrf.mxu0
      %v2236 = vadd.f32 0.0, %v2235
      %v2237 = vpop.f32.mrf.mxu0
      %2238 = vmatprep.mubr.bf16.mxu0 0
      %2239 = vmatmul.mubr.bf16.gmra.mxu0 %v2081
      %v2240 = vpop.f32.mrf.mxu0
      %v2241 = vadd.f32 0.0, %v2240
      %v2242 = vpop.f32.mrf.mxu0
      %v2243 = vpop.f32.mrf.mxu0
      %v2244 = vadd.f32 0.0, %v2243
      %v2245 = vpop.f32.mrf.mxu0
      %2246 = vdwg.mxu0
      %v2247 = vadd.f32 %v2035, %v2121
      %v2248 = vadd.f32 %v2036, %v2124
      %v2249 = vadd.f32 %v2037, %v2129
      %v2250 = vadd.f32 %v2038, %v2132
      %v2251 = vadd.f32 %v2039, %v2137
      %v2252 = vadd.f32 %v2040, %v2140
      %v2253 = vadd.f32 %v2041, %v2145
      %v2254 = vadd.f32 %v2042, %v2148
      %v2255 = vadd.f32 %v2043, %v2153
      %v2256 = vadd.f32 %v2044, %v2156
      %v2257 = vadd.f32 %v2045, %v2161
      %v2258 = vadd.f32 %v2046, %v2164
      %v2259 = vadd.f32 %v2047, %v2169
      %v2260 = vadd.f32 %v2048, %v2172
      %v2261 = vadd.f32 %v2049, %v2177
      %v2262 = vadd.f32 %v2050, %v2180
      %v2263 = vadd.f32 %v2051, %v2185
      %v2264 = vadd.f32 %v2052, %v2188
      %v2265 = vadd.f32 %v2053, %v2193
      %v2266 = vadd.f32 %v2054, %v2196
      %v2267 = vadd.f32 %v2055, %v2201
      %v2268 = vadd.f32 %v2056, %v2204
      %v2269 = vadd.f32 %v2057, %v2209
      %v2270 = vadd.f32 %v2058, %v2212
      %v2271 = vadd.f32 %v2059, %v2217
      %v2272 = vadd.f32 %v2060, %v2220
      %v2273 = vadd.f32 %v2061, %v2225
      %v2274 = vadd.f32 %v2062, %v2228
      %v2275 = vadd.f32 %v2063, %v2233
      %v2276 = vadd.f32 %v2064, %v2236
      %v2277 = vadd.f32 %v2065, %v2241
      %v2278 = vadd.f32 %v2066, %v2244
      %s2279 = scalar_lea.vmem %s1, 24
      %v2280 = vld [vmem:[%s2279] sm:$0xf]
      %v2283 = vunpack.c.l.b16 %v261
      %v2284 = vunpack.c.l.b16 %v262
      %v2285 = vpack.c.b16 %v2284, %v2283
      %v2287 = vsel %vm702, %v2285, 0
      %v2290 = vsel %vm751, %v2280, 0
      %2292 = vmatprep.subr.bf16.mxu0 0
      %2293 = vmatpush1.bf16.msra.mxu0 0
      %2294 = vmatprep.subr.bf16.mxu0 0
      %2295 = vmatpush1.bf16.msra.mxu0 0
      %2296 = vmatprep.subr.bf16.mxu0 0
      %2297 = vmatpush1.bf16.msra.mxu0 0
      %2298 = vmatprep.subr.bf16.mxu0 0
      %2299 = vmatpush1.bf16.msra.mxu0 0
      %2300 = vmatprep.subr.bf16.mxu0 0
      %2301 = vmatpush1.bf16.msra.mxu0 0
      %2302 = vmatprep.subr.bf16.mxu0 0
      %2303 = vmatpush1.bf16.msra.mxu0 0
      %2304 = vmatprep.subr.bf16.mxu0 0
      %2305 = vmatpush1.bf16.msra.mxu0 0
      %2306 = vmatprep.subr.bf16.mxu0 0
      %2307 = vmatpush1.bf16.msra.mxu0 %v2290
      %2308 = vmatprep.subr.bf16.mxu0 0
      %2309 = vmatpush2.bf16.msra.mxu0 0
      %2310 = vmatprep.subr.bf16.mxu0 0
      %2311 = vmatpush2.bf16.msra.mxu0 0
      %2312 = vmatprep.subr.bf16.mxu0 0
      %2313 = vmatpush2.bf16.msra.mxu0 0
      %2314 = vmatprep.subr.bf16.mxu0 0
      %2315 = vmatpush2.bf16.msra.mxu0 0
      %2316 = vmatprep.subr.bf16.mxu0 0
      %2317 = vmatpush2.bf16.msra.mxu0 0
      %2318 = vmatprep.subr.bf16.mxu0 0
      %2319 = vmatpush2.bf16.msra.mxu0 0
      %2320 = vmatprep.subr.bf16.mxu0 0
      %2321 = vmatpush2.bf16.msra.mxu0 0
      %2322 = vmatprep.subr.bf16.mxu0 0
      %2323 = vmatpush2.bf16.msra.mxu0 0
      %2324 = vmatprep.mubr.bf16.mxu0 0
      %2325 = vmatmul.mubr.bf16.gmra.mxu0 %v1003
      %v2326 = vpop.f32.mrf.mxu0
      %v2327 = vadd.f32 0.0, %v2326
      %v2328 = vpop.f32.mrf.mxu0
      %v2329 = vpop.f32.mrf.mxu0
      %v2330 = vadd.f32 0.0, %v2329
      %v2331 = vpop.f32.mrf.mxu0
      %2332 = vmatprep.mubr.bf16.mxu0 0
      %2333 = vmatmul.mubr.bf16.gmra.mxu0 %v1006
      %v2334 = vpop.f32.mrf.mxu0
      %v2335 = vadd.f32 0.0, %v2334
      %v2336 = vpop.f32.mrf.mxu0
      %v2337 = vpop.f32.mrf.mxu0
      %v2338 = vadd.f32 0.0, %v2337
      %v2339 = vpop.f32.mrf.mxu0
      %2340 = vmatprep.mubr.bf16.mxu0 0
      %2341 = vmatmul.mubr.bf16.gmra.mxu0 %v1009
      %v2342 = vpop.f32.mrf.mxu0
      %v2343 = vadd.f32 0.0, %v2342
      %v2344 = vpop.f32.mrf.mxu0
      %v2345 = vpop.f32.mrf.mxu0
      %v2346 = vadd.f32 0.0, %v2345
      %v2347 = vpop.f32.mrf.mxu0
      %2348 = vmatprep.mubr.bf16.mxu0 0
      %2349 = vmatmul.mubr.bf16.gmra.mxu0 %v1012
      %v2350 = vpop.f32.mrf.mxu0
      %v2351 = vadd.f32 0.0, %v2350
      %v2352 = vpop.f32.mrf.mxu0
      %v2353 = vpop.f32.mrf.mxu0
      %v2354 = vadd.f32 0.0, %v2353
      %v2355 = vpop.f32.mrf.mxu0
      %2356 = vmatprep.mubr.bf16.mxu0 0
      %2357 = vmatmul.mubr.bf16.gmra.mxu0 %v1015
      %v2358 = vpop.f32.mrf.mxu0
      %v2359 = vadd.f32 0.0, %v2358
      %v2360 = vpop.f32.mrf.mxu0
      %v2361 = vpop.f32.mrf.mxu0
      %v2362 = vadd.f32 0.0, %v2361
      %v2363 = vpop.f32.mrf.mxu0
      %2364 = vmatprep.mubr.bf16.mxu0 0
      %2365 = vmatmul.mubr.bf16.gmra.mxu0 %v1018
      %v2366 = vpop.f32.mrf.mxu0
      %v2367 = vadd.f32 0.0, %v2366
      %v2368 = vpop.f32.mrf.mxu0
      %v2369 = vpop.f32.mrf.mxu0
      %v2370 = vadd.f32 0.0, %v2369
      %v2371 = vpop.f32.mrf.mxu0
      %2372 = vmatprep.mubr.bf16.mxu0 0
      %2373 = vmatmul.mubr.bf16.gmra.mxu0 %v1021
      %v2374 = vpop.f32.mrf.mxu0
      %v2375 = vadd.f32 0.0, %v2374
      %v2376 = vpop.f32.mrf.mxu0
      %v2377 = vpop.f32.mrf.mxu0
      %v2378 = vadd.f32 0.0, %v2377
      %v2379 = vpop.f32.mrf.mxu0
      %2380 = vmatprep.mubr.bf16.mxu0 0
      %2381 = vmatmul.mubr.bf16.gmra.mxu0 %v1024
      %v2382 = vpop.f32.mrf.mxu0
      %v2383 = vadd.f32 0.0, %v2382
      %v2384 = vpop.f32.mrf.mxu0
      %v2385 = vpop.f32.mrf.mxu0
      %v2386 = vadd.f32 0.0, %v2385
      %v2387 = vpop.f32.mrf.mxu0
      %2388 = vmatprep.mubr.bf16.mxu0 0
      %2389 = vmatmul.mubr.bf16.gmra.mxu0 %v1027
      %v2390 = vpop.f32.mrf.mxu0
      %v2391 = vadd.f32 0.0, %v2390
      %v2392 = vpop.f32.mrf.mxu0
      %v2393 = vpop.f32.mrf.mxu0
      %v2394 = vadd.f32 0.0, %v2393
      %v2395 = vpop.f32.mrf.mxu0
      %2396 = vmatprep.mubr.bf16.mxu0 0
      %2397 = vmatmul.mubr.bf16.gmra.mxu0 %v1030
      %v2398 = vpop.f32.mrf.mxu0
      %v2399 = vadd.f32 0.0, %v2398
      %v2400 = vpop.f32.mrf.mxu0
      %v2401 = vpop.f32.mrf.mxu0
      %v2402 = vadd.f32 0.0, %v2401
      %v2403 = vpop.f32.mrf.mxu0
      %2404 = vmatprep.mubr.bf16.mxu0 0
      %2405 = vmatmul.mubr.bf16.gmra.mxu0 %v1033
      %v2406 = vpop.f32.mrf.mxu0
      %v2407 = vadd.f32 0.0, %v2406
      %v2408 = vpop.f32.mrf.mxu0
      %v2409 = vpop.f32.mrf.mxu0
      %v2410 = vadd.f32 0.0, %v2409
      %v2411 = vpop.f32.mrf.mxu0
      %2412 = vmatprep.mubr.bf16.mxu0 0
      %2413 = vmatmul.mubr.bf16.gmra.mxu0 %v1036
      %v2414 = vpop.f32.mrf.mxu0
      %v2415 = vadd.f32 0.0, %v2414
      %v2416 = vpop.f32.mrf.mxu0
      %v2417 = vpop.f32.mrf.mxu0
      %v2418 = vadd.f32 0.0, %v2417
      %v2419 = vpop.f32.mrf.mxu0
      %2420 = vmatprep.mubr.bf16.mxu0 0
      %2421 = vmatmul.mubr.bf16.gmra.mxu0 %v1039
      %v2422 = vpop.f32.mrf.mxu0
      %v2423 = vadd.f32 0.0, %v2422
      %v2424 = vpop.f32.mrf.mxu0
      %v2425 = vpop.f32.mrf.mxu0
      %v2426 = vadd.f32 0.0, %v2425
      %v2427 = vpop.f32.mrf.mxu0
      %2428 = vmatprep.mubr.bf16.mxu0 0
      %2429 = vmatmul.mubr.bf16.gmra.mxu0 %v1042
      %v2430 = vpop.f32.mrf.mxu0
      %v2431 = vadd.f32 0.0, %v2430
      %v2432 = vpop.f32.mrf.mxu0
      %v2433 = vpop.f32.mrf.mxu0
      %v2434 = vadd.f32 0.0, %v2433
      %v2435 = vpop.f32.mrf.mxu0
      %2436 = vmatprep.mubr.bf16.mxu0 0
      %2437 = vmatmul.mubr.bf16.gmra.mxu0 %v1641
      %v2438 = vpop.f32.mrf.mxu0
      %v2439 = vadd.f32 0.0, %v2438
      %v2440 = vpop.f32.mrf.mxu0
      %v2441 = vpop.f32.mrf.mxu0
      %v2442 = vadd.f32 0.0, %v2441
      %v2443 = vpop.f32.mrf.mxu0
      %2444 = vmatprep.mubr.bf16.mxu0 0
      %2445 = vmatmul.mubr.bf16.gmra.mxu0 %v2287
      %v2446 = vpop.f32.mrf.mxu0
      %v2447 = vadd.f32 0.0, %v2446
      %v2448 = vpop.f32.mrf.mxu0
      %v2449 = vpop.f32.mrf.mxu0
      %v2450 = vadd.f32 0.0, %v2449
      %v2451 = vpop.f32.mrf.mxu0
      %2452 = vdwg.mxu0
      %v2453 = vadd.f32 %v2247, %v2327
      %v2454 = vadd.f32 %v2248, %v2330
      %v2455 = vadd.f32 %v2249, %v2335
      %v2456 = vadd.f32 %v2250, %v2338
      %v2457 = vadd.f32 %v2251, %v2343
      %v2458 = vadd.f32 %v2252, %v2346
      %v2459 = vadd.f32 %v2253, %v2351
      %v2460 = vadd.f32 %v2254, %v2354
      %v2461 = vadd.f32 %v2255, %v2359
      %v2462 = vadd.f32 %v2256, %v2362
      %v2463 = vadd.f32 %v2257, %v2367
      %v2464 = vadd.f32 %v2258, %v2370
      %v2465 = vadd.f32 %v2259, %v2375
      %v2466 = vadd.f32 %v2260, %v2378
      %v2467 = vadd.f32 %v2261, %v2383
      %v2468 = vadd.f32 %v2262, %v2386
      %v2469 = vadd.f32 %v2263, %v2391
      %v2470 = vadd.f32 %v2264, %v2394
      %v2471 = vadd.f32 %v2265, %v2399
      %v2472 = vadd.f32 %v2266, %v2402
      %v2473 = vadd.f32 %v2267, %v2407
      %v2474 = vadd.f32 %v2268, %v2410
      %v2475 = vadd.f32 %v2269, %v2415
      %v2476 = vadd.f32 %v2270, %v2418
      %v2477 = vadd.f32 %v2271, %v2423
      %v2478 = vadd.f32 %v2272, %v2426
      %v2479 = vadd.f32 %v2273, %v2431
      %v2480 = vadd.f32 %v2274, %v2434
      %v2481 = vadd.f32 %v2275, %v2439
      %v2482 = vadd.f32 %v2276, %v2442
      %v2483 = vadd.f32 %v2277, %v2447
      %v2484 = vadd.f32 %v2278, %v2450
      %v2486 = vshrl.u32 %v261, 16
      %v2488 = vrot.slane %v2486, 4
      %v2489 = vshll.u32 %v261, 16
      %v2491 = vrot.slane %v2489, 5
      %v2492 = vor.u32 %v2488, %v2491
      %v2493 = vrot.slane %v2492, 4
      %v2495 = vshll.u32 %v262, 16
      %v2497 = vrot.slane %v2495, 5
      %v2498 = vsel %vm267, %v2493, %v2497
      %v2499 = vshrl.u32 %v262, 16
      %v2501 = vrot.slane %v2499, 4
      %v2502 = vor.u32 %v2501, %v2497
      %v2503 = vrot.slane %v2502, 4
      %v2505 = vshll.u32 %v263, 16
      %v2507 = vrot.slane %v2505, 5
      %v2508 = vsel %vm267, %v2503, %v2507
      %s2509 = scalar_lea.vmem %s1, 28
      %v2510 = vld [vmem:[%s2509] sm:$0xf]
      %v2511 = vunpack.c.l.b16 %v2498
      %v2512 = vunpack.c.l.b16 %v2508
      %v2513 = vpack.c.b16 %v2512, %v2511
      %v2515 = vsel %vm702, %v2513, 0
      %v2518 = vsel %vm751, %v2510, 0
      %2520 = vmatprep.subr.bf16.mxu0 0
      %2521 = vmatpush1.bf16.msra.mxu0 0
      %2522 = vmatprep.subr.bf16.mxu0 0
      %2523 = vmatpush1.bf16.msra.mxu0 0
      %2524 = vmatprep.subr.bf16.mxu0 0
      %2525 = vmatpush1.bf16.msra.mxu0 0
      %2526 = vmatprep.subr.bf16.mxu0 0
      %2527 = vmatpush1.bf16.msra.mxu0 0
      %2528 = vmatprep.subr.bf16.mxu0 0
      %2529 = vmatpush1.bf16.msra.mxu0 0
      %2530 = vmatprep.subr.bf16.mxu0 0
      %2531 = vmatpush1.bf16.msra.mxu0 0
      %2532 = vmatprep.subr.bf16.mxu0 0
      %2533 = vmatpush1.bf16.msra.mxu0 0
      %2534 = vmatprep.subr.bf16.mxu0 0
      %2535 = vmatpush1.bf16.msra.mxu0 %v2518
      %2536 = vmatprep.subr.bf16.mxu0 0
      %2537 = vmatpush2.bf16.msra.mxu0 0
      %2538 = vmatprep.subr.bf16.mxu0 0
      %2539 = vmatpush2.bf16.msra.mxu0 0
      %2540 = vmatprep.subr.bf16.mxu0 0
      %2541 = vmatpush2.bf16.msra.mxu0 0
      %2542 = vmatprep.subr.bf16.mxu0 0
      %2543 = vmatpush2.bf16.msra.mxu0 0
      %2544 = vmatprep.subr.bf16.mxu0 0
      %2545 = vmatpush2.bf16.msra.mxu0 0
      %2546 = vmatprep.subr.bf16.mxu0 0
      %2547 = vmatpush2.bf16.msra.mxu0 0
      %2548 = vmatprep.subr.bf16.mxu0 0
      %2549 = vmatpush2.bf16.msra.mxu0 0
      %2550 = vmatprep.subr.bf16.mxu0 0
      %2551 = vmatpush2.bf16.msra.mxu0 0
      %2552 = vmatprep.mubr.bf16.mxu0 0
      %2553 = vmatmul.mubr.bf16.gmra.mxu0 %v710
      %v2554 = vpop.f32.mrf.mxu0
      %v2555 = vadd.f32 0.0, %v2554
      %v2556 = vpop.f32.mrf.mxu0
      %v2557 = vpop.f32.mrf.mxu0
      %v2558 = vadd.f32 0.0, %v2557
      %v2559 = vpop.f32.mrf.mxu0
      %2560 = vmatprep.mubr.bf16.mxu0 0
      %2561 = vmatmul.mubr.bf16.gmra.mxu0 %v713
      %v2562 = vpop.f32.mrf.mxu0
      %v2563 = vadd.f32 0.0, %v2562
      %v2564 = vpop.f32.mrf.mxu0
      %v2565 = vpop.f32.mrf.mxu0
      %v2566 = vadd.f32 0.0, %v2565
      %v2567 = vpop.f32.mrf.mxu0
      %2568 = vmatprep.mubr.bf16.mxu0 0
      %2569 = vmatmul.mubr.bf16.gmra.mxu0 %v716
      %v2570 = vpop.f32.mrf.mxu0
      %v2571 = vadd.f32 0.0, %v2570
      %v2572 = vpop.f32.mrf.mxu0
      %v2573 = vpop.f32.mrf.mxu0
      %v2574 = vadd.f32 0.0, %v2573
      %v2575 = vpop.f32.mrf.mxu0
      %2576 = vmatprep.mubr.bf16.mxu0 0
      %2577 = vmatmul.mubr.bf16.gmra.mxu0 %v719
      %v2578 = vpop.f32.mrf.mxu0
      %v2579 = vadd.f32 0.0, %v2578
      %v2580 = vpop.f32.mrf.mxu0
      %v2581 = vpop.f32.mrf.mxu0
      %v2582 = vadd.f32 0.0, %v2581
      %v2583 = vpop.f32.mrf.mxu0
      %2584 = vmatprep.mubr.bf16.mxu0 0
      %2585 = vmatmul.mubr.bf16.gmra.mxu0 %v722
      %v2586 = vpop.f32.mrf.mxu0
      %v2587 = vadd.f32 0.0, %v2586
      %v2588 = vpop.f32.mrf.mxu0
      %v2589 = vpop.f32.mrf.mxu0
      %v2590 = vadd.f32 0.0, %v2589
      %v2591 = vpop.f32.mrf.mxu0
      %2592 = vmatprep.mubr.bf16.mxu0 0
      %2593 = vmatmul.mubr.bf16.gmra.mxu0 %v725
      %v2594 = vpop.f32.mrf.mxu0
      %v2595 = vadd.f32 0.0, %v2594
      %v2596 = vpop.f32.mrf.mxu0
      %v2597 = vpop.f32.mrf.mxu0
      %v2598 = vadd.f32 0.0, %v2597
      %v2599 = vpop.f32.mrf.mxu0
      %2600 = vmatprep.mubr.bf16.mxu0 0
      %2601 = vmatmul.mubr.bf16.gmra.mxu0 %v728
      %v2602 = vpop.f32.mrf.mxu0
      %v2603 = vadd.f32 0.0, %v2602
      %v2604 = vpop.f32.mrf.mxu0
      %v2605 = vpop.f32.mrf.mxu0
      %v2606 = vadd.f32 0.0, %v2605
      %v2607 = vpop.f32.mrf.mxu0
      %2608 = vmatprep.mubr.bf16.mxu0 0
      %2609 = vmatmul.mubr.bf16.gmra.mxu0 %v731
      %v2610 = vpop.f32.mrf.mxu0
      %v2611 = vadd.f32 0.0, %v2610
      %v2612 = vpop.f32.mrf.mxu0
      %v2613 = vpop.f32.mrf.mxu0
      %v2614 = vadd.f32 0.0, %v2613
      %v2615 = vpop.f32.mrf.mxu0
      %2616 = vmatprep.mubr.bf16.mxu0 0
      %2617 = vmatmul.mubr.bf16.gmra.mxu0 %v734
      %v2618 = vpop.f32.mrf.mxu0
      %v2619 = vadd.f32 0.0, %v2618
      %v2620 = vpop.f32.mrf.mxu0
      %v2621 = vpop.f32.mrf.mxu0
      %v2622 = vadd.f32 0.0, %v2621
      %v2623 = vpop.f32.mrf.mxu0
      %2624 = vmatprep.mubr.bf16.mxu0 0
      %2625 = vmatmul.mubr.bf16.gmra.mxu0 %v737
      %v2626 = vpop.f32.mrf.mxu0
      %v2627 = vadd.f32 0.0, %v2626
      %v2628 = vpop.f32.mrf.mxu0
      %v2629 = vpop.f32.mrf.mxu0
      %v2630 = vadd.f32 0.0, %v2629
      %v2631 = vpop.f32.mrf.mxu0
      %2632 = vmatprep.mubr.bf16.mxu0 0
      %2633 = vmatmul.mubr.bf16.gmra.mxu0 %v740
      %v2634 = vpop.f32.mrf.mxu0
      %v2635 = vadd.f32 0.0, %v2634
      %v2636 = vpop.f32.mrf.mxu0
      %v2637 = vpop.f32.mrf.mxu0
      %v2638 = vadd.f32 0.0, %v2637
      %v2639 = vpop.f32.mrf.mxu0
      %2640 = vmatprep.mubr.bf16.mxu0 0
      %2641 = vmatmul.mubr.bf16.gmra.mxu0 %v743
      %v2642 = vpop.f32.mrf.mxu0
      %v2643 = vadd.f32 0.0, %v2642
      %v2644 = vpop.f32.mrf.mxu0
      %v2645 = vpop.f32.mrf.mxu0
      %v2646 = vadd.f32 0.0, %v2645
      %v2647 = vpop.f32.mrf.mxu0
      %2648 = vmatprep.mubr.bf16.mxu0 0
      %2649 = vmatmul.mubr.bf16.gmra.mxu0 %v746
      %v2650 = vpop.f32.mrf.mxu0
      %v2651 = vadd.f32 0.0, %v2650
      %v2652 = vpop.f32.mrf.mxu0
      %v2653 = vpop.f32.mrf.mxu0
      %v2654 = vadd.f32 0.0, %v2653
      %v2655 = vpop.f32.mrf.mxu0
      %2656 = vmatprep.mubr.bf16.mxu0 0
      %2657 = vmatmul.mubr.bf16.gmra.mxu0 %v749
      %v2658 = vpop.f32.mrf.mxu0
      %v2659 = vadd.f32 0.0, %v2658
      %v2660 = vpop.f32.mrf.mxu0
      %v2661 = vpop.f32.mrf.mxu0
      %v2662 = vadd.f32 0.0, %v2661
      %v2663 = vpop.f32.mrf.mxu0
      %2664 = vmatprep.mubr.bf16.mxu0 0
      %2665 = vmatmul.mubr.bf16.gmra.mxu0 %v1869
      %v2666 = vpop.f32.mrf.mxu0
      %v2667 = vadd.f32 0.0, %v2666
      %v2668 = vpop.f32.mrf.mxu0
      %v2669 = vpop.f32.mrf.mxu0
      %v2670 = vadd.f32 0.0, %v2669
      %v2671 = vpop.f32.mrf.mxu0
      %2672 = vmatprep.mubr.bf16.mxu0 0
      %2673 = vmatmul.mubr.bf16.gmra.mxu0 %v2515
      %v2674 = vpop.f32.mrf.mxu0
      %v2675 = vadd.f32 0.0, %v2674
      %v2676 = vpop.f32.mrf.mxu0
      %v2677 = vpop.f32.mrf.mxu0
      %v2678 = vadd.f32 0.0, %v2677
      %v2679 = vpop.f32.mrf.mxu0
      %2680 = vdwg.mxu0
      %v2681 = vadd.f32 %v2453, %v2555
      %v2682 = vadd.f32 %v2454, %v2558
      %v2683 = vadd.f32 %v2455, %v2563
      %v2684 = vadd.f32 %v2456, %v2566
      %v2685 = vadd.f32 %v2457, %v2571
      %v2686 = vadd.f32 %v2458, %v2574
      %v2687 = vadd.f32 %v2459, %v2579
      %v2688 = vadd.f32 %v2460, %v2582
      %v2689 = vadd.f32 %v2461, %v2587
      %v2690 = vadd.f32 %v2462, %v2590
      %v2691 = vadd.f32 %v2463, %v2595
      %v2692 = vadd.f32 %v2464, %v2598
      %v2693 = vadd.f32 %v2465, %v2603
      %v2694 = vadd.f32 %v2466, %v2606
      %v2695 = vadd.f32 %v2467, %v2611
      %v2696 = vadd.f32 %v2468, %v2614
      %v2697 = vadd.f32 %v2469, %v2619
      %v2698 = vadd.f32 %v2470, %v2622
      %v2699 = vadd.f32 %v2471, %v2627
      %v2700 = vadd.f32 %v2472, %v2630
      %v2701 = vadd.f32 %v2473, %v2635
      %v2702 = vadd.f32 %v2474, %v2638
      %v2703 = vadd.f32 %v2475, %v2643
      %v2704 = vadd.f32 %v2476, %v2646
      %v2705 = vadd.f32 %v2477, %v2651
      %v2706 = vadd.f32 %v2478, %v2654
      %v2707 = vadd.f32 %v2479, %v2659
      %v2708 = vadd.f32 %v2480, %v2662
      %v2709 = vadd.f32 %v2481, %v2667
      %v2710 = vadd.f32 %v2482, %v2670
      %v2711 = vadd.f32 %v2483, %v2675
      %v2712 = vadd.f32 %v2484, %v2678
      %v2714 = vrot.slane %v261, 5
      %v2715 = vrot.slane %v2714, 4
      %v2716 = vrot.slane %v262, 5
      %v2717 = vsel %vm1226, %v2715, %v2716
      %v2718 = vrot.slane %v2716, 4
      %v2719 = vrot.slane %v263, 5
      %v2720 = vsel %vm1226, %v2718, %v2719
      %s2721 = scalar_lea.vmem %s1, 32
      %v2722 = vld [vmem:[%s2721] sm:$0xf]
      %v2723 = vunpack.c.l.b16 %v2717
      %v2724 = vunpack.c.l.b16 %v2720
      %v2725 = vpack.c.b16 %v2724, %v2723
      %v2727 = vsel %vm702, %v2725, 0
      %v2730 = vsel %vm751, %v2722, 0
      %2732 = vmatprep.subr.bf16.mxu0 0
      %2733 = vmatpush1.bf16.msra.mxu0 0
      %2734 = vmatprep.subr.bf16.mxu0 0
      %2735 = vmatpush1.bf16.msra.mxu0 0
      %2736 = vmatprep.subr.bf16.mxu0 0
      %2737 = vmatpush1.bf16.msra.mxu0 0
      %2738 = vmatprep.subr.bf16.mxu0 0
      %2739 = vmatpush1.bf16.msra.mxu0 0
      %2740 = vmatprep.subr.bf16.mxu0 0
      %2741 = vmatpush1.bf16.msra.mxu0 0
      %2742 = vmatprep.subr.bf16.mxu0 0
      %2743 = vmatpush1.bf16.msra.mxu0 0
      %2744 = vmatprep.subr.bf16.mxu0 0
      %2745 = vmatpush1.bf16.msra.mxu0 0
      %2746 = vmatprep.subr.bf16.mxu0 0
      %2747 = vmatpush1.bf16.msra.mxu0 %v2730
      %2748 = vmatprep.subr.bf16.mxu0 0
      %2749 = vmatpush2.bf16.msra.mxu0 0
      %2750 = vmatprep.subr.bf16.mxu0 0
      %2751 = vmatpush2.bf16.msra.mxu0 0
      %2752 = vmatprep.subr.bf16.mxu0 0
      %2753 = vmatpush2.bf16.msra.mxu0 0
      %2754 = vmatprep.subr.bf16.mxu0 0
      %2755 = vmatpush2.bf16.msra.mxu0 0
      %2756 = vmatprep.subr.bf16.mxu0 0
      %2757 = vmatpush2.bf16.msra.mxu0 0
      %2758 = vmatprep.subr.bf16.mxu0 0
      %2759 = vmatpush2.bf16.msra.mxu0 0
      %2760 = vmatprep.subr.bf16.mxu0 0
      %2761 = vmatpush2.bf16.msra.mxu0 0
      %2762 = vmatprep.subr.bf16.mxu0 0
      %2763 = vmatpush2.bf16.msra.mxu0 0
      %2764 = vmatprep.mubr.bf16.mxu0 0
      %2765 = vmatmul.mubr.bf16.gmra.mxu0 %v1396
      %v2766 = vpop.f32.mrf.mxu0
      %v2767 = vadd.f32 0.0, %v2766
      %v2768 = vpop.f32.mrf.mxu0
      %v2769 = vpop.f32.mrf.mxu0
      %v2770 = vadd.f32 0.0, %v2769
      %v2771 = vpop.f32.mrf.mxu0
      %2772 = vmatprep.mubr.bf16.mxu0 0
      %2773 = vmatmul.mubr.bf16.gmra.mxu0 %v1399
      %v2774 = vpop.f32.mrf.mxu0
      %v2775 = vadd.f32 0.0, %v2774
      %v2776 = vpop.f32.mrf.mxu0
      %v2777 = vpop.f32.mrf.mxu0
      %v2778 = vadd.f32 0.0, %v2777
      %v2779 = vpop.f32.mrf.mxu0
      %2780 = vmatprep.mubr.bf16.mxu0 0
      %2781 = vmatmul.mubr.bf16.gmra.mxu0 %v1402
      %v2782 = vpop.f32.mrf.mxu0
      %v2783 = vadd.f32 0.0, %v2782
      %v2784 = vpop.f32.mrf.mxu0
      %v2785 = vpop.f32.mrf.mxu0
      %v2786 = vadd.f32 0.0, %v2785
      %v2787 = vpop.f32.mrf.mxu0
      %2788 = vmatprep.mubr.bf16.mxu0 0
      %2789 = vmatmul.mubr.bf16.gmra.mxu0 %v1405
      %v2790 = vpop.f32.mrf.mxu0
      %v2791 = vadd.f32 0.0, %v2790
      %v2792 = vpop.f32.mrf.mxu0
      %v2793 = vpop.f32.mrf.mxu0
      %v2794 = vadd.f32 0.0, %v2793
      %v2795 = vpop.f32.mrf.mxu0
      %2796 = vmatprep.mubr.bf16.mxu0 0
      %2797 = vmatmul.mubr.bf16.gmra.mxu0 %v1408
      %v2798 = vpop.f32.mrf.mxu0
      %v2799 = vadd.f32 0.0, %v2798
      %v2800 = vpop.f32.mrf.mxu0
      %v2801 = vpop.f32.mrf.mxu0
      %v2802 = vadd.f32 0.0, %v2801
      %v2803 = vpop.f32.mrf.mxu0
      %2804 = vmatprep.mubr.bf16.mxu0 0
      %2805 = vmatmul.mubr.bf16.gmra.mxu0 %v1411
      %v2806 = vpop.f32.mrf.mxu0
      %v2807 = vadd.f32 0.0, %v2806
      %v2808 = vpop.f32.mrf.mxu0
      %v2809 = vpop.f32.mrf.mxu0
      %v2810 = vadd.f32 0.0, %v2809
      %v2811 = vpop.f32.mrf.mxu0
      %2812 = vmatprep.mubr.bf16.mxu0 0
      %2813 = vmatmul.mubr.bf16.gmra.mxu0 %v1414
      %v2814 = vpop.f32.mrf.mxu0
      %v2815 = vadd.f32 0.0, %v2814
      %v2816 = vpop.f32.mrf.mxu0
      %v2817 = vpop.f32.mrf.mxu0
      %v2818 = vadd.f32 0.0, %v2817
      %v2819 = vpop.f32.mrf.mxu0
      %2820 = vmatprep.mubr.bf16.mxu0 0
      %2821 = vmatmul.mubr.bf16.gmra.mxu0 %v1417
      %v2822 = vpop.f32.mrf.mxu0
      %v2823 = vadd.f32 0.0, %v2822
      %v2824 = vpop.f32.mrf.mxu0
      %v2825 = vpop.f32.mrf.mxu0
      %v2826 = vadd.f32 0.0, %v2825
      %v2827 = vpop.f32.mrf.mxu0
      %2828 = vmatprep.mubr.bf16.mxu0 0
      %2829 = vmatmul.mubr.bf16.gmra.mxu0 %v1420
      %v2830 = vpop.f32.mrf.mxu0
      %v2831 = vadd.f32 0.0, %v2830
      %v2832 = vpop.f32.mrf.mxu0
      %v2833 = vpop.f32.mrf.mxu0
      %v2834 = vadd.f32 0.0, %v2833
      %v2835 = vpop.f32.mrf.mxu0
      %2836 = vmatprep.mubr.bf16.mxu0 0
      %2837 = vmatmul.mubr.bf16.gmra.mxu0 %v1423
      %v2838 = vpop.f32.mrf.mxu0
      %v2839 = vadd.f32 0.0, %v2838
      %v2840 = vpop.f32.mrf.mxu0
      %v2841 = vpop.f32.mrf.mxu0
      %v2842 = vadd.f32 0.0, %v2841
      %v2843 = vpop.f32.mrf.mxu0
      %2844 = vmatprep.mubr.bf16.mxu0 0
      %2845 = vmatmul.mubr.bf16.gmra.mxu0 %v1426
      %v2846 = vpop.f32.mrf.mxu0
      %v2847 = vadd.f32 0.0, %v2846
      %v2848 = vpop.f32.mrf.mxu0
      %v2849 = vpop.f32.mrf.mxu0
      %v2850 = vadd.f32 0.0, %v2849
      %v2851 = vpop.f32.mrf.mxu0
      %2852 = vmatprep.mubr.bf16.mxu0 0
      %2853 = vmatmul.mubr.bf16.gmra.mxu0 %v1429
      %v2854 = vpop.f32.mrf.mxu0
      %v2855 = vadd.f32 0.0, %v2854
      %v2856 = vpop.f32.mrf.mxu0
      %v2857 = vpop.f32.mrf.mxu0
      %v2858 = vadd.f32 0.0, %v2857
      %v2859 = vpop.f32.mrf.mxu0
      %2860 = vmatprep.mubr.bf16.mxu0 0
      %2861 = vmatmul.mubr.bf16.gmra.mxu0 %v1432
      %v2862 = vpop.f32.mrf.mxu0
      %v2863 = vadd.f32 0.0, %v2862
      %v2864 = vpop.f32.mrf.mxu0
      %v2865 = vpop.f32.mrf.mxu0
      %v2866 = vadd.f32 0.0, %v2865
      %v2867 = vpop.f32.mrf.mxu0
      %2868 = vmatprep.mubr.bf16.mxu0 0
      %2869 = vmatmul.mubr.bf16.gmra.mxu0 %v1435
      %v2870 = vpop.f32.mrf.mxu0
      %v2871 = vadd.f32 0.0, %v2870
      %v2872 = vpop.f32.mrf.mxu0
      %v2873 = vpop.f32.mrf.mxu0
      %v2874 = vadd.f32 0.0, %v2873
      %v2875 = vpop.f32.mrf.mxu0
      %2876 = vmatprep.mubr.bf16.mxu0 0
      %2877 = vmatmul.mubr.bf16.gmra.mxu0 %v2081
      %v2878 = vpop.f32.mrf.mxu0
      %v2879 = vadd.f32 0.0, %v2878
      %v2880 = vpop.f32.mrf.mxu0
      %v2881 = vpop.f32.mrf.mxu0
      %v2882 = vadd.f32 0.0, %v2881
      %v2883 = vpop.f32.mrf.mxu0
      %2884 = vmatprep.mubr.bf16.mxu0 0
      %2885 = vmatmul.mubr.bf16.gmra.mxu0 %v2727
      %v2886 = vpop.f32.mrf.mxu0
      %v2887 = vadd.f32 0.0, %v2886
      %v2888 = vpop.f32.mrf.mxu0
      %v2889 = vpop.f32.mrf.mxu0
      %v2890 = vadd.f32 0.0, %v2889
      %v2891 = vpop.f32.mrf.mxu0
      %2892 = vdwg.mxu0
      %v2893 = vadd.f32 %v2681, %v2767
      %v2894 = vadd.f32 %v2682, %v2770
      %v2895 = vadd.f32 %v2683, %v2775
      %v2896 = vadd.f32 %v2684, %v2778
      %v2897 = vadd.f32 %v2685, %v2783
      %v2898 = vadd.f32 %v2686, %v2786
      %v2899 = vadd.f32 %v2687, %v2791
      %v2900 = vadd.f32 %v2688, %v2794
      %v2901 = vadd.f32 %v2689, %v2799
      %v2902 = vadd.f32 %v2690, %v2802
      %v2903 = vadd.f32 %v2691, %v2807
      %v2904 = vadd.f32 %v2692, %v2810
      %v2905 = vadd.f32 %v2693, %v2815
      %v2906 = vadd.f32 %v2694, %v2818
      %v2907 = vadd.f32 %v2695, %v2823
      %v2908 = vadd.f32 %v2696, %v2826
      %v2909 = vadd.f32 %v2697, %v2831
      %v2910 = vadd.f32 %v2698, %v2834
      %v2911 = vadd.f32 %v2699, %v2839
      %v2912 = vadd.f32 %v2700, %v2842
      %v2913 = vadd.f32 %v2701, %v2847
      %v2914 = vadd.f32 %v2702, %v2850
      %v2915 = vadd.f32 %v2703, %v2855
      %v2916 = vadd.f32 %v2704, %v2858
      %v2917 = vadd.f32 %v2705, %v2863
      %v2918 = vadd.f32 %v2706, %v2866
      %v2919 = vadd.f32 %v2707, %v2871
      %v2920 = vadd.f32 %v2708, %v2874
      %v2921 = vadd.f32 %v2709, %v2879
      %v2922 = vadd.f32 %v2710, %v2882
      %v2923 = vadd.f32 %v2711, %v2887
      %v2924 = vadd.f32 %v2712, %v2890
      %v2925 = vld [vmem:[%s2] sm:$0x1]
      %v2927 = vlaneseq
      %v2928 = vshrl.u32 %v2927, 7
      %v2929 = vsub.s32 0, %v2928
      %v2930 = vrot.slane %v2925, %v2929
      %v2932 = vadd.f32 %v2893, %v2930
      %v2933 = vadd.f32 %v2894, %v2930
      %v2934 = vadd.f32 %v2895, %v2930
      %v2935 = vadd.f32 %v2896, %v2930
      %v2936 = vadd.f32 %v2897, %v2930
      %v2937 = vadd.f32 %v2898, %v2930
      %v2938 = vadd.f32 %v2899, %v2930
      %v2939 = vadd.f32 %v2900, %v2930
      %v2940 = vadd.f32 %v2901, %v2930
      %v2941 = vadd.f32 %v2902, %v2930
      %v2942 = vadd.f32 %v2903, %v2930
      %v2943 = vadd.f32 %v2904, %v2930
      %v2944 = vadd.f32 %v2905, %v2930
      %v2945 = vadd.f32 %v2906, %v2930
      %v2946 = vadd.f32 %v2907, %v2930
      %v2947 = vadd.f32 %v2908, %v2930
      %v2948 = vadd.f32 %v2909, %v2930
      %v2949 = vadd.f32 %v2910, %v2930
      %v2950 = vadd.f32 %v2911, %v2930
      %v2951 = vadd.f32 %v2912, %v2930
      %v2952 = vadd.f32 %v2913, %v2930
      %v2953 = vadd.f32 %v2914, %v2930
      %v2954 = vadd.f32 %v2915, %v2930
      %v2955 = vadd.f32 %v2916, %v2930
      %v2956 = vadd.f32 %v2917, %v2930
      %v2957 = vadd.f32 %v2918, %v2930
      %v2958 = vadd.f32 %v2919, %v2930
      %v2959 = vadd.f32 %v2920, %v2930
      %v2960 = vadd.f32 %v2921, %v2930
      %v2961 = vadd.f32 %v2922, %v2930
      %v2962 = vadd.f32 %v2923, %v2930
      %v2963 = vadd.f32 %v2924, %v2930
      %v2964 = vmax.f32 %v2932, 0.0
      %v2965 = vmax.f32 %v2933, 0.0
      %v2966 = vmax.f32 %v2934, 0.0
      %v2967 = vmax.f32 %v2935, 0.0
      %v2968 = vmax.f32 %v2936, 0.0
      %v2969 = vmax.f32 %v2937, 0.0
      %v2970 = vmax.f32 %v2938, 0.0
      %v2971 = vmax.f32 %v2939, 0.0
      %v2972 = vmax.f32 %v2940, 0.0
      %v2973 = vmax.f32 %v2941, 0.0
      %v2974 = vmax.f32 %v2942, 0.0
      %v2975 = vmax.f32 %v2943, 0.0
      %v2976 = vmax.f32 %v2944, 0.0
      %v2977 = vmax.f32 %v2945, 0.0
      %v2978 = vmax.f32 %v2946, 0.0
      %v2979 = vmax.f32 %v2947, 0.0
      %v2980 = vmax.f32 %v2948, 0.0
      %v2981 = vmax.f32 %v2949, 0.0
      %v2982 = vmax.f32 %v2950, 0.0
      %v2983 = vmax.f32 %v2951, 0.0
      %v2984 = vmax.f32 %v2952, 0.0
      %v2985 = vmax.f32 %v2953, 0.0
      %v2986 = vmax.f32 %v2954, 0.0
      %v2987 = vmax.f32 %v2955, 0.0
      %v2988 = vmax.f32 %v2956, 0.0
      %v2989 = vmax.f32 %v2957, 0.0
      %v2990 = vmax.f32 %v2958, 0.0
      %v2991 = vmax.f32 %v2959, 0.0
      %v2992 = vmax.f32 %v2960, 0.0
      %v2993 = vmax.f32 %v2961, 0.0
      %v2994 = vmax.f32 %v2962, 0.0
      %v2995 = vmax.f32 %v2963, 0.0
      %v2996 = vpack.c.bf16 %v2965, %v2964
      %v2997 = vpack.c.bf16 %v2967, %v2966
      %v2998 = vpack.c.bf16 %v2969, %v2968
      %v2999 = vpack.c.bf16 %v2971, %v2970
      %v3000 = vpack.c.bf16 %v2973, %v2972
      %v3001 = vpack.c.bf16 %v2975, %v2974
      %v3002 = vpack.c.bf16 %v2977, %v2976
      %v3003 = vpack.c.bf16 %v2979, %v2978
      %v3004 = vpack.c.bf16 %v2981, %v2980
      %v3005 = vpack.c.bf16 %v2983, %v2982
      %v3006 = vpack.c.bf16 %v2985, %v2984
      %v3007 = vpack.c.bf16 %v2987, %v2986
      %v3008 = vpack.c.bf16 %v2989, %v2988
      %v3009 = vpack.c.bf16 %v2991, %v2990
      %v3010 = vpack.c.bf16 %v2993, %v2992
      %v3011 = vpack.c.bf16 %v2995, %v2994
      %v3028 = vunpack.c.l.b16 %v2996
      %v3029 = vunpack.c.h.b16 %v2996
      %v3030 = vunpack.c.l.b16 %v2997
      %v3031 = vunpack.c.h.b16 %v2997
      %v3032 = vunpack.c.l.b16 %v2998
      %v3033 = vunpack.c.h.b16 %v2998
      %v3034 = vunpack.c.l.b16 %v2999
      %v3035 = vunpack.c.h.b16 %v2999
      %v3036 = vunpack.c.l.b16 %v3000
      %v3037 = vunpack.c.h.b16 %v3000
      %v3038 = vunpack.c.l.b16 %v3001
      %v3039 = vunpack.c.h.b16 %v3001
      %v3040 = vunpack.c.l.b16 %v3002
      %v3041 = vunpack.c.h.b16 %v3002
      %v3042 = vunpack.c.l.b16 %v3003
      %v3043 = vunpack.c.h.b16 %v3003
      %v3044 = vunpack.c.l.b16 %v3004
      %v3045 = vunpack.c.h.b16 %v3004
      %v3046 = vunpack.c.l.b16 %v3005
      %v3047 = vunpack.c.h.b16 %v3005
      %v3048 = vunpack.c.l.b16 %v3006
      %v3049 = vunpack.c.h.b16 %v3006
      %v3050 = vunpack.c.l.b16 %v3007
      %v3051 = vunpack.c.h.b16 %v3007
      %v3052 = vunpack.c.l.b16 %v3008
      %v3053 = vunpack.c.h.b16 %v3008
      %v3054 = vunpack.c.l.b16 %v3009
      %v3055 = vunpack.c.h.b16 %v3009
      %v3056 = vunpack.c.l.b16 %v3010
      %v3057 = vunpack.c.h.b16 %v3010
      %v3058 = vunpack.c.l.b16 %v3011
      %v3059 = vunpack.c.h.b16 %v3011
      %v3060 = vpack.c.b16 %v3028, %v3028
      %v3061 = vpack.c.b16 %v3029, %v3029
      %v3062 = vpack.c.b16 %v3030, %v3030
      %v3063 = vpack.c.b16 %v3031, %v3031
      %v3064 = vpack.c.b16 %v3032, %v3032
      %v3065 = vpack.c.b16 %v3033, %v3033
      %v3066 = vpack.c.b16 %v3034, %v3034
      %v3067 = vpack.c.b16 %v3035, %v3035
      %v3068 = vpack.c.b16 %v3036, %v3036
      %v3069 = vpack.c.b16 %v3037, %v3037
      %v3070 = vpack.c.b16 %v3038, %v3038
      %v3071 = vpack.c.b16 %v3039, %v3039
      %v3072 = vpack.c.b16 %v3040, %v3040
      %v3073 = vpack.c.b16 %v3041, %v3041
      %v3074 = vpack.c.b16 %v3042, %v3042
      %v3075 = vpack.c.b16 %v3043, %v3043
      %v3076 = vpack.c.b16 %v3044, %v3044
      %v3077 = vpack.c.b16 %v3045, %v3045
      %v3078 = vpack.c.b16 %v3046, %v3046
      %v3079 = vpack.c.b16 %v3047, %v3047
      %v3080 = vpack.c.b16 %v3048, %v3048
      %v3081 = vpack.c.b16 %v3049, %v3049
      %v3082 = vpack.c.b16 %v3050, %v3050
      %v3083 = vpack.c.b16 %v3051, %v3051
      %v3084 = vpack.c.b16 %v3052, %v3052
      %v3085 = vpack.c.b16 %v3053, %v3053
      %v3086 = vpack.c.b16 %v3054, %v3054
      %v3087 = vpack.c.b16 %v3055, %v3055
      %v3088 = vpack.c.b16 %v3056, %v3056
      %v3089 = vpack.c.b16 %v3057, %v3057
      %v3090 = vpack.c.b16 %v3058, %v3058
      %v3091 = vpack.c.b16 %v3059, %v3059
      %3124 = vst [vmem:[%s204] sm:$0xf] %v3060
      %3125 = vst [vmem:[%s204 + $0x4] sm:$0xf] %v3061
      %3126 = vst [vmem:[%s204 + $0x8] sm:$0xf] %v3062
      %3127 = vst [vmem:[%s204 + $0xc] sm:$0xf] %v3063
      %3128 = vst [vmem:[%s204 + $0x10] sm:$0xf] %v3064
      %3129 = vst [vmem:[%s204 + $0x14] sm:$0xf] %v3065
      %3130 = vst [vmem:[%s204 + $0x18] sm:$0xf] %v3066
      %3131 = vst [vmem:[%s204 + $0x1c] sm:$0xf] %v3067
      %3132 = vst [vmem:[%s204 + $0x20] sm:$0xf] %v3068
      %3133 = vst [vmem:[%s204 + $0x24] sm:$0xf] %v3069
      %3134 = vst [vmem:[%s204 + $0x28] sm:$0xf] %v3070
      %3135 = vst [vmem:[%s204 + $0x2c] sm:$0xf] %v3071
      %3136 = vst [vmem:[%s204 + $0x30] sm:$0xf] %v3072
      %3137 = vst [vmem:[%s204 + $0x34] sm:$0xf] %v3073
      %3138 = vst [vmem:[%s204 + $0x38] sm:$0xf] %v3074
      %3139 = vst [vmem:[%s204 + $0x3c] sm:$0xf] %v3075
      %3140 = vst [vmem:[%s204 + $0x40] sm:$0xf] %v3076
      %3141 = vst [vmem:[%s204 + $0x44] sm:$0xf] %v3077
      %3142 = vst [vmem:[%s204 + $0x48] sm:$0xf] %v3078
      %3143 = vst [vmem:[%s204 + $0x4c] sm:$0xf] %v3079
      %3144 = vst [vmem:[%s204 + $0x50] sm:$0xf] %v3080
      %3145 = vst [vmem:[%s204 + $0x54] sm:$0xf] %v3081
      %3146 = vst [vmem:[%s204 + $0x58] sm:$0xf] %v3082
      %3147 = vst [vmem:[%s204 + $0x5c] sm:$0xf] %v3083
      %3148 = vst [vmem:[%s204 + $0x60] sm:$0xf] %v3084
      %3149 = vst [vmem:[%s204 + $0x64] sm:$0xf] %v3085
      %3150 = vst [vmem:[%s204 + $0x68] sm:$0xf] %v3086
      %3151 = vst [vmem:[%s204 + $0x6c] sm:$0xf] %v3087
      %3152 = vst [vmem:[%s204 + $0x70] sm:$0xf] %v3088
      %3153 = vst [vmem:[%s204 + $0x74] sm:$0xf] %v3089
      %3154 = vst [vmem:[%s204 + $0x78] sm:$0xf] %v3090
      %3155 = vst [vmem:[%s204 + $0x7c] sm:$0xf] %v3091
      %v3156 = vadd.f32 %v2964, %v2965
      %v3157 = vadd.f32 %v3156, %v2966
      %v3158 = vadd.f32 %v3157, %v2967
      %v3159 = vadd.f32 %v3158, %v2968
      %v3160 = vadd.f32 %v3159, %v2969
      %v3161 = vadd.f32 %v3160, %v2970
      %v3162 = vadd.f32 %v3161, %v2971
      %v3163 = vadd.f32 %v3162, %v2972
      %v3164 = vadd.f32 %v3163, %v2973
      %v3165 = vadd.f32 %v3164, %v2974
      %v3166 = vadd.f32 %v3165, %v2975
      %v3167 = vadd.f32 %v3166, %v2976
      %v3168 = vadd.f32 %v3167, %v2977
      %v3169 = vadd.f32 %v3168, %v2978
      %v3170 = vadd.f32 %v3169, %v2979
      %v3171 = vadd.f32 %v3170, %v2980
      %v3172 = vadd.f32 %v3171, %v2981
      %v3173 = vadd.f32 %v3172, %v2982
      %v3174 = vadd.f32 %v3173, %v2983
      %v3175 = vadd.f32 %v3174, %v2984
      %v3176 = vadd.f32 %v3175, %v2985
      %v3177 = vadd.f32 %v3176, %v2986
      %v3178 = vadd.f32 %v3177, %v2987
      %v3179 = vadd.f32 %v3178, %v2988
      %v3180 = vadd.f32 %v3179, %v2989
      %v3181 = vadd.f32 %v3180, %v2990
      %v3182 = vadd.f32 %v3181, %v2991
      %v3183 = vadd.f32 %v3182, %v2992
      %v3184 = vadd.f32 %v3183, %v2993
      %v3185 = vadd.f32 %v3184, %v2994
      %v3186 = vadd.f32 %v3185, %v2995
      %v3187 = vrot.slane %v3186, 4
      %v3188 = vadd.f32 %v3186, %v3187
      %v3189 = vrot.slane %v3188, 2
      %v3190 = vadd.f32 %v3188, %v3189
      %v3191 = vrot.slane %v3190, 1
      %v3192 = vadd.f32 %v3190, %v3191
      %v3193 = vmul.f32 %v2964, %v2964
      %v3194 = vmul.f32 %v2965, %v2965
      %v3195 = vmul.f32 %v2966, %v2966
      %v3196 = vmul.f32 %v2967, %v2967
      %v3197 = vmul.f32 %v2968, %v2968
      %v3198 = vmul.f32 %v2969, %v2969
      %v3199 = vmul.f32 %v2970, %v2970
      %v3200 = vmul.f32 %v2971, %v2971
      %v3201 = vmul.f32 %v2972, %v2972
      %v3202 = vmul.f32 %v2973, %v2973
      %v3203 = vmul.f32 %v2974, %v2974
      %v3204 = vmul.f32 %v2975, %v2975
      %v3205 = vmul.f32 %v2976, %v2976
      %v3206 = vmul.f32 %v2977, %v2977
      %v3207 = vmul.f32 %v2978, %v2978
      %v3208 = vmul.f32 %v2979, %v2979
      %v3209 = vmul.f32 %v2980, %v2980
      %v3210 = vmul.f32 %v2981, %v2981
      %v3211 = vmul.f32 %v2982, %v2982
      %v3212 = vmul.f32 %v2983, %v2983
      %v3213 = vmul.f32 %v2984, %v2984
      %v3214 = vmul.f32 %v2985, %v2985
      %v3215 = vmul.f32 %v2986, %v2986
      %v3216 = vmul.f32 %v2987, %v2987
      %v3217 = vmul.f32 %v2988, %v2988
      %v3218 = vmul.f32 %v2989, %v2989
      %v3219 = vmul.f32 %v2990, %v2990
      %v3220 = vmul.f32 %v2991, %v2991
      %v3221 = vmul.f32 %v2992, %v2992
      %v3222 = vmul.f32 %v2993, %v2993
      %v3223 = vmul.f32 %v2994, %v2994
      %v3224 = vmul.f32 %v2995, %v2995
      %v3225 = vadd.f32 %v3193, %v3194
      %v3226 = vadd.f32 %v3225, %v3195
      %v3227 = vadd.f32 %v3226, %v3196
      %v3228 = vadd.f32 %v3227, %v3197
      %v3229 = vadd.f32 %v3228, %v3198
      %v3230 = vadd.f32 %v3229, %v3199
      %v3231 = vadd.f32 %v3230, %v3200
      %v3232 = vadd.f32 %v3231, %v3201
      %v3233 = vadd.f32 %v3232, %v3202
      %v3234 = vadd.f32 %v3233, %v3203
      %v3235 = vadd.f32 %v3234, %v3204
      %v3236 = vadd.f32 %v3235, %v3205
      %v3237 = vadd.f32 %v3236, %v3206
      %v3238 = vadd.f32 %v3237, %v3207
      %v3239 = vadd.f32 %v3238, %v3208
      %v3240 = vadd.f32 %v3239, %v3209
      %v3241 = vadd.f32 %v3240, %v3210
      %v3242 = vadd.f32 %v3241, %v3211
      %v3243 = vadd.f32 %v3242, %v3212
      %v3244 = vadd.f32 %v3243, %v3213
      %v3245 = vadd.f32 %v3244, %v3214
      %v3246 = vadd.f32 %v3245, %v3215
      %v3247 = vadd.f32 %v3246, %v3216
      %v3248 = vadd.f32 %v3247, %v3217
      %v3249 = vadd.f32 %v3248, %v3218
      %v3250 = vadd.f32 %v3249, %v3219
      %v3251 = vadd.f32 %v3250, %v3220
      %v3252 = vadd.f32 %v3251, %v3221
      %v3253 = vadd.f32 %v3252, %v3222
      %v3254 = vadd.f32 %v3253, %v3223
      %v3255 = vadd.f32 %v3254, %v3224
      %v3256 = vrot.slane %v3255, 4
      %v3257 = vadd.f32 %v3255, %v3256
      %v3258 = vrot.slane %v3257, 2
      %v3259 = vadd.f32 %v3257, %v3258
      %v3260 = vrot.slane %v3259, 1
      %v3261 = vadd.f32 %v3259, %v3260
      %vm3262 = vcmask 1040384
      %v3263 = vsel %vm3262, %v3192, %v3261
      %3264 = vst [vmem:[%s208] sm:$0x3] %v3263
      %p3265 = scmp.lt.s32.totalorder %s16, 1
      %s3266 = scalar_select %p3265, %s16, 1
      %s3267 = smul.addr %s3266, 32
      %s3268 = smul.addr %s3267, 4
      %s3269 = scalar_lea.vmem %s3, %s3268
      %p3270 = scmp.lt.s32.totalorder %s16, 1
      %s3271 = scalar_select %p3270, %s16, 1
      %s3272 = smul.addr %s3271, 2
      %s3273 = scalar_lea.vmem %s4, %s3272
      // Predicated region
      $region33: #{dcnet_forward.3} parent=31 // pred_check
        %p3274 = pneg %p102
      $region34: #{dcnet_forward.3} parent=31 // pred_check_branch
        %3276 = sbr.rel (%p3274) target = $region36
      $region35: #{dcnet_forward.3} parent=31 // pred_region
        _
      $region36: #{dcnet_forward.3} parent=31 // pred_fallthru
        _
      // Predicated region
      $region37: #{dcnet_forward.3} parent=31 // pred_check
        %p3277 = pneg %p128
      $region38: #{dcnet_forward.3} parent=31 // pred_check_branch
        %3279 = sbr.rel (%p3277) target = $region40
      $region39: #{dcnet_forward.3} parent=31 // pred_region
        _
      $region40: #{dcnet_forward.3} parent=31 // pred_fallthru
        _
    $region32: #{dcnet_forward.3} parent=5 // pred_fallthru
      _
    %p3280 = scmp.le.s32.totalorder 2, %s11
    // Predicated region
    $region41: #{dcnet_forward.3} parent=5 // pred_check
      %p3281 = pneg %p3280
    $region42: #{dcnet_forward.3} parent=5 // pred_check_branch
      %3283 = sbr.rel (%p3281) target = $region44
    $region43: #{dcnet_forward.3} parent=5 // pred_region
      %s3284 = ssub.s32 %s11, 2
      // Predicated region
      $region45: #{dcnet_forward.3} parent=43 // pred_check
        %p3285 = pneg %p108
      $region46: #{dcnet_forward.3} parent=43 // pred_check_branch
        %3287 = sbr.rel (%p3285) target = $region48
      $region47: #{dcnet_forward.3} parent=43 // pred_region
        %p3288 = scmp.lt.s32.totalorder %s17, 1
        %s3289 = scalar_select %p3288, %s17, 1
        %s3290 = smul.addr %s3289, 32
        %s3291 = smul.addr %s3290, 4
        %s3292 = scalar_lea.vmem %s3, %s3291
      $region48: #{dcnet_forward.3} parent=43 // pred_fallthru
        _
      // Predicated region
      $region49: #{dcnet_forward.3} parent=43 // pred_check
        %p3293 = pneg %p134
      $region50: #{dcnet_forward.3} parent=43 // pred_check_branch
        %3295 = sbr.rel (%p3293) target = $region52
      $region51: #{dcnet_forward.3} parent=43 // pred_region
        %p3296 = scmp.lt.s32.totalorder %s17, 1
        %s3297 = scalar_select %p3296, %s17, 1
        %s3298 = smul.addr %s3297, 2
        %s3299 = scalar_lea.vmem %s4, %s3298
      $region52: #{dcnet_forward.3} parent=43 // pred_fallthru
        _
    $region44: #{dcnet_forward.3} parent=5 // pred_fallthru
      _
  $region6: #{dcnet_forward.3} parent=0 // loop_footer
    %s15 = sadd.s32 1, %s11
  $region7: #{dcnet_forward.3} parent=0 // loop_footer_branch
    %10 = sbr.rel target = $region3
  $region8: #{dcnet_forward.3} parent=0 // loop_exit
    _

</llo_original>
